<compile_context>
chip_gen: v5e
topology: v5e:2x2
jax: 0.10.0
libtpu: 0.0.40
codegen_flags: <defaults>
</compile_context>

<pallas_src>
import functools
import math

import numpy as np
import jax
import jax.numpy as jnp
from jax.experimental import pallas as pl
from jax.experimental.pallas import tpu as pltpu


# ----------------------------- config -----------------------------
class Config:
    vocab_size = 64
    n_embd = 32
    n_head = 4
    rotary_dim = 4
    num_q = 2
    dim_z = 8
    latent_aggregator_layers = 2
    layer_norm_epsilon = 1e-5
    initializer_range = 0.02
    pad_token_id = 0
    eos_token_id = 0       # matches typical GPT-J usage where pad == eos
    n_inner = None         # -> 4 * n_embd


_NEG = -1.0e30  # safe "minus infinity" for additive attention masking (exp() underflows to 0)


# ----------------------------- fused aggregator kernel -----------------------------
def _aggregator_kernel(hidden_ref, pad_bias_ref, rope_ref, ln_ref, w_main_ref,
                       fc_out_w_ref, vec_b_ref, h2z_w_ref, out_ref, *,
                       num_layers, n_head, num_q, t_valid, t_pad, eps, inv_scale, use_bf16):
    """One grid step == one block of batch elements.  Whole aggregator computed in VMEM."""
    f32 = jnp.float32
    mxu_dt = jnp.bfloat16 if use_bf16 else f32

    BT, D = hidden_ref.shape                 # BT = Bblk * t_pad, lane-dense rows
    Bblk = BT // t_pad
    Dh = D // n_head
    inner = fc_out_w_ref.shape[1]
    Z2 = h2z_w_ref.shape[1]
    gelu_c = math.sqrt(2.0 / math.pi)

    def layer_norm(x, pair_idx):
        g = ln_ref[2 * pair_idx:2 * pair_idx + 1, :]        # (1, D)
        b = ln_ref[2 * pair_idx + 1:2 * pair_idx + 2, :]
        mu = jnp.mean(x, axis=-1, keepdims=True)
        xc = x - mu
        var = jnp.mean(xc * xc, axis=-1, keepdims=True)
        return xc * jax.lax.rsqrt(var + eps) * g + b

    def mm(a, w):                                            # a @ w, f32 accumulation
        return jnp.dot(a.astype(mxu_dt), w.astype(mxu_dt), preferred_element_type=f32)

    def mm_t(a, b):                                          # a @ b.T, f32 accumulation
        return jax.lax.dot_general(a.astype(mxu_dt), b.astype(mxu_dt),
                                   (((1,), (1,)), ((), ())), preferred_element_type=f32)

    sin = rope_ref[0]                                        # (BT, D) interleaved rotary sin
    cos = rope_ref[1]                                        # (BT, D) interleaved rotary cos
    pad_bias = pad_bias_ref[...].astype(f32)                 # (Bblk, 1, t_pad) additive key mask

    # causal additive bias, built in-kernel (no (B,T,T) HBM traffic / VMEM block)
    row = jax.lax.broadcasted_iota(jnp.int32, (t_pad, t_pad), 0)
    col = jax.lax.broadcasted_iota(jnp.int32, (t_pad, t_pad), 1)
    causal = jnp.where(col <= row, jnp.float32(0.0), jnp.float32(_NEG))   # (t_pad, t_pad)

    h = hidden_ref[...].astype(f32)                          # (BT, D)
    h = layer_norm(h, 0)                                     # LatentAggregator.ln_input

    for l in range(num_layers):                              # static unroll (L=2)
        hs = layer_norm(h, 1 + l)                            # GPT-J block ln_1 output

        # fused projection: one (BT,D)x(D, 5D+inner) MXU pass gives q,k,v,q@P,k@P,fc_in
        w_l = w_main_ref[l]                                  # (D, 5D + inner + D)
        proj = mm(hs, w_l[:, :5 * D + inner])                # (BT, 5D + inner)
        q = proj[:, 0 * D:1 * D] * cos + proj[:, 3 * D:4 * D] * sin   # RoPE folded into weights
        k = proj[:, 1 * D:2 * D] * cos + proj[:, 4 * D:5 * D] * sin
        v = proj[:, 2 * D:3 * D]

        # MLP: fc_in result already in `proj`; gelu_new; fc_out
        ff = proj[:, 5 * D:5 * D + inner] + vec_b_ref[l:l + 1, :]
        ff = 0.5 * ff * (1.0 + jnp.tanh(gelu_c * (ff + 0.044715 * ff * ff * ff)))
        ff = mm(ff, fc_out_w_ref[l]) + vec_b_ref[num_layers + l:num_layers + l + 1, :D]

        # attention: per (batch-in-block, head) scores; per-head contexts lane-concatenated so
        # the output projection is ONE dense (BT,D)x(D,D) matmul (no per-head accumulation).
        ctx_rows = []
        for b in range(Bblk):
            r0 = b * t_pad
            qb = q[r0:r0 + t_pad]
            kb = k[r0:r0 + t_pad]
            vb = v[r0:r0 + t_pad]
            bias_b = causal + pad_bias[b]                    # (t_pad, t_pad), f32
            heads = []
            for hd in range(n_head):
                lo = hd * Dh
                s = mm_t(qb[:, lo:lo + Dh], kb[:, lo:lo + Dh]) * inv_scale + bias_b
                s = s - jnp.max(s, axis=-1, keepdims=True)
                e = jnp.exp(s)
                p = e * pl.reciprocal(jnp.sum(e, axis=-1, keepdims=True), approx=True)
                heads.append(mm(p, vb[:, lo:lo + Dh]))       # (t_pad, Dh)
            ctx_rows.append(jnp.concatenate(heads, axis=-1)) # (t_pad, D)
        ctx = jnp.concatenate(ctx_rows, axis=0)              # (BT, D)
        attn_out = mm(ctx, w_l[:, 5 * D + inner:])           # out projection (no bias in GPT-J)

        h = attn_out + ff + h                                # parallel attn+MLP residual

    # ln_output + h2z over all rows (padded rows are dead weight at this size), then extract the
    # num_q query rows (positions t_valid-num_q .. t_valid-1 of each sequence).
    hq = layer_norm(h, 1 + num_layers)
    lat = mm(hq, h2z_w_ref[...]) + vec_b_ref[2 * num_layers:2 * num_layers + 1, :Z2]  # (BT, Z2)
    for b in range(Bblk):
        r0 = b * t_pad + (t_valid - num_q)
        out_ref[b, :, :] = lat[r0:r0 + num_q, :].astype(out_ref.dtype)


# ----------------------------- host-side table construction -----------------------------
def _build_rope_tables(t_pad, D, n_head, rot):
    """Full-width (t_pad, D) interleaved sin/cos tables + rotate_every_two as a (D, D) matrix."""
    Dh = D // n_head
    inv_freq = 1.0 / (10000.0 ** (np.arange(0, rot, 2, dtype=np.float64) / rot))
    sinusoid = np.einsum("i,j->ij", np.arange(t_pad, dtype=np.float64), inv_freq)
    sin_rep = np.repeat(np.sin(sinusoid), 2, axis=1).astype(np.float32)   # interleaved
    cos_rep = np.repeat(np.cos(sinusoid), 2, axis=1).astype(np.float32)

    sin_full = np.zeros((t_pad, D), np.float32)
    cos_full = np.ones((t_pad, D), np.float32)
    P = np.zeros((D, D), np.float32)      # (x @ P) == rotate_every_two(x) on rotary lanes
    for h in range(n_head):
        base = h * Dh
        sin_full[:, base:base + rot] = sin_rep
        cos_full[:, base:base + rot] = cos_rep
        for r in range(0, rot, 2):
            P[base + r + 1, base + r] = -1.0     # out[even] = -x[odd]
            P[base + r, base + r + 1] = 1.0      # out[odd]  =  x[even]
    return sin_full, cos_full, P


# ----------------------------- LatentAggregator (one pallas_call) -----------------------------
def latent_aggregator(params, cfg, input_embeds, input_embeds_mask, fix_entropy=False,
                      num_batch_blocks=None, use_bf16=True):
    B, S, D = input_embeds.shape
    num_q = cfg.num_q
    T = S + num_q
    Tp = ((T + 7) // 8) * 8                 # pad to sublane multiple; extra rows fully masked
    H = cfg.n_head
    Dh = D // H
    L = cfg.latent_aggregator_layers
    inner = cfg.n_inner if cfg.n_inner is not None else 4 * D
    Z2 = cfg.dim_z * 2 // num_q
    assert cfg.dim_z % num_q == 0 and D % H == 0
    assert cfg.rotary_dim % 2 == 0 and cfg.rotary_dim <= Dh

    if num_batch_blocks is None:
        # Whole batch per grid step (amortizes ~0.35us/step, fills sublanes) — biggest lever at
        # this tiny T/D.  Use 2 blocks (keeps both v7x TensorCores busy) once the batch is big
        # enough that each block still carries several sequences.
        num_batch_blocks = 2 if (B % 2 == 0 and B >= 4) else 1
    assert B % num_batch_blocks == 0
    Bblk = B // num_batch_blocks

    # key-padding additive bias only; causal term is built in-kernel.
    attn_mask = jnp.concatenate(
        [input_embeds_mask.astype(jnp.float32),
         jnp.ones((B, num_q), jnp.float32),
         jnp.zeros((B, Tp - T), jnp.float32)], axis=1)                       # (B, Tp)
    pad_bias = ((1.0 - attn_mask) * jnp.float32(_NEG))[:, None, :]           # (B, 1, Tp)

    queries = jnp.broadcast_to(params["queries"], (B, num_q, D))
    hidden0 = jnp.concatenate(
        [input_embeds, queries, jnp.zeros((B, Tp - T, D), input_embeds.dtype)], axis=1)
    hidden0 = hidden0.reshape(B * Tp, D)     # lane-dense, sublane-aligned activation slab

    sin_np, cos_np, P_np = _build_rope_tables(Tp, D, H, cfg.rotary_dim)
    rope = jnp.asarray(np.stack([np.tile(sin_np, (Bblk, 1)),
                                 np.tile(cos_np, (Bblk, 1))]))               # (2, Bblk*Tp, D)
    P = jnp.asarray(P_np)

    blocks = params["blocks"]
    # all LayerNorm params in one array: rows [g,b] for ln_input, ln_1[0..L-1], ln_output
    ln_rows = [params["ln_input"]["g"], params["ln_input"]["b"]]
    for blk in blocks:
        ln_rows += [blk["ln_1"]["g"], blk["ln_1"]["b"]]
    ln_rows += [params["ln_output"]["g"], params["ln_output"]["b"]]
    ln_pack = jnp.stack(ln_rows)                                             # (2L+4, D)

    # per-layer row-space-D weights packed along lanes; RoPE folded in via Wq@P / Wk@P.
    w_main = jnp.stack([
        jnp.concatenate([blk["q_w"], blk["k_w"], blk["v_w"],
                         blk["q_w"] @ P, blk["k_w"] @ P,
                         blk["fc_in_w"], blk["o_w"]], axis=1)
        for blk in blocks])                                                  # (L, D, 5D+inner+D)
    fc_out_w = jnp.stack([blk["fc_out_w"] for blk in blocks])                # (L, inner, D)

    # all 1-D bias vectors packed (zero-padded to `inner` lanes):
    # rows [0:L] fc_in_b, [L:2L] fc_out_b, [2L] h2z_b
    def pad_row(v):
        return jnp.pad(v, (0, inner - v.shape[0]))
    vec_b = jnp.stack([blk["fc_in_b"] for blk in blocks]
                      + [pad_row(blk["fc_out_b"]) for blk in blocks]
                      + [pad_row(params["h2z"]["b"])])                       # (2L+1, inner)

    kernel = functools.partial(
        _aggregator_kernel, num_layers=L, n_head=H, num_q=num_q, t_valid=T, t_pad=Tp,
        eps=cfg.layer_norm_epsilon, inv_scale=1.0 / math.sqrt(Dh), use_bf16=use_bf16)

    const2 = lambda i: (0, 0)
    const3 = lambda i: (0, 0, 0)

    latent = pl.pallas_call(
        kernel,
        out_shape=jax.ShapeDtypeStruct((B, num_q, Z2), jnp.float32),
        grid=(num_batch_blocks,),
        in_specs=[
            pl.BlockSpec((Bblk * Tp, D), lambda i: (i, 0)),    # activations (batch block)
            pl.BlockSpec((Bblk, 1, Tp), lambda i: (i, 0, 0)),  # key-padding additive bias
            pl.BlockSpec((2, Bblk * Tp, D), const3),           # rope sin/cos (tiled per block)
            pl.BlockSpec((2 * L + 4, D), const2),              # all LayerNorm gammas/betas
            pl.BlockSpec((L, D, 5 * D + inner + D), const3),   # qkv + rope + fc_in + out_proj W
            pl.BlockSpec((L, inner, D), const3),               # fc_out weights
            pl.BlockSpec((2 * L + 1, inner), const2),          # fc_in / fc_out / h2z biases
            pl.BlockSpec((D, Z2), const2),                     # h2z weight
        ],
        out_specs=pl.BlockSpec((Bblk, num_q, Z2), lambda i: (i, 0, 0)),
        compiler_params=pltpu.CompilerParams(dimension_semantics=("parallel",)),
    )(hidden0, pad_bias, rope, ln_pack, w_main, fc_out_w, vec_b, params["h2z"]["w"])

    half = cfg.dim_z // num_q
    mean = latent[:, :, :half].reshape(B, cfg.dim_z)
    logvar = latent[:, :, half:].reshape(B, cfg.dim_z)
    if fix_entropy:
        logvar = logvar - jnp.sum(logvar, axis=-1, keepdims=True) / cfg.dim_z
    return mean, logvar


# ----------------------------- LatentEncoder forward -----------------------------
def latent_encoder_forward(params, cfg, input_ids, fix_entropy=False, use_bf16=True):
    B, S = input_ids.shape
    # TODO(synk): per-row dynamic roll (roll_right_padding_to_left) + embedding gather stay in
    # plain JAX (data-dependent gather; no static-BlockSpec Pallas equivalent worth it here).
    last_valid = jnp.sum((input_ids != cfg.pad_token_id).astype(jnp.int32), axis=1)
    shifts = S - last_valid
    left_padded = jax.vmap(lambda r, s: jnp.roll(r, s))(input_ids, shifts)
    input_embeds = params["wte"][left_padded]
    input_embeds_mask = (left_padded != cfg.eos_token_id).astype(jnp.float32)
    return latent_aggregator(params, cfg, input_embeds, input_embeds_mask,
                             fix_entropy=fix_entropy, use_bf16=use_bf16)


# ----------------------------- deterministic parameter init -----------------------------
def init_params(cfg, key):
    keys = iter(jax.random.split(key, 64))

    def nrm(shape, std=0.02):
        return std * jax.random.normal(next(keys), shape, jnp.float32)

    D = cfg.n_embd
    inner = cfg.n_inner if cfg.n_inner is not None else 4 * D
    params = {
        "wte": nrm((cfg.vocab_size, D)),
        "queries": nrm((1, cfg.num_q, D), std=cfg.initializer_range),
        "ln_input": {"g": jnp.ones((D,), jnp.float32), "b": jnp.zeros((D,), jnp.float32)},
        "ln_output": {"g": jnp.ones((D,), jnp.float32), "b": jnp.zeros((D,), jnp.float32)},
        # NOTE: the PyTorch module's standardize() zeroes h2z (output would be all-zero);
        # kept nonzero deterministic init so the kernel path produces a nontrivial output.
        "h2z": {"w": nrm((D, cfg.dim_z * 2 // cfg.num_q)),
                "b": jnp.zeros((cfg.dim_z * 2 // cfg.num_q,), jnp.float32)},
        "blocks": [],
    }
    for _ in range(cfg.latent_aggregator_layers):
        params["blocks"].append({
            "ln_1": {"g": jnp.ones((D,), jnp.float32), "b": jnp.zeros((D,), jnp.float32)},
            "q_w": nrm((D, D)), "k_w": nrm((D, D)), "v_w": nrm((D, D)), "o_w": nrm((D, D)),
            "fc_in_w": nrm((D, inner)), "fc_in_b": jnp.zeros((inner,), jnp.float32),
            "fc_out_w": nrm((inner, D)), "fc_out_b": jnp.zeros((D,), jnp.float32),
        })
    return params


# ----------------------------- main -----------------------------
if __name__ == "__main__":
    cfg = Config()
    key = jax.random.PRNGKey(0)
    pkey, ikey = jax.random.split(key)
    params = init_params(cfg, pkey)

    B, S = 2, 8
    ids = jax.random.randint(ikey, (B, S), 2, cfg.vocab_size)
    # right-padded input ids (row 0 has 6 valid tokens, row 1 has 5)
    valid_lens = jnp.array([[6], [5]])
    input_ids = jnp.where(jnp.arange(S)[None, :] >= valid_lens, cfg.pad_token_id, ids)

    fwd = jax.jit(lambda x: latent_encoder_forward(params, cfg, x, fix_entropy=False))
    mean, logvar = fwd(input_ids)
    jax.block_until_ready((mean, logvar))

    assert mean.shape == (B, cfg.dim_z) and logvar.shape == (B, cfg.dim_z)
    assert bool(jnp.all(jnp.isfinite(mean))) and bool(jnp.all(jnp.isfinite(logvar)))
    print("KERNEL_OK")
</pallas_src>

<mosaic_0001>
module attributes {stable_mosaic.version = 11 : i64} {
  func.func @_aggregator_kernel(%arg0: i32, %arg1: memref<32x32xf32, #tpu.memory_space<vmem>>, %arg2: memref<2x1x16xf32, #tpu.memory_space<vmem>>, %arg3: memref<2x32x32xf32, #tpu.memory_space<vmem>>, %arg4: memref<8x32xf32, #tpu.memory_space<vmem>>, %arg5: memref<2x32x320xf32, #tpu.memory_space<vmem>>, %arg6: memref<2x128x32xf32, #tpu.memory_space<vmem>>, %arg7: memref<5x128xf32, #tpu.memory_space<vmem>>, %arg8: memref<32x8xf32, #tpu.memory_space<vmem>>, %arg9: memref<2x2x8xf32, #tpu.memory_space<vmem>>) attributes {dimension_semantics = [#tpu.dimension_semantics<parallel>], iteration_bounds = array<i64: 1>, scalar_prefetch = 0 : i64, scratch_operands = 0 : i64, tpu.core_type = #tpu.core_type<tc>, window_params = [{transform_indices = @transform_0, window_bounds = array<i64: 32, 32>}, {transform_indices = @transform_1, window_bounds = array<i64: 2, 1, 16>}, {pipeline_mode = #tpu.pipeline_mode<synchronous>, transform_indices = @transform_2, window_bounds = array<i64: 2, 32, 32>}, {pipeline_mode = #tpu.pipeline_mode<synchronous>, transform_indices = @transform_3, window_bounds = array<i64: 8, 32>}, {pipeline_mode = #tpu.pipeline_mode<synchronous>, transform_indices = @transform_4, window_bounds = array<i64: 2, 32, 320>}, {pipeline_mode = #tpu.pipeline_mode<synchronous>, transform_indices = @transform_5, window_bounds = array<i64: 2, 128, 32>}, {pipeline_mode = #tpu.pipeline_mode<synchronous>, transform_indices = @transform_6, window_bounds = array<i64: 5, 128>}, {pipeline_mode = #tpu.pipeline_mode<synchronous>, transform_indices = @transform_7, window_bounds = array<i64: 32, 8>}, {transform_indices = @transform_8, window_bounds = array<i64: 2, 2, 8>}]} {
    %c0 = arith.constant 0 : index
    %c0_0 = arith.constant 0 : index
    %c0_1 = arith.constant 0 : index
    %0 = vector.load %arg3[%c0, %c0_0, %c0_1] : memref<2x32x32xf32, #tpu.memory_space<vmem>>, vector<1x32x32xf32>
    %1 = vector.shape_cast %0 : vector<1x32x32xf32> to vector<32x32xf32>
    %c1 = arith.constant 1 : index
    %c0_2 = arith.constant 0 : index
    %c0_3 = arith.constant 0 : index
    %2 = vector.load %arg3[%c1, %c0_2, %c0_3] : memref<2x32x32xf32, #tpu.memory_space<vmem>>, vector<1x32x32xf32>
    %3 = vector.shape_cast %2 : vector<1x32x32xf32> to vector<32x32xf32>
    %c0_4 = arith.constant 0 : index
    %c0_5 = arith.constant 0 : index
    %c0_6 = arith.constant 0 : index
    %4 = vector.load %arg2[%c0_4, %c0_5, %c0_6] : memref<2x1x16xf32, #tpu.memory_space<vmem>>, vector<2x1x16xf32>
    %5 = tpu.iota {dimensions = array<i32: 0>} : vector<16x16xi32>
    %6 = tpu.iota {dimensions = array<i32: 1>} : vector<16x16xi32>
    %7 = arith.cmpi sle, %6, %5 : vector<16x16xi32>
    %cst = arith.constant 0.000000e+00 : f32
    %cst_7 = arith.constant -1.000000e+30 : f32
    %8 = vector.broadcast %cst : f32 to vector<16x16xf32>
    %9 = vector.broadcast %cst_7 : f32 to vector<16x16xf32>
    %10 = arith.select %7, %8, %9 : vector<16x16xi1>, vector<16x16xf32>
    %c0_8 = arith.constant 0 : index
    %c0_9 = arith.constant 0 : index
    %11 = vector.load %arg1[%c0_8, %c0_9] : memref<32x32xf32, #tpu.memory_space<vmem>>, vector<32x32xf32>
    %c0_10 = arith.constant 0 : index
    %c0_11 = arith.constant 0 : index
    %12 = vector.load %arg4[%c0_10, %c0_11] : memref<8x32xf32, #tpu.memory_space<vmem>>, vector<1x32xf32>
    %c1_12 = arith.constant 1 : index
    %c0_13 = arith.constant 0 : index
    %13 = vector.load %arg4[%c1_12, %c0_13] : memref<8x32xf32, #tpu.memory_space<vmem>>, vector<1x32xf32>
    %cst_14 = arith.constant dense<0.000000e+00> : vector<32xf32>
    %14 = vector.multi_reduction <add>, %11, %cst_14 [1] : vector<32x32xf32> to vector<32xf32>
    %15 = vector.shape_cast %14 : vector<32xf32> to vector<32x1xf32>
    %cst_15 = arith.constant 3.200000e+01 : f32
    %16 = vector.broadcast %cst_15 : f32 to vector<32x1xf32>
    %17 = arith.divf %15, %16 : vector<32x1xf32>
    %18 = vector.broadcast %17 : vector<32x1xf32> to vector<32x32xf32>
    %19 = arith.subf %11, %18 : vector<32x32xf32>
    %20 = arith.mulf %19, %19 : vector<32x32xf32>
    %cst_16 = arith.constant dense<0.000000e+00> : vector<32xf32>
    %21 = vector.multi_reduction <add>, %20, %cst_16 [1] : vector<32x32xf32> to vector<32xf32>
    %22 = vector.shape_cast %21 : vector<32xf32> to vector<32x1xf32>
    %cst_17 = arith.constant 3.200000e+01 : f32
    %23 = vector.broadcast %cst_17 : f32 to vector<32x1xf32>
    %24 = arith.divf %22, %23 : vector<32x1xf32>
    %cst_18 = arith.constant 9.99999974E-6 : f32
    %25 = vector.broadcast %cst_18 : f32 to vector<32x1xf32>
    %26 = arith.addf %24, %25 : vector<32x1xf32>
    %27 = math.rsqrt %26 : vector<32x1xf32>
    %28 = vector.broadcast %27 : vector<32x1xf32> to vector<32x32xf32>
    %29 = arith.mulf %19, %28 : vector<32x32xf32>
    %30 = vector.broadcast %12 : vector<1x32xf32> to vector<32x32xf32>
    %31 = arith.mulf %29, %30 : vector<32x32xf32>
    %32 = vector.broadcast %13 : vector<1x32xf32> to vector<32x32xf32>
    %33 = arith.addf %31, %32 : vector<32x32xf32>
    %c2 = arith.constant 2 : index
    %c0_19 = arith.constant 0 : index
    %34 = vector.load %arg4[%c2, %c0_19] : memref<8x32xf32, #tpu.memory_space<vmem>>, vector<1x32xf32>
    %c3 = arith.constant 3 : index
    %c0_20 = arith.constant 0 : index
    %35 = vector.load %arg4[%c3, %c0_20] : memref<8x32xf32, #tpu.memory_space<vmem>>, vector<1x32xf32>
    %cst_21 = arith.constant dense<0.000000e+00> : vector<32xf32>
    %36 = vector.multi_reduction <add>, %33, %cst_21 [1] : vector<32x32xf32> to vector<32xf32>
    %37 = vector.shape_cast %36 : vector<32xf32> to vector<32x1xf32>
    %cst_22 = arith.constant 3.200000e+01 : f32
    %38 = vector.broadcast %cst_22 : f32 to vector<32x1xf32>
    %39 = arith.divf %37, %38 : vector<32x1xf32>
    %40 = vector.broadcast %39 : vector<32x1xf32> to vector<32x32xf32>
    %41 = arith.subf %33, %40 : vector<32x32xf32>
    %42 = arith.mulf %41, %41 : vector<32x32xf32>
    %cst_23 = arith.constant dense<0.000000e+00> : vector<32xf32>
    %43 = vector.multi_reduction <add>, %42, %cst_23 [1] : vector<32x32xf32> to vector<32xf32>
    %44 = vector.shape_cast %43 : vector<32xf32> to vector<32x1xf32>
    %cst_24 = arith.constant 3.200000e+01 : f32
    %45 = vector.broadcast %cst_24 : f32 to vector<32x1xf32>
    %46 = arith.divf %44, %45 : vector<32x1xf32>
    %cst_25 = arith.constant 9.99999974E-6 : f32
    %47 = vector.broadcast %cst_25 : f32 to vector<32x1xf32>
    %48 = arith.addf %46, %47 : vector<32x1xf32>
    %49 = math.rsqrt %48 : vector<32x1xf32>
    %50 = vector.broadcast %49 : vector<32x1xf32> to vector<32x32xf32>
    %51 = arith.mulf %41, %50 : vector<32x32xf32>
    %52 = vector.broadcast %34 : vector<1x32xf32> to vector<32x32xf32>
    %53 = arith.mulf %51, %52 : vector<32x32xf32>
    %54 = vector.broadcast %35 : vector<1x32xf32> to vector<32x32xf32>
    %55 = arith.addf %53, %54 : vector<32x32xf32>
    %c0_26 = arith.constant 0 : index
    %c0_27 = arith.constant 0 : index
    %c0_28 = arith.constant 0 : index
    %56 = vector.load %arg5[%c0_26, %c0_27, %c0_28] : memref<2x32x320xf32, #tpu.memory_space<vmem>>, vector<1x32x320xf32>
    %57 = vector.shape_cast %56 : vector<1x32x320xf32> to vector<32x320xf32>
    %58 = vector.extract_strided_slice %57 {offsets = [0, 0], sizes = [32, 288], strides = [1, 1]} : vector<32x320xf32> to vector<32x288xf32>
    %59 = arith.truncf %55 : vector<32x32xf32> to vector<32x32xbf16>
    %60 = arith.truncf %58 : vector<32x288xf32> to vector<32x288xbf16>
    %cst_29 = arith.constant dense<0.000000e+00> : vector<32x288xf32>
    %61 = tpu.matmul %59, %60, %cst_29 {dimension_numbers = #tpu.dot_dimension_numbers<[1], [0], [0], [1], [0, 0, 1, 1], [], []>} : vector<32x32xbf16>, vector<32x288xbf16>, vector<32x288xf32> -> vector<32x288xf32>
    %62 = vector.extract_strided_slice %61 {offsets = [0, 0], sizes = [32, 32], strides = [1, 1]} : vector<32x288xf32> to vector<32x32xf32>
    %63 = arith.mulf %62, %3 : vector<32x32xf32>
    %64 = vector.extract_strided_slice %61 {offsets = [0, 96], sizes = [32, 32], strides = [1, 1]} : vector<32x288xf32> to vector<32x32xf32>
    %65 = arith.mulf %64, %1 : vector<32x32xf32>
    %66 = arith.addf %63, %65 : vector<32x32xf32>
    %67 = vector.extract_strided_slice %61 {offsets = [0, 32], sizes = [32, 32], strides = [1, 1]} : vector<32x288xf32> to vector<32x32xf32>
    %68 = arith.mulf %67, %3 : vector<32x32xf32>
    %69 = vector.extract_strided_slice %61 {offsets = [0, 128], sizes = [32, 32], strides = [1, 1]} : vector<32x288xf32> to vector<32x32xf32>
    %70 = arith.mulf %69, %1 : vector<32x32xf32>
    %71 = arith.addf %68, %70 : vector<32x32xf32>
    %72 = vector.extract_strided_slice %61 {offsets = [0, 64], sizes = [32, 32], strides = [1, 1]} : vector<32x288xf32> to vector<32x32xf32>
    %73 = vector.extract_strided_slice %61 {offsets = [0, 160], sizes = [32, 128], strides = [1, 1]} : vector<32x288xf32> to vector<32x128xf32>
    %c0_30 = arith.constant 0 : index
    %c0_31 = arith.constant 0 : index
    %74 = vector.load %arg7[%c0_30, %c0_31] : memref<5x128xf32, #tpu.memory_space<vmem>>, vector<1x128xf32>
    %75 = vector.broadcast %74 : vector<1x128xf32> to vector<32x128xf32>
    %76 = arith.addf %73, %75 : vector<32x128xf32>
    %cst_32 = arith.constant 5.000000e-01 : f32
    %77 = vector.broadcast %cst_32 : f32 to vector<32x128xf32>
    %78 = arith.mulf %77, %76 : vector<32x128xf32>
    %cst_33 = arith.constant 4.471500e-02 : f32
    %79 = vector.broadcast %cst_33 : f32 to vector<32x128xf32>
    %80 = arith.mulf %79, %76 : vector<32x128xf32>
    %81 = arith.mulf %80, %76 : vector<32x128xf32>
    %82 = arith.mulf %81, %76 : vector<32x128xf32>
    %83 = arith.addf %76, %82 : vector<32x128xf32>
    %cst_34 = arith.constant 0.797884583 : f32
    %84 = vector.broadcast %cst_34 : f32 to vector<32x128xf32>
    %85 = arith.mulf %84, %83 : vector<32x128xf32>
    %86 = math.tanh %85 : vector<32x128xf32>
    %cst_35 = arith.constant 1.000000e+00 : f32
    %87 = vector.broadcast %cst_35 : f32 to vector<32x128xf32>
    %88 = arith.addf %87, %86 : vector<32x128xf32>
    %89 = arith.mulf %78, %88 : vector<32x128xf32>
    %c0_36 = arith.constant 0 : index
    %c0_37 = arith.constant 0 : index
    %c0_38 = arith.constant 0 : index
    %90 = vector.load %arg6[%c0_36, %c0_37, %c0_38] : memref<2x128x32xf32, #tpu.memory_space<vmem>>, vector<1x128x32xf32>
    %91 = vector.shape_cast %90 : vector<1x128x32xf32> to vector<128x32xf32>
    %92 = arith.truncf %89 : vector<32x128xf32> to vector<32x128xbf16>
    %93 = arith.truncf %91 : vector<128x32xf32> to vector<128x32xbf16>
    %cst_39 = arith.constant dense<0.000000e+00> : vector<32x32xf32>
    %94 = tpu.matmul %92, %93, %cst_39 {dimension_numbers = #tpu.dot_dimension_numbers<[1], [0], [0], [1], [0, 0, 1, 1], [], []>} : vector<32x128xbf16>, vector<128x32xbf16>, vector<32x32xf32> -> vector<32x32xf32>
    %c2_40 = arith.constant 2 : index
    %c0_41 = arith.constant 0 : index
    %95 = vector.load %arg7[%c2_40, %c0_41] : memref<5x128xf32, #tpu.memory_space<vmem>>, vector<1x32xf32>
    %96 = vector.broadcast %95 : vector<1x32xf32> to vector<32x32xf32>
    %97 = arith.addf %94, %96 : vector<32x32xf32>
    %98 = vector.extract_strided_slice %66 {offsets = [0, 0], sizes = [16, 32], strides = [1, 1]} : vector<32x32xf32> to vector<16x32xf32>
    %99 = vector.extract_strided_slice %71 {offsets = [0, 0], sizes = [16, 32], strides = [1, 1]} : vector<32x32xf32> to vector<16x32xf32>
    %100 = vector.extract_strided_slice %72 {offsets = [0, 0], sizes = [16, 32], strides = [1, 1]} : vector<32x32xf32> to vector<16x32xf32>
    %101 = vector.extract_strided_slice %4 {offsets = [0, 0, 0], sizes = [1, 1, 16], strides = [1, 1, 1]} : vector<2x1x16xf32> to vector<1x1x16xf32>
    %102 = vector.shape_cast %101 : vector<1x1x16xf32> to vector<1x16xf32>
    %103 = vector.broadcast %102 : vector<1x16xf32> to vector<16x16xf32>
    %104 = arith.addf %10, %103 : vector<16x16xf32>
    %105 = vector.extract_strided_slice %98 {offsets = [0, 0], sizes = [16, 8], strides = [1, 1]} : vector<16x32xf32> to vector<16x8xf32>
    %106 = vector.extract_strided_slice %99 {offsets = [0, 0], sizes = [16, 8], strides = [1, 1]} : vector<16x32xf32> to vector<16x8xf32>
    %107 = arith.truncf %105 : vector<16x8xf32> to vector<16x8xbf16>
    %108 = arith.truncf %106 : vector<16x8xf32> to vector<16x8xbf16>
    %cst_42 = arith.constant dense<0.000000e+00> : vector<16x16xf32>
    %109 = tpu.matmul %107, %108, %cst_42 {dimension_numbers = #tpu.dot_dimension_numbers<[1], [1], [0], [0], [0, 0, 1, 0], [], []>} : vector<16x8xbf16>, vector<16x8xbf16>, vector<16x16xf32> -> vector<16x16xf32>
    %cst_43 = arith.constant 0.353553385 : f32
    %110 = vector.broadcast %cst_43 : f32 to vector<16x16xf32>
    %111 = arith.mulf %109, %110 : vector<16x16xf32>
    %112 = arith.addf %111, %104 : vector<16x16xf32>
    %cst_44 = arith.constant dense<0xFF800000> : vector<16xf32>
    %113 = vector.multi_reduction <maximumf>, %112, %cst_44 [1] : vector<16x16xf32> to vector<16xf32>
    %114 = vector.shape_cast %113 : vector<16xf32> to vector<16x1xf32>
    %115 = vector.broadcast %114 : vector<16x1xf32> to vector<16x16xf32>
    %116 = arith.subf %112, %115 : vector<16x16xf32>
    %117 = math.exp %116 : vector<16x16xf32>
    %cst_45 = arith.constant dense<0.000000e+00> : vector<16xf32>
    %118 = vector.multi_reduction <add>, %117, %cst_45 [1] : vector<16x16xf32> to vector<16xf32>
    %119 = vector.shape_cast %118 : vector<16xf32> to vector<16x1xf32>
    %120 = tpu.reciprocal %119 {approx = true} : vector<16x1xf32> -> vector<16x1xf32>
    %121 = vector.broadcast %120 : vector<16x1xf32> to vector<16x16xf32>
    %122 = arith.mulf %117, %121 : vector<16x16xf32>
    %123 = vector.extract_strided_slice %100 {offsets = [0, 0], sizes = [16, 8], strides = [1, 1]} : vector<16x32xf32> to vector<16x8xf32>
    %124 = arith.truncf %122 : vector<16x16xf32> to vector<16x16xbf16>
    %125 = arith.truncf %123 : vector<16x8xf32> to vector<16x8xbf16>
    %cst_46 = arith.constant dense<0.000000e+00> : vector<16x8xf32>
    %126 = tpu.matmul %124, %125, %cst_46 {dimension_numbers = #tpu.dot_dimension_numbers<[1], [0], [0], [1], [0, 0, 1, 1], [], []>} : vector<16x16xbf16>, vector<16x8xbf16>, vector<16x8xf32> -> vector<16x8xf32>
    %127 = vector.extract_strided_slice %98 {offsets = [0, 8], sizes = [16, 8], strides = [1, 1]} : vector<16x32xf32> to vector<16x8xf32>
    %128 = vector.extract_strided_slice %99 {offsets = [0, 8], sizes = [16, 8], strides = [1, 1]} : vector<16x32xf32> to vector<16x8xf32>
    %129 = arith.truncf %127 : vector<16x8xf32> to vector<16x8xbf16>
    %130 = arith.truncf %128 : vector<16x8xf32> to vector<16x8xbf16>
    %cst_47 = arith.constant dense<0.000000e+00> : vector<16x16xf32>
    %131 = tpu.matmul %129, %130, %cst_47 {dimension_numbers = #tpu.dot_dimension_numbers<[1], [1], [0], [0], [0, 0, 1, 0], [], []>} : vector<16x8xbf16>, vector<16x8xbf16>, vector<16x16xf32> -> vector<16x16xf32>
    %cst_48 = arith.constant 0.353553385 : f32
    %132 = vector.broadcast %cst_48 : f32 to vector<16x16xf32>
    %133 = arith.mulf %131, %132 : vector<16x16xf32>
    %134 = arith.addf %133, %104 : vector<16x16xf32>
    %cst_49 = arith.constant dense<0xFF800000> : vector<16xf32>
    %135 = vector.multi_reduction <maximumf>, %134, %cst_49 [1] : vector<16x16xf32> to vector<16xf32>
    %136 = vector.shape_cast %135 : vector<16xf32> to vector<16x1xf32>
    %137 = vector.broadcast %136 : vector<16x1xf32> to vector<16x16xf32>
    %138 = arith.subf %134, %137 : vector<16x16xf32>
    %139 = math.exp %138 : vector<16x16xf32>
    %cst_50 = arith.constant dense<0.000000e+00> : vector<16xf32>
    %140 = vector.multi_reduction <add>, %139, %cst_50 [1] : vector<16x16xf32> to vector<16xf32>
    %141 = vector.shape_cast %140 : vector<16xf32> to vector<16x1xf32>
    %142 = tpu.reciprocal %141 {approx = true} : vector<16x1xf32> -> vector<16x1xf32>
    %143 = vector.broadcast %142 : vector<16x1xf32> to vector<16x16xf32>
    %144 = arith.mulf %139, %143 : vector<16x16xf32>
    %145 = vector.extract_strided_slice %100 {offsets = [0, 8], sizes = [16, 8], strides = [1, 1]} : vector<16x32xf32> to vector<16x8xf32>
    %146 = arith.truncf %144 : vector<16x16xf32> to vector<16x16xbf16>
    %147 = arith.truncf %145 : vector<16x8xf32> to vector<16x8xbf16>
    %cst_51 = arith.constant dense<0.000000e+00> : vector<16x8xf32>
    %148 = tpu.matmul %146, %147, %cst_51 {dimension_numbers = #tpu.dot_dimension_numbers<[1], [0], [0], [1], [0, 0, 1, 1], [], []>} : vector<16x16xbf16>, vector<16x8xbf16>, vector<16x8xf32> -> vector<16x8xf32>
    %149 = vector.extract_strided_slice %98 {offsets = [0, 16], sizes = [16, 8], strides = [1, 1]} : vector<16x32xf32> to vector<16x8xf32>
    %150 = vector.extract_strided_slice %99 {offsets = [0, 16], sizes = [16, 8], strides = [1, 1]} : vector<16x32xf32> to vector<16x8xf32>
    %151 = arith.truncf %149 : vector<16x8xf32> to vector<16x8xbf16>
    %152 = arith.truncf %150 : vector<16x8xf32> to vector<16x8xbf16>
    %cst_52 = arith.constant dense<0.000000e+00> : vector<16x16xf32>
    %153 = tpu.matmul %151, %152, %cst_52 {dimension_numbers = #tpu.dot_dimension_numbers<[1], [1], [0], [0], [0, 0, 1, 0], [], []>} : vector<16x8xbf16>, vector<16x8xbf16>, vector<16x16xf32> -> vector<16x16xf32>
    %cst_53 = arith.constant 0.353553385 : f32
    %154 = vector.broadcast %cst_53 : f32 to vector<16x16xf32>
    %155 = arith.mulf %153, %154 : vector<16x16xf32>
    %156 = arith.addf %155, %104 : vector<16x16xf32>
    %cst_54 = arith.constant dense<0xFF800000> : vector<16xf32>
    %157 = vector.multi_reduction <maximumf>, %156, %cst_54 [1] : vector<16x16xf32> to vector<16xf32>
    %158 = vector.shape_cast %157 : vector<16xf32> to vector<16x1xf32>
    %159 = vector.broadcast %158 : vector<16x1xf32> to vector<16x16xf32>
    %160 = arith.subf %156, %159 : vector<16x16xf32>
    %161 = math.exp %160 : vector<16x16xf32>
    %cst_55 = arith.constant dense<0.000000e+00> : vector<16xf32>
    %162 = vector.multi_reduction <add>, %161, %cst_55 [1] : vector<16x16xf32> to vector<16xf32>
    %163 = vector.shape_cast %162 : vector<16xf32> to vector<16x1xf32>
    %164 = tpu.reciprocal %163 {approx = true} : vector<16x1xf32> -> vector<16x1xf32>
    %165 = vector.broadcast %164 : vector<16x1xf32> to vector<16x16xf32>
    %166 = arith.mulf %161, %165 : vector<16x16xf32>
    %167 = vector.extract_strided_slice %100 {offsets = [0, 16], sizes = [16, 8], strides = [1, 1]} : vector<16x32xf32> to vector<16x8xf32>
    %168 = arith.truncf %166 : vector<16x16xf32> to vector<16x16xbf16>
    %169 = arith.truncf %167 : vector<16x8xf32> to vector<16x8xbf16>
    %cst_56 = arith.constant dense<0.000000e+00> : vector<16x8xf32>
    %170 = tpu.matmul %168, %169, %cst_56 {dimension_numbers = #tpu.dot_dimension_numbers<[1], [0], [0], [1], [0, 0, 1, 1], [], []>} : vector<16x16xbf16>, vector<16x8xbf16>, vector<16x8xf32> -> vector<16x8xf32>
    %171 = vector.extract_strided_slice %98 {offsets = [0, 24], sizes = [16, 8], strides = [1, 1]} : vector<16x32xf32> to vector<16x8xf32>
    %172 = vector.extract_strided_slice %99 {offsets = [0, 24], sizes = [16, 8], strides = [1, 1]} : vector<16x32xf32> to vector<16x8xf32>
    %173 = arith.truncf %171 : vector<16x8xf32> to vector<16x8xbf16>
    %174 = arith.truncf %172 : vector<16x8xf32> to vector<16x8xbf16>
    %cst_57 = arith.constant dense<0.000000e+00> : vector<16x16xf32>
    %175 = tpu.matmul %173, %174, %cst_57 {dimension_numbers = #tpu.dot_dimension_numbers<[1], [1], [0], [0], [0, 0, 1, 0], [], []>} : vector<16x8xbf16>, vector<16x8xbf16>, vector<16x16xf32> -> vector<16x16xf32>
    %cst_58 = arith.constant 0.353553385 : f32
    %176 = vector.broadcast %cst_58 : f32 to vector<16x16xf32>
    %177 = arith.mulf %175, %176 : vector<16x16xf32>
    %178 = arith.addf %177, %104 : vector<16x16xf32>
    %cst_59 = arith.constant dense<0xFF800000> : vector<16xf32>
    %179 = vector.multi_reduction <maximumf>, %178, %cst_59 [1] : vector<16x16xf32> to vector<16xf32>
    %180 = vector.shape_cast %179 : vector<16xf32> to vector<16x1xf32>
    %181 = vector.broadcast %180 : vector<16x1xf32> to vector<16x16xf32>
    %182 = arith.subf %178, %181 : vector<16x16xf32>
    %183 = math.exp %182 : vector<16x16xf32>
    %cst_60 = arith.constant dense<0.000000e+00> : vector<16xf32>
    %184 = vector.multi_reduction <add>, %183, %cst_60 [1] : vector<16x16xf32> to vector<16xf32>
    %185 = vector.shape_cast %184 : vector<16xf32> to vector<16x1xf32>
    %186 = tpu.reciprocal %185 {approx = true} : vector<16x1xf32> -> vector<16x1xf32>
    %187 = vector.broadcast %186 : vector<16x1xf32> to vector<16x16xf32>
    %188 = arith.mulf %183, %187 : vector<16x16xf32>
    %189 = vector.extract_strided_slice %100 {offsets = [0, 24], sizes = [16, 8], strides = [1, 1]} : vector<16x32xf32> to vector<16x8xf32>
    %190 = arith.truncf %188 : vector<16x16xf32> to vector<16x16xbf16>
    %191 = arith.truncf %189 : vector<16x8xf32> to vector<16x8xbf16>
    %cst_61 = arith.constant dense<0.000000e+00> : vector<16x8xf32>
    %192 = tpu.matmul %190, %191, %cst_61 {dimension_numbers = #tpu.dot_dimension_numbers<[1], [0], [0], [1], [0, 0, 1, 1], [], []>} : vector<16x16xbf16>, vector<16x8xbf16>, vector<16x8xf32> -> vector<16x8xf32>
    %193 = tpu.concatenate %126, %148, %170, %192 in 1 : vector<16x8xf32>, vector<16x8xf32>, vector<16x8xf32>, vector<16x8xf32> -> vector<16x32xf32>
    %194 = vector.extract_strided_slice %66 {offsets = [16, 0], sizes = [16, 32], strides = [1, 1]} : vector<32x32xf32> to vector<16x32xf32>
    %195 = vector.extract_strided_slice %71 {offsets = [16, 0], sizes = [16, 32], strides = [1, 1]} : vector<32x32xf32> to vector<16x32xf32>
    %196 = vector.extract_strided_slice %72 {offsets = [16, 0], sizes = [16, 32], strides = [1, 1]} : vector<32x32xf32> to vector<16x32xf32>
    %197 = vector.extract_strided_slice %4 {offsets = [1, 0, 0], sizes = [1, 1, 16], strides = [1, 1, 1]} : vector<2x1x16xf32> to vector<1x1x16xf32>
    %198 = vector.shape_cast %197 : vector<1x1x16xf32> to vector<1x16xf32>
    %199 = vector.broadcast %198 : vector<1x16xf32> to vector<16x16xf32>
    %200 = arith.addf %10, %199 : vector<16x16xf32>
    %201 = vector.extract_strided_slice %194 {offsets = [0, 0], sizes = [16, 8], strides = [1, 1]} : vector<16x32xf32> to vector<16x8xf32>
    %202 = vector.extract_strided_slice %195 {offsets = [0, 0], sizes = [16, 8], strides = [1, 1]} : vector<16x32xf32> to vector<16x8xf32>
    %203 = arith.truncf %201 : vector<16x8xf32> to vector<16x8xbf16>
    %204 = arith.truncf %202 : vector<16x8xf32> to vector<16x8xbf16>
    %cst_62 = arith.constant dense<0.000000e+00> : vector<16x16xf32>
    %205 = tpu.matmul %203, %204, %cst_62 {dimension_numbers = #tpu.dot_dimension_numbers<[1], [1], [0], [0], [0, 0, 1, 0], [], []>} : vector<16x8xbf16>, vector<16x8xbf16>, vector<16x16xf32> -> vector<16x16xf32>
    %cst_63 = arith.constant 0.353553385 : f32
    %206 = vector.broadcast %cst_63 : f32 to vector<16x16xf32>
    %207 = arith.mulf %205, %206 : vector<16x16xf32>
    %208 = arith.addf %207, %200 : vector<16x16xf32>
    %cst_64 = arith.constant dense<0xFF800000> : vector<16xf32>
    %209 = vector.multi_reduction <maximumf>, %208, %cst_64 [1] : vector<16x16xf32> to vector<16xf32>
    %210 = vector.shape_cast %209 : vector<16xf32> to vector<16x1xf32>
    %211 = vector.broadcast %210 : vector<16x1xf32> to vector<16x16xf32>
    %212 = arith.subf %208, %211 : vector<16x16xf32>
    %213 = math.exp %212 : vector<16x16xf32>
    %cst_65 = arith.constant dense<0.000000e+00> : vector<16xf32>
    %214 = vector.multi_reduction <add>, %213, %cst_65 [1] : vector<16x16xf32> to vector<16xf32>
    %215 = vector.shape_cast %214 : vector<16xf32> to vector<16x1xf32>
    %216 = tpu.reciprocal %215 {approx = true} : vector<16x1xf32> -> vector<16x1xf32>
    %217 = vector.broadcast %216 : vector<16x1xf32> to vector<16x16xf32>
    %218 = arith.mulf %213, %217 : vector<16x16xf32>
    %219 = vector.extract_strided_slice %196 {offsets = [0, 0], sizes = [16, 8], strides = [1, 1]} : vector<16x32xf32> to vector<16x8xf32>
    %220 = arith.truncf %218 : vector<16x16xf32> to vector<16x16xbf16>
    %221 = arith.truncf %219 : vector<16x8xf32> to vector<16x8xbf16>
    %cst_66 = arith.constant dense<0.000000e+00> : vector<16x8xf32>
    %222 = tpu.matmul %220, %221, %cst_66 {dimension_numbers = #tpu.dot_dimension_numbers<[1], [0], [0], [1], [0, 0, 1, 1], [], []>} : vector<16x16xbf16>, vector<16x8xbf16>, vector<16x8xf32> -> vector<16x8xf32>
    %223 = vector.extract_strided_slice %194 {offsets = [0, 8], sizes = [16, 8], strides = [1, 1]} : vector<16x32xf32> to vector<16x8xf32>
    %224 = vector.extract_strided_slice %195 {offsets = [0, 8], sizes = [16, 8], strides = [1, 1]} : vector<16x32xf32> to vector<16x8xf32>
    %225 = arith.truncf %223 : vector<16x8xf32> to vector<16x8xbf16>
    %226 = arith.truncf %224 : vector<16x8xf32> to vector<16x8xbf16>
    %cst_67 = arith.constant dense<0.000000e+00> : vector<16x16xf32>
    %227 = tpu.matmul %225, %226, %cst_67 {dimension_numbers = #tpu.dot_dimension_numbers<[1], [1], [0], [0], [0, 0, 1, 0], [], []>} : vector<16x8xbf16>, vector<16x8xbf16>, vector<16x16xf32> -> vector<16x16xf32>
    %cst_68 = arith.constant 0.353553385 : f32
    %228 = vector.broadcast %cst_68 : f32 to vector<16x16xf32>
    %229 = arith.mulf %227, %228 : vector<16x16xf32>
    %230 = arith.addf %229, %200 : vector<16x16xf32>
    %cst_69 = arith.constant dense<0xFF800000> : vector<16xf32>
    %231 = vector.multi_reduction <maximumf>, %230, %cst_69 [1] : vector<16x16xf32> to vector<16xf32>
    %232 = vector.shape_cast %231 : vector<16xf32> to vector<16x1xf32>
    %233 = vector.broadcast %232 : vector<16x1xf32> to vector<16x16xf32>
    %234 = arith.subf %230, %233 : vector<16x16xf32>
    %235 = math.exp %234 : vector<16x16xf32>
    %cst_70 = arith.constant dense<0.000000e+00> : vector<16xf32>
    %236 = vector.multi_reduction <add>, %235, %cst_70 [1] : vector<16x16xf32> to vector<16xf32>
    %237 = vector.shape_cast %236 : vector<16xf32> to vector<16x1xf32>
    %238 = tpu.reciprocal %237 {approx = true} : vector<16x1xf32> -> vector<16x1xf32>
    %239 = vector.broadcast %238 : vector<16x1xf32> to vector<16x16xf32>
    %240 = arith.mulf %235, %239 : vector<16x16xf32>
    %241 = vector.extract_strided_slice %196 {offsets = [0, 8], sizes = [16, 8], strides = [1, 1]} : vector<16x32xf32> to vector<16x8xf32>
    %242 = arith.truncf %240 : vector<16x16xf32> to vector<16x16xbf16>
    %243 = arith.truncf %241 : vector<16x8xf32> to vector<16x8xbf16>
    %cst_71 = arith.constant dense<0.000000e+00> : vector<16x8xf32>
    %244 = tpu.matmul %242, %243, %cst_71 {dimension_numbers = #tpu.dot_dimension_numbers<[1], [0], [0], [1], [0, 0, 1, 1], [], []>} : vector<16x16xbf16>, vector<16x8xbf16>, vector<16x8xf32> -> vector<16x8xf32>
    %245 = vector.extract_strided_slice %194 {offsets = [0, 16], sizes = [16, 8], strides = [1, 1]} : vector<16x32xf32> to vector<16x8xf32>
    %246 = vector.extract_strided_slice %195 {offsets = [0, 16], sizes = [16, 8], strides = [1, 1]} : vector<16x32xf32> to vector<16x8xf32>
    %247 = arith.truncf %245 : vector<16x8xf32> to vector<16x8xbf16>
    %248 = arith.truncf %246 : vector<16x8xf32> to vector<16x8xbf16>
    %cst_72 = arith.constant dense<0.000000e+00> : vector<16x16xf32>
    %249 = tpu.matmul %247, %248, %cst_72 {dimension_numbers = #tpu.dot_dimension_numbers<[1], [1], [0], [0], [0, 0, 1, 0], [], []>} : vector<16x8xbf16>, vector<16x8xbf16>, vector<16x16xf32> -> vector<16x16xf32>
    %cst_73 = arith.constant 0.353553385 : f32
    %250 = vector.broadcast %cst_73 : f32 to vector<16x16xf32>
    %251 = arith.mulf %249, %250 : vector<16x16xf32>
    %252 = arith.addf %251, %200 : vector<16x16xf32>
    %cst_74 = arith.constant dense<0xFF800000> : vector<16xf32>
    %253 = vector.multi_reduction <maximumf>, %252, %cst_74 [1] : vector<16x16xf32> to vector<16xf32>
    %254 = vector.shape_cast %253 : vector<16xf32> to vector<16x1xf32>
    %255 = vector.broadcast %254 : vector<16x1xf32> to vector<16x16xf32>
    %256 = arith.subf %252, %255 : vector<16x16xf32>
    %257 = math.exp %256 : vector<16x16xf32>
    %cst_75 = arith.constant dense<0.000000e+00> : vector<16xf32>
    %258 = vector.multi_reduction <add>, %257, %cst_75 [1] : vector<16x16xf32> to vector<16xf32>
    %259 = vector.shape_cast %258 : vector<16xf32> to vector<16x1xf32>
    %260 = tpu.reciprocal %259 {approx = true} : vector<16x1xf32> -> vector<16x1xf32>
    %261 = vector.broadcast %260 : vector<16x1xf32> to vector<16x16xf32>
    %262 = arith.mulf %257, %261 : vector<16x16xf32>
    %263 = vector.extract_strided_slice %196 {offsets = [0, 16], sizes = [16, 8], strides = [1, 1]} : vector<16x32xf32> to vector<16x8xf32>
    %264 = arith.truncf %262 : vector<16x16xf32> to vector<16x16xbf16>
    %265 = arith.truncf %263 : vector<16x8xf32> to vector<16x8xbf16>
    %cst_76 = arith.constant dense<0.000000e+00> : vector<16x8xf32>
    %266 = tpu.matmul %264, %265, %cst_76 {dimension_numbers = #tpu.dot_dimension_numbers<[1], [0], [0], [1], [0, 0, 1, 1], [], []>} : vector<16x16xbf16>, vector<16x8xbf16>, vector<16x8xf32> -> vector<16x8xf32>
    %267 = vector.extract_strided_slice %194 {offsets = [0, 24], sizes = [16, 8], strides = [1, 1]} : vector<16x32xf32> to vector<16x8xf32>
    %268 = vector.extract_strided_slice %195 {offsets = [0, 24], sizes = [16, 8], strides = [1, 1]} : vector<16x32xf32> to vector<16x8xf32>
    %269 = arith.truncf %267 : vector<16x8xf32> to vector<16x8xbf16>
    %270 = arith.truncf %268 : vector<16x8xf32> to vector<16x8xbf16>
    %cst_77 = arith.constant dense<0.000000e+00> : vector<16x16xf32>
    %271 = tpu.matmul %269, %270, %cst_77 {dimension_numbers = #tpu.dot_dimension_numbers<[1], [1], [0], [0], [0, 0, 1, 0], [], []>} : vector<16x8xbf16>, vector<16x8xbf16>, vector<16x16xf32> -> vector<16x16xf32>
    %cst_78 = arith.constant 0.353553385 : f32
    %272 = vector.broadcast %cst_78 : f32 to vector<16x16xf32>
    %273 = arith.mulf %271, %272 : vector<16x16xf32>
    %274 = arith.addf %273, %200 : vector<16x16xf32>
    %cst_79 = arith.constant dense<0xFF800000> : vector<16xf32>
    %275 = vector.multi_reduction <maximumf>, %274, %cst_79 [1] : vector<16x16xf32> to vector<16xf32>
    %276 = vector.shape_cast %275 : vector<16xf32> to vector<16x1xf32>
    %277 = vector.broadcast %276 : vector<16x1xf32> to vector<16x16xf32>
    %278 = arith.subf %274, %277 : vector<16x16xf32>
    %279 = math.exp %278 : vector<16x16xf32>
    %cst_80 = arith.constant dense<0.000000e+00> : vector<16xf32>
    %280 = vector.multi_reduction <add>, %279, %cst_80 [1] : vector<16x16xf32> to vector<16xf32>
    %281 = vector.shape_cast %280 : vector<16xf32> to vector<16x1xf32>
    %282 = tpu.reciprocal %281 {approx = true} : vector<16x1xf32> -> vector<16x1xf32>
    %283 = vector.broadcast %282 : vector<16x1xf32> to vector<16x16xf32>
    %284 = arith.mulf %279, %283 : vector<16x16xf32>
    %285 = vector.extract_strided_slice %196 {offsets = [0, 24], sizes = [16, 8], strides = [1, 1]} : vector<16x32xf32> to vector<16x8xf32>
    %286 = arith.truncf %284 : vector<16x16xf32> to vector<16x16xbf16>
    %287 = arith.truncf %285 : vector<16x8xf32> to vector<16x8xbf16>
    %cst_81 = arith.constant dense<0.000000e+00> : vector<16x8xf32>
    %288 = tpu.matmul %286, %287, %cst_81 {dimension_numbers = #tpu.dot_dimension_numbers<[1], [0], [0], [1], [0, 0, 1, 1], [], []>} : vector<16x16xbf16>, vector<16x8xbf16>, vector<16x8xf32> -> vector<16x8xf32>
    %289 = tpu.concatenate %222, %244, %266, %288 in 1 : vector<16x8xf32>, vector<16x8xf32>, vector<16x8xf32>, vector<16x8xf32> -> vector<16x32xf32>
    %290 = tpu.concatenate %193, %289 in 0 : vector<16x32xf32>, vector<16x32xf32> -> vector<32x32xf32>
    %291 = vector.extract_strided_slice %57 {offsets = [0, 288], sizes = [32, 32], strides = [1, 1]} : vector<32x320xf32> to vector<32x32xf32>
    %292 = arith.truncf %290 : vector<32x32xf32> to vector<32x32xbf16>
    %293 = arith.truncf %291 : vector<32x32xf32> to vector<32x32xbf16>
    %cst_82 = arith.constant dense<0.000000e+00> : vector<32x32xf32>
    %294 = tpu.matmul %292, %293, %cst_82 {dimension_numbers = #tpu.dot_dimension_numbers<[1], [0], [0], [1], [0, 0, 1, 1], [], []>} : vector<32x32xbf16>, vector<32x32xbf16>, vector<32x32xf32> -> vector<32x32xf32>
    %295 = arith.addf %294, %97 : vector<32x32xf32>
    %296 = arith.addf %295, %33 : vector<32x32xf32>
    %c4 = arith.constant 4 : index
    %c0_83 = arith.constant 0 : index
    %297 = vector.load %arg4[%c4, %c0_83] : memref<8x32xf32, #tpu.memory_space<vmem>>, vector<1x32xf32>
    %c5 = arith.constant 5 : index
    %c0_84 = arith.constant 0 : index
    %298 = vector.load %arg4[%c5, %c0_84] : memref<8x32xf32, #tpu.memory_space<vmem>>, vector<1x32xf32>
    %cst_85 = arith.constant dense<0.000000e+00> : vector<32xf32>
    %299 = vector.multi_reduction <add>, %296, %cst_85 [1] : vector<32x32xf32> to vector<32xf32>
    %300 = vector.shape_cast %299 : vector<32xf32> to vector<32x1xf32>
    %cst_86 = arith.constant 3.200000e+01 : f32
    %301 = vector.broadcast %cst_86 : f32 to vector<32x1xf32>
    %302 = arith.divf %300, %301 : vector<32x1xf32>
    %303 = vector.broadcast %302 : vector<32x1xf32> to vector<32x32xf32>
    %304 = arith.subf %296, %303 : vector<32x32xf32>
    %305 = arith.mulf %304, %304 : vector<32x32xf32>
    %cst_87 = arith.constant dense<0.000000e+00> : vector<32xf32>
    %306 = vector.multi_reduction <add>, %305, %cst_87 [1] : vector<32x32xf32> to vector<32xf32>
    %307 = vector.shape_cast %306 : vector<32xf32> to vector<32x1xf32>
    %cst_88 = arith.constant 3.200000e+01 : f32
    %308 = vector.broadcast %cst_88 : f32 to vector<32x1xf32>
    %309 = arith.divf %307, %308 : vector<32x1xf32>
    %cst_89 = arith.constant 9.99999974E-6 : f32
    %310 = vector.broadcast %cst_89 : f32 to vector<32x1xf32>
    %311 = arith.addf %309, %310 : vector<32x1xf32>
    %312 = math.rsqrt %311 : vector<32x1xf32>
    %313 = vector.broadcast %312 : vector<32x1xf32> to vector<32x32xf32>
    %314 = arith.mulf %304, %313 : vector<32x32xf32>
    %315 = vector.broadcast %297 : vector<1x32xf32> to vector<32x32xf32>
    %316 = arith.mulf %314, %315 : vector<32x32xf32>
    %317 = vector.broadcast %298 : vector<1x32xf32> to vector<32x32xf32>
    %318 = arith.addf %316, %317 : vector<32x32xf32>
    %c1_90 = arith.constant 1 : index
    %c0_91 = arith.constant 0 : index
    %c0_92 = arith.constant 0 : index
    %319 = vector.load %arg5[%c1_90, %c0_91, %c0_92] : memref<2x32x320xf32, #tpu.memory_space<vmem>>, vector<1x32x320xf32>
    %320 = vector.shape_cast %319 : vector<1x32x320xf32> to vector<32x320xf32>
    %321 = vector.extract_strided_slice %320 {offsets = [0, 0], sizes = [32, 288], strides = [1, 1]} : vector<32x320xf32> to vector<32x288xf32>
    %322 = arith.truncf %318 : vector<32x32xf32> to vector<32x32xbf16>
    %323 = arith.truncf %321 : vector<32x288xf32> to vector<32x288xbf16>
    %cst_93 = arith.constant dense<0.000000e+00> : vector<32x288xf32>
    %324 = tpu.matmul %322, %323, %cst_93 {dimension_numbers = #tpu.dot_dimension_numbers<[1], [0], [0], [1], [0, 0, 1, 1], [], []>} : vector<32x32xbf16>, vector<32x288xbf16>, vector<32x288xf32> -> vector<32x288xf32>
    %325 = vector.extract_strided_slice %324 {offsets = [0, 0], sizes = [32, 32], strides = [1, 1]} : vector<32x288xf32> to vector<32x32xf32>
    %326 = arith.mulf %325, %3 : vector<32x32xf32>
    %327 = vector.extract_strided_slice %324 {offsets = [0, 96], sizes = [32, 32], strides = [1, 1]} : vector<32x288xf32> to vector<32x32xf32>
    %328 = arith.mulf %327, %1 : vector<32x32xf32>
    %329 = arith.addf %326, %328 : vector<32x32xf32>
    %330 = vector.extract_strided_slice %324 {offsets = [0, 32], sizes = [32, 32], strides = [1, 1]} : vector<32x288xf32> to vector<32x32xf32>
    %331 = arith.mulf %330, %3 : vector<32x32xf32>
    %332 = vector.extract_strided_slice %324 {offsets = [0, 128], sizes = [32, 32], strides = [1, 1]} : vector<32x288xf32> to vector<32x32xf32>
    %333 = arith.mulf %332, %1 : vector<32x32xf32>
    %334 = arith.addf %331, %333 : vector<32x32xf32>
    %335 = vector.extract_strided_slice %324 {offsets = [0, 64], sizes = [32, 32], strides = [1, 1]} : vector<32x288xf32> to vector<32x32xf32>
    %336 = vector.extract_strided_slice %324 {offsets = [0, 160], sizes = [32, 128], strides = [1, 1]} : vector<32x288xf32> to vector<32x128xf32>
    %c1_94 = arith.constant 1 : index
    %c0_95 = arith.constant 0 : index
    %337 = vector.load %arg7[%c1_94, %c0_95] : memref<5x128xf32, #tpu.memory_space<vmem>>, vector<1x128xf32>
    %338 = vector.broadcast %337 : vector<1x128xf32> to vector<32x128xf32>
    %339 = arith.addf %336, %338 : vector<32x128xf32>
    %cst_96 = arith.constant 5.000000e-01 : f32
    %340 = vector.broadcast %cst_96 : f32 to vector<32x128xf32>
    %341 = arith.mulf %340, %339 : vector<32x128xf32>
    %cst_97 = arith.constant 4.471500e-02 : f32
    %342 = vector.broadcast %cst_97 : f32 to vector<32x128xf32>
    %343 = arith.mulf %342, %339 : vector<32x128xf32>
    %344 = arith.mulf %343, %339 : vector<32x128xf32>
    %345 = arith.mulf %344, %339 : vector<32x128xf32>
    %346 = arith.addf %339, %345 : vector<32x128xf32>
    %cst_98 = arith.constant 0.797884583 : f32
    %347 = vector.broadcast %cst_98 : f32 to vector<32x128xf32>
    %348 = arith.mulf %347, %346 : vector<32x128xf32>
    %349 = math.tanh %348 : vector<32x128xf32>
    %cst_99 = arith.constant 1.000000e+00 : f32
    %350 = vector.broadcast %cst_99 : f32 to vector<32x128xf32>
    %351 = arith.addf %350, %349 : vector<32x128xf32>
    %352 = arith.mulf %341, %351 : vector<32x128xf32>
    %c1_100 = arith.constant 1 : index
    %c0_101 = arith.constant 0 : index
    %c0_102 = arith.constant 0 : index
    %353 = vector.load %arg6[%c1_100, %c0_101, %c0_102] : memref<2x128x32xf32, #tpu.memory_space<vmem>>, vector<1x128x32xf32>
    %354 = vector.shape_cast %353 : vector<1x128x32xf32> to vector<128x32xf32>
    %355 = arith.truncf %352 : vector<32x128xf32> to vector<32x128xbf16>
    %356 = arith.truncf %354 : vector<128x32xf32> to vector<128x32xbf16>
    %cst_103 = arith.constant dense<0.000000e+00> : vector<32x32xf32>
    %357 = tpu.matmul %355, %356, %cst_103 {dimension_numbers = #tpu.dot_dimension_numbers<[1], [0], [0], [1], [0, 0, 1, 1], [], []>} : vector<32x128xbf16>, vector<128x32xbf16>, vector<32x32xf32> -> vector<32x32xf32>
    %c3_104 = arith.constant 3 : index
    %c0_105 = arith.constant 0 : index
    %358 = vector.load %arg7[%c3_104, %c0_105] : memref<5x128xf32, #tpu.memory_space<vmem>>, vector<1x32xf32>
    %359 = vector.broadcast %358 : vector<1x32xf32> to vector<32x32xf32>
    %360 = arith.addf %357, %359 : vector<32x32xf32>
    %361 = vector.extract_strided_slice %329 {offsets = [0, 0], sizes = [16, 32], strides = [1, 1]} : vector<32x32xf32> to vector<16x32xf32>
    %362 = vector.extract_strided_slice %334 {offsets = [0, 0], sizes = [16, 32], strides = [1, 1]} : vector<32x32xf32> to vector<16x32xf32>
    %363 = vector.extract_strided_slice %335 {offsets = [0, 0], sizes = [16, 32], strides = [1, 1]} : vector<32x32xf32> to vector<16x32xf32>
    %364 = vector.extract_strided_slice %4 {offsets = [0, 0, 0], sizes = [1, 1, 16], strides = [1, 1, 1]} : vector<2x1x16xf32> to vector<1x1x16xf32>
    %365 = vector.shape_cast %364 : vector<1x1x16xf32> to vector<1x16xf32>
    %366 = vector.broadcast %365 : vector<1x16xf32> to vector<16x16xf32>
    %367 = arith.addf %10, %366 : vector<16x16xf32>
    %368 = vector.extract_strided_slice %361 {offsets = [0, 0], sizes = [16, 8], strides = [1, 1]} : vector<16x32xf32> to vector<16x8xf32>
    %369 = vector.extract_strided_slice %362 {offsets = [0, 0], sizes = [16, 8], strides = [1, 1]} : vector<16x32xf32> to vector<16x8xf32>
    %370 = arith.truncf %368 : vector<16x8xf32> to vector<16x8xbf16>
    %371 = arith.truncf %369 : vector<16x8xf32> to vector<16x8xbf16>
    %cst_106 = arith.constant dense<0.000000e+00> : vector<16x16xf32>
    %372 = tpu.matmul %370, %371, %cst_106 {dimension_numbers = #tpu.dot_dimension_numbers<[1], [1], [0], [0], [0, 0, 1, 0], [], []>} : vector<16x8xbf16>, vector<16x8xbf16>, vector<16x16xf32> -> vector<16x16xf32>
    %cst_107 = arith.constant 0.353553385 : f32
    %373 = vector.broadcast %cst_107 : f32 to vector<16x16xf32>
    %374 = arith.mulf %372, %373 : vector<16x16xf32>
    %375 = arith.addf %374, %367 : vector<16x16xf32>
    %cst_108 = arith.constant dense<0xFF800000> : vector<16xf32>
    %376 = vector.multi_reduction <maximumf>, %375, %cst_108 [1] : vector<16x16xf32> to vector<16xf32>
    %377 = vector.shape_cast %376 : vector<16xf32> to vector<16x1xf32>
    %378 = vector.broadcast %377 : vector<16x1xf32> to vector<16x16xf32>
    %379 = arith.subf %375, %378 : vector<16x16xf32>
    %380 = math.exp %379 : vector<16x16xf32>
    %cst_109 = arith.constant dense<0.000000e+00> : vector<16xf32>
    %381 = vector.multi_reduction <add>, %380, %cst_109 [1] : vector<16x16xf32> to vector<16xf32>
    %382 = vector.shape_cast %381 : vector<16xf32> to vector<16x1xf32>
    %383 = tpu.reciprocal %382 {approx = true} : vector<16x1xf32> -> vector<16x1xf32>
    %384 = vector.broadcast %383 : vector<16x1xf32> to vector<16x16xf32>
    %385 = arith.mulf %380, %384 : vector<16x16xf32>
    %386 = vector.extract_strided_slice %363 {offsets = [0, 0], sizes = [16, 8], strides = [1, 1]} : vector<16x32xf32> to vector<16x8xf32>
    %387 = arith.truncf %385 : vector<16x16xf32> to vector<16x16xbf16>
    %388 = arith.truncf %386 : vector<16x8xf32> to vector<16x8xbf16>
    %cst_110 = arith.constant dense<0.000000e+00> : vector<16x8xf32>
    %389 = tpu.matmul %387, %388, %cst_110 {dimension_numbers = #tpu.dot_dimension_numbers<[1], [0], [0], [1], [0, 0, 1, 1], [], []>} : vector<16x16xbf16>, vector<16x8xbf16>, vector<16x8xf32> -> vector<16x8xf32>
    %390 = vector.extract_strided_slice %361 {offsets = [0, 8], sizes = [16, 8], strides = [1, 1]} : vector<16x32xf32> to vector<16x8xf32>
    %391 = vector.extract_strided_slice %362 {offsets = [0, 8], sizes = [16, 8], strides = [1, 1]} : vector<16x32xf32> to vector<16x8xf32>
    %392 = arith.truncf %390 : vector<16x8xf32> to vector<16x8xbf16>
    %393 = arith.truncf %391 : vector<16x8xf32> to vector<16x8xbf16>
    %cst_111 = arith.constant dense<0.000000e+00> : vector<16x16xf32>
    %394 = tpu.matmul %392, %393, %cst_111 {dimension_numbers = #tpu.dot_dimension_numbers<[1], [1], [0], [0], [0, 0, 1, 0], [], []>} : vector<16x8xbf16>, vector<16x8xbf16>, vector<16x16xf32> -> vector<16x16xf32>
    %cst_112 = arith.constant 0.353553385 : f32
    %395 = vector.broadcast %cst_112 : f32 to vector<16x16xf32>
    %396 = arith.mulf %394, %395 : vector<16x16xf32>
    %397 = arith.addf %396, %367 : vector<16x16xf32>
    %cst_113 = arith.constant dense<0xFF800000> : vector<16xf32>
    %398 = vector.multi_reduction <maximumf>, %397, %cst_113 [1] : vector<16x16xf32> to vector<16xf32>
    %399 = vector.shape_cast %398 : vector<16xf32> to vector<16x1xf32>
    %400 = vector.broadcast %399 : vector<16x1xf32> to vector<16x16xf32>
    %401 = arith.subf %397, %400 : vector<16x16xf32>
    %402 = math.exp %401 : vector<16x16xf32>
    %cst_114 = arith.constant dense<0.000000e+00> : vector<16xf32>
    %403 = vector.multi_reduction <add>, %402, %cst_114 [1] : vector<16x16xf32> to vector<16xf32>
    %404 = vector.shape_cast %403 : vector<16xf32> to vector<16x1xf32>
    %405 = tpu.reciprocal %404 {approx = true} : vector<16x1xf32> -> vector<16x1xf32>
    %406 = vector.broadcast %405 : vector<16x1xf32> to vector<16x16xf32>
    %407 = arith.mulf %402, %406 : vector<16x16xf32>
    %408 = vector.extract_strided_slice %363 {offsets = [0, 8], sizes = [16, 8], strides = [1, 1]} : vector<16x32xf32> to vector<16x8xf32>
    %409 = arith.truncf %407 : vector<16x16xf32> to vector<16x16xbf16>
    %410 = arith.truncf %408 : vector<16x8xf32> to vector<16x8xbf16>
    %cst_115 = arith.constant dense<0.000000e+00> : vector<16x8xf32>
    %411 = tpu.matmul %409, %410, %cst_115 {dimension_numbers = #tpu.dot_dimension_numbers<[1], [0], [0], [1], [0, 0, 1, 1], [], []>} : vector<16x16xbf16>, vector<16x8xbf16>, vector<16x8xf32> -> vector<16x8xf32>
    %412 = vector.extract_strided_slice %361 {offsets = [0, 16], sizes = [16, 8], strides = [1, 1]} : vector<16x32xf32> to vector<16x8xf32>
    %413 = vector.extract_strided_slice %362 {offsets = [0, 16], sizes = [16, 8], strides = [1, 1]} : vector<16x32xf32> to vector<16x8xf32>
    %414 = arith.truncf %412 : vector<16x8xf32> to vector<16x8xbf16>
    %415 = arith.truncf %413 : vector<16x8xf32> to vector<16x8xbf16>
    %cst_116 = arith.constant dense<0.000000e+00> : vector<16x16xf32>
    %416 = tpu.matmul %414, %415, %cst_116 {dimension_numbers = #tpu.dot_dimension_numbers<[1], [1], [0], [0], [0, 0, 1, 0], [], []>} : vector<16x8xbf16>, vector<16x8xbf16>, vector<16x16xf32> -> vector<16x16xf32>
    %cst_117 = arith.constant 0.353553385 : f32
    %417 = vector.broadcast %cst_117 : f32 to vector<16x16xf32>
    %418 = arith.mulf %416, %417 : vector<16x16xf32>
    %419 = arith.addf %418, %367 : vector<16x16xf32>
    %cst_118 = arith.constant dense<0xFF800000> : vector<16xf32>
    %420 = vector.multi_reduction <maximumf>, %419, %cst_118 [1] : vector<16x16xf32> to vector<16xf32>
    %421 = vector.shape_cast %420 : vector<16xf32> to vector<16x1xf32>
    %422 = vector.broadcast %421 : vector<16x1xf32> to vector<16x16xf32>
    %423 = arith.subf %419, %422 : vector<16x16xf32>
    %424 = math.exp %423 : vector<16x16xf32>
    %cst_119 = arith.constant dense<0.000000e+00> : vector<16xf32>
    %425 = vector.multi_reduction <add>, %424, %cst_119 [1] : vector<16x16xf32> to vector<16xf32>
    %426 = vector.shape_cast %425 : vector<16xf32> to vector<16x1xf32>
    %427 = tpu.reciprocal %426 {approx = true} : vector<16x1xf32> -> vector<16x1xf32>
    %428 = vector.broadcast %427 : vector<16x1xf32> to vector<16x16xf32>
    %429 = arith.mulf %424, %428 : vector<16x16xf32>
    %430 = vector.extract_strided_slice %363 {offsets = [0, 16], sizes = [16, 8], strides = [1, 1]} : vector<16x32xf32> to vector<16x8xf32>
    %431 = arith.truncf %429 : vector<16x16xf32> to vector<16x16xbf16>
    %432 = arith.truncf %430 : vector<16x8xf32> to vector<16x8xbf16>
    %cst_120 = arith.constant dense<0.000000e+00> : vector<16x8xf32>
    %433 = tpu.matmul %431, %432, %cst_120 {dimension_numbers = #tpu.dot_dimension_numbers<[1], [0], [0], [1], [0, 0, 1, 1], [], []>} : vector<16x16xbf16>, vector<16x8xbf16>, vector<16x8xf32> -> vector<16x8xf32>
    %434 = vector.extract_strided_slice %361 {offsets = [0, 24], sizes = [16, 8], strides = [1, 1]} : vector<16x32xf32> to vector<16x8xf32>
    %435 = vector.extract_strided_slice %362 {offsets = [0, 24], sizes = [16, 8], strides = [1, 1]} : vector<16x32xf32> to vector<16x8xf32>
    %436 = arith.truncf %434 : vector<16x8xf32> to vector<16x8xbf16>
    %437 = arith.truncf %435 : vector<16x8xf32> to vector<16x8xbf16>
    %cst_121 = arith.constant dense<0.000000e+00> : vector<16x16xf32>
    %438 = tpu.matmul %436, %437, %cst_121 {dimension_numbers = #tpu.dot_dimension_numbers<[1], [1], [0], [0], [0, 0, 1, 0], [], []>} : vector<16x8xbf16>, vector<16x8xbf16>, vector<16x16xf32> -> vector<16x16xf32>
    %cst_122 = arith.constant 0.353553385 : f32
    %439 = vector.broadcast %cst_122 : f32 to vector<16x16xf32>
    %440 = arith.mulf %438, %439 : vector<16x16xf32>
    %441 = arith.addf %440, %367 : vector<16x16xf32>
    %cst_123 = arith.constant dense<0xFF800000> : vector<16xf32>
    %442 = vector.multi_reduction <maximumf>, %441, %cst_123 [1] : vector<16x16xf32> to vector<16xf32>
    %443 = vector.shape_cast %442 : vector<16xf32> to vector<16x1xf32>
    %444 = vector.broadcast %443 : vector<16x1xf32> to vector<16x16xf32>
    %445 = arith.subf %441, %444 : vector<16x16xf32>
    %446 = math.exp %445 : vector<16x16xf32>
    %cst_124 = arith.constant dense<0.000000e+00> : vector<16xf32>
    %447 = vector.multi_reduction <add>, %446, %cst_124 [1] : vector<16x16xf32> to vector<16xf32>
    %448 = vector.shape_cast %447 : vector<16xf32> to vector<16x1xf32>
    %449 = tpu.reciprocal %448 {approx = true} : vector<16x1xf32> -> vector<16x1xf32>
    %450 = vector.broadcast %449 : vector<16x1xf32> to vector<16x16xf32>
    %451 = arith.mulf %446, %450 : vector<16x16xf32>
    %452 = vector.extract_strided_slice %363 {offsets = [0, 24], sizes = [16, 8], strides = [1, 1]} : vector<16x32xf32> to vector<16x8xf32>
    %453 = arith.truncf %451 : vector<16x16xf32> to vector<16x16xbf16>
    %454 = arith.truncf %452 : vector<16x8xf32> to vector<16x8xbf16>
    %cst_125 = arith.constant dense<0.000000e+00> : vector<16x8xf32>
    %455 = tpu.matmul %453, %454, %cst_125 {dimension_numbers = #tpu.dot_dimension_numbers<[1], [0], [0], [1], [0, 0, 1, 1], [], []>} : vector<16x16xbf16>, vector<16x8xbf16>, vector<16x8xf32> -> vector<16x8xf32>
    %456 = tpu.concatenate %389, %411, %433, %455 in 1 : vector<16x8xf32>, vector<16x8xf32>, vector<16x8xf32>, vector<16x8xf32> -> vector<16x32xf32>
    %457 = vector.extract_strided_slice %329 {offsets = [16, 0], sizes = [16, 32], strides = [1, 1]} : vector<32x32xf32> to vector<16x32xf32>
    %458 = vector.extract_strided_slice %334 {offsets = [16, 0], sizes = [16, 32], strides = [1, 1]} : vector<32x32xf32> to vector<16x32xf32>
    %459 = vector.extract_strided_slice %335 {offsets = [16, 0], sizes = [16, 32], strides = [1, 1]} : vector<32x32xf32> to vector<16x32xf32>
    %460 = vector.extract_strided_slice %4 {offsets = [1, 0, 0], sizes = [1, 1, 16], strides = [1, 1, 1]} : vector<2x1x16xf32> to vector<1x1x16xf32>
    %461 = vector.shape_cast %460 : vector<1x1x16xf32> to vector<1x16xf32>
    %462 = vector.broadcast %461 : vector<1x16xf32> to vector<16x16xf32>
    %463 = arith.addf %10, %462 : vector<16x16xf32>
    %464 = vector.extract_strided_slice %457 {offsets = [0, 0], sizes = [16, 8], strides = [1, 1]} : vector<16x32xf32> to vector<16x8xf32>
    %465 = vector.extract_strided_slice %458 {offsets = [0, 0], sizes = [16, 8], strides = [1, 1]} : vector<16x32xf32> to vector<16x8xf32>
    %466 = arith.truncf %464 : vector<16x8xf32> to vector<16x8xbf16>
    %467 = arith.truncf %465 : vector<16x8xf32> to vector<16x8xbf16>
    %cst_126 = arith.constant dense<0.000000e+00> : vector<16x16xf32>
    %468 = tpu.matmul %466, %467, %cst_126 {dimension_numbers = #tpu.dot_dimension_numbers<[1], [1], [0], [0], [0, 0, 1, 0], [], []>} : vector<16x8xbf16>, vector<16x8xbf16>, vector<16x16xf32> -> vector<16x16xf32>
    %cst_127 = arith.constant 0.353553385 : f32
    %469 = vector.broadcast %cst_127 : f32 to vector<16x16xf32>
    %470 = arith.mulf %468, %469 : vector<16x16xf32>
    %471 = arith.addf %470, %463 : vector<16x16xf32>
    %cst_128 = arith.constant dense<0xFF800000> : vector<16xf32>
    %472 = vector.multi_reduction <maximumf>, %471, %cst_128 [1] : vector<16x16xf32> to vector<16xf32>
    %473 = vector.shape_cast %472 : vector<16xf32> to vector<16x1xf32>
    %474 = vector.broadcast %473 : vector<16x1xf32> to vector<16x16xf32>
    %475 = arith.subf %471, %474 : vector<16x16xf32>
    %476 = math.exp %475 : vector<16x16xf32>
    %cst_129 = arith.constant dense<0.000000e+00> : vector<16xf32>
    %477 = vector.multi_reduction <add>, %476, %cst_129 [1] : vector<16x16xf32> to vector<16xf32>
    %478 = vector.shape_cast %477 : vector<16xf32> to vector<16x1xf32>
    %479 = tpu.reciprocal %478 {approx = true} : vector<16x1xf32> -> vector<16x1xf32>
    %480 = vector.broadcast %479 : vector<16x1xf32> to vector<16x16xf32>
    %481 = arith.mulf %476, %480 : vector<16x16xf32>
    %482 = vector.extract_strided_slice %459 {offsets = [0, 0], sizes = [16, 8], strides = [1, 1]} : vector<16x32xf32> to vector<16x8xf32>
    %483 = arith.truncf %481 : vector<16x16xf32> to vector<16x16xbf16>
    %484 = arith.truncf %482 : vector<16x8xf32> to vector<16x8xbf16>
    %cst_130 = arith.constant dense<0.000000e+00> : vector<16x8xf32>
    %485 = tpu.matmul %483, %484, %cst_130 {dimension_numbers = #tpu.dot_dimension_numbers<[1], [0], [0], [1], [0, 0, 1, 1], [], []>} : vector<16x16xbf16>, vector<16x8xbf16>, vector<16x8xf32> -> vector<16x8xf32>
    %486 = vector.extract_strided_slice %457 {offsets = [0, 8], sizes = [16, 8], strides = [1, 1]} : vector<16x32xf32> to vector<16x8xf32>
    %487 = vector.extract_strided_slice %458 {offsets = [0, 8], sizes = [16, 8], strides = [1, 1]} : vector<16x32xf32> to vector<16x8xf32>
    %488 = arith.truncf %486 : vector<16x8xf32> to vector<16x8xbf16>
    %489 = arith.truncf %487 : vector<16x8xf32> to vector<16x8xbf16>
    %cst_131 = arith.constant dense<0.000000e+00> : vector<16x16xf32>
    %490 = tpu.matmul %488, %489, %cst_131 {dimension_numbers = #tpu.dot_dimension_numbers<[1], [1], [0], [0], [0, 0, 1, 0], [], []>} : vector<16x8xbf16>, vector<16x8xbf16>, vector<16x16xf32> -> vector<16x16xf32>
    %cst_132 = arith.constant 0.353553385 : f32
    %491 = vector.broadcast %cst_132 : f32 to vector<16x16xf32>
    %492 = arith.mulf %490, %491 : vector<16x16xf32>
    %493 = arith.addf %492, %463 : vector<16x16xf32>
    %cst_133 = arith.constant dense<0xFF800000> : vector<16xf32>
    %494 = vector.multi_reduction <maximumf>, %493, %cst_133 [1] : vector<16x16xf32> to vector<16xf32>
    %495 = vector.shape_cast %494 : vector<16xf32> to vector<16x1xf32>
    %496 = vector.broadcast %495 : vector<16x1xf32> to vector<16x16xf32>
    %497 = arith.subf %493, %496 : vector<16x16xf32>
    %498 = math.exp %497 : vector<16x16xf32>
    %cst_134 = arith.constant dense<0.000000e+00> : vector<16xf32>
    %499 = vector.multi_reduction <add>, %498, %cst_134 [1] : vector<16x16xf32> to vector<16xf32>
    %500 = vector.shape_cast %499 : vector<16xf32> to vector<16x1xf32>
    %501 = tpu.reciprocal %500 {approx = true} : vector<16x1xf32> -> vector<16x1xf32>
    %502 = vector.broadcast %501 : vector<16x1xf32> to vector<16x16xf32>
    %503 = arith.mulf %498, %502 : vector<16x16xf32>
    %504 = vector.extract_strided_slice %459 {offsets = [0, 8], sizes = [16, 8], strides = [1, 1]} : vector<16x32xf32> to vector<16x8xf32>
    %505 = arith.truncf %503 : vector<16x16xf32> to vector<16x16xbf16>
    %506 = arith.truncf %504 : vector<16x8xf32> to vector<16x8xbf16>
    %cst_135 = arith.constant dense<0.000000e+00> : vector<16x8xf32>
    %507 = tpu.matmul %505, %506, %cst_135 {dimension_numbers = #tpu.dot_dimension_numbers<[1], [0], [0], [1], [0, 0, 1, 1], [], []>} : vector<16x16xbf16>, vector<16x8xbf16>, vector<16x8xf32> -> vector<16x8xf32>
    %508 = vector.extract_strided_slice %457 {offsets = [0, 16], sizes = [16, 8], strides = [1, 1]} : vector<16x32xf32> to vector<16x8xf32>
    %509 = vector.extract_strided_slice %458 {offsets = [0, 16], sizes = [16, 8], strides = [1, 1]} : vector<16x32xf32> to vector<16x8xf32>
    %510 = arith.truncf %508 : vector<16x8xf32> to vector<16x8xbf16>
    %511 = arith.truncf %509 : vector<16x8xf32> to vector<16x8xbf16>
    %cst_136 = arith.constant dense<0.000000e+00> : vector<16x16xf32>
    %512 = tpu.matmul %510, %511, %cst_136 {dimension_numbers = #tpu.dot_dimension_numbers<[1], [1], [0], [0], [0, 0, 1, 0], [], []>} : vector<16x8xbf16>, vector<16x8xbf16>, vector<16x16xf32> -> vector<16x16xf32>
    %cst_137 = arith.constant 0.353553385 : f32
    %513 = vector.broadcast %cst_137 : f32 to vector<16x16xf32>
    %514 = arith.mulf %512, %513 : vector<16x16xf32>
    %515 = arith.addf %514, %463 : vector<16x16xf32>
    %cst_138 = arith.constant dense<0xFF800000> : vector<16xf32>
    %516 = vector.multi_reduction <maximumf>, %515, %cst_138 [1] : vector<16x16xf32> to vector<16xf32>
    %517 = vector.shape_cast %516 : vector<16xf32> to vector<16x1xf32>
    %518 = vector.broadcast %517 : vector<16x1xf32> to vector<16x16xf32>
    %519 = arith.subf %515, %518 : vector<16x16xf32>
    %520 = math.exp %519 : vector<16x16xf32>
    %cst_139 = arith.constant dense<0.000000e+00> : vector<16xf32>
    %521 = vector.multi_reduction <add>, %520, %cst_139 [1] : vector<16x16xf32> to vector<16xf32>
    %522 = vector.shape_cast %521 : vector<16xf32> to vector<16x1xf32>
    %523 = tpu.reciprocal %522 {approx = true} : vector<16x1xf32> -> vector<16x1xf32>
    %524 = vector.broadcast %523 : vector<16x1xf32> to vector<16x16xf32>
    %525 = arith.mulf %520, %524 : vector<16x16xf32>
    %526 = vector.extract_strided_slice %459 {offsets = [0, 16], sizes = [16, 8], strides = [1, 1]} : vector<16x32xf32> to vector<16x8xf32>
    %527 = arith.truncf %525 : vector<16x16xf32> to vector<16x16xbf16>
    %528 = arith.truncf %526 : vector<16x8xf32> to vector<16x8xbf16>
    %cst_140 = arith.constant dense<0.000000e+00> : vector<16x8xf32>
    %529 = tpu.matmul %527, %528, %cst_140 {dimension_numbers = #tpu.dot_dimension_numbers<[1], [0], [0], [1], [0, 0, 1, 1], [], []>} : vector<16x16xbf16>, vector<16x8xbf16>, vector<16x8xf32> -> vector<16x8xf32>
    %530 = vector.extract_strided_slice %457 {offsets = [0, 24], sizes = [16, 8], strides = [1, 1]} : vector<16x32xf32> to vector<16x8xf32>
    %531 = vector.extract_strided_slice %458 {offsets = [0, 24], sizes = [16, 8], strides = [1, 1]} : vector<16x32xf32> to vector<16x8xf32>
    %532 = arith.truncf %530 : vector<16x8xf32> to vector<16x8xbf16>
    %533 = arith.truncf %531 : vector<16x8xf32> to vector<16x8xbf16>
    %cst_141 = arith.constant dense<0.000000e+00> : vector<16x16xf32>
    %534 = tpu.matmul %532, %533, %cst_141 {dimension_numbers = #tpu.dot_dimension_numbers<[1], [1], [0], [0], [0, 0, 1, 0], [], []>} : vector<16x8xbf16>, vector<16x8xbf16>, vector<16x16xf32> -> vector<16x16xf32>
    %cst_142 = arith.constant 0.353553385 : f32
    %535 = vector.broadcast %cst_142 : f32 to vector<16x16xf32>
    %536 = arith.mulf %534, %535 : vector<16x16xf32>
    %537 = arith.addf %536, %463 : vector<16x16xf32>
    %cst_143 = arith.constant dense<0xFF800000> : vector<16xf32>
    %538 = vector.multi_reduction <maximumf>, %537, %cst_143 [1] : vector<16x16xf32> to vector<16xf32>
    %539 = vector.shape_cast %538 : vector<16xf32> to vector<16x1xf32>
    %540 = vector.broadcast %539 : vector<16x1xf32> to vector<16x16xf32>
    %541 = arith.subf %537, %540 : vector<16x16xf32>
    %542 = math.exp %541 : vector<16x16xf32>
    %cst_144 = arith.constant dense<0.000000e+00> : vector<16xf32>
    %543 = vector.multi_reduction <add>, %542, %cst_144 [1] : vector<16x16xf32> to vector<16xf32>
    %544 = vector.shape_cast %543 : vector<16xf32> to vector<16x1xf32>
    %545 = tpu.reciprocal %544 {approx = true} : vector<16x1xf32> -> vector<16x1xf32>
    %546 = vector.broadcast %545 : vector<16x1xf32> to vector<16x16xf32>
    %547 = arith.mulf %542, %546 : vector<16x16xf32>
    %548 = vector.extract_strided_slice %459 {offsets = [0, 24], sizes = [16, 8], strides = [1, 1]} : vector<16x32xf32> to vector<16x8xf32>
    %549 = arith.truncf %547 : vector<16x16xf32> to vector<16x16xbf16>
    %550 = arith.truncf %548 : vector<16x8xf32> to vector<16x8xbf16>
    %cst_145 = arith.constant dense<0.000000e+00> : vector<16x8xf32>
    %551 = tpu.matmul %549, %550, %cst_145 {dimension_numbers = #tpu.dot_dimension_numbers<[1], [0], [0], [1], [0, 0, 1, 1], [], []>} : vector<16x16xbf16>, vector<16x8xbf16>, vector<16x8xf32> -> vector<16x8xf32>
    %552 = tpu.concatenate %485, %507, %529, %551 in 1 : vector<16x8xf32>, vector<16x8xf32>, vector<16x8xf32>, vector<16x8xf32> -> vector<16x32xf32>
    %553 = tpu.concatenate %456, %552 in 0 : vector<16x32xf32>, vector<16x32xf32> -> vector<32x32xf32>
    %554 = vector.extract_strided_slice %320 {offsets = [0, 288], sizes = [32, 32], strides = [1, 1]} : vector<32x320xf32> to vector<32x32xf32>
    %555 = arith.truncf %553 : vector<32x32xf32> to vector<32x32xbf16>
    %556 = arith.truncf %554 : vector<32x32xf32> to vector<32x32xbf16>
    %cst_146 = arith.constant dense<0.000000e+00> : vector<32x32xf32>
    %557 = tpu.matmul %555, %556, %cst_146 {dimension_numbers = #tpu.dot_dimension_numbers<[1], [0], [0], [1], [0, 0, 1, 1], [], []>} : vector<32x32xbf16>, vector<32x32xbf16>, vector<32x32xf32> -> vector<32x32xf32>
    %558 = arith.addf %557, %360 : vector<32x32xf32>
    %559 = arith.addf %558, %296 : vector<32x32xf32>
    %c6 = arith.constant 6 : index
    %c0_147 = arith.constant 0 : index
    %560 = vector.load %arg4[%c6, %c0_147] : memref<8x32xf32, #tpu.memory_space<vmem>>, vector<1x32xf32>
    %c7 = arith.constant 7 : index
    %c0_148 = arith.constant 0 : index
    %561 = vector.load %arg4[%c7, %c0_148] : memref<8x32xf32, #tpu.memory_space<vmem>>, vector<1x32xf32>
    %cst_149 = arith.constant dense<0.000000e+00> : vector<32xf32>
    %562 = vector.multi_reduction <add>, %559, %cst_149 [1] : vector<32x32xf32> to vector<32xf32>
    %563 = vector.shape_cast %562 : vector<32xf32> to vector<32x1xf32>
    %cst_150 = arith.constant 3.200000e+01 : f32
    %564 = vector.broadcast %cst_150 : f32 to vector<32x1xf32>
    %565 = arith.divf %563, %564 : vector<32x1xf32>
    %566 = vector.broadcast %565 : vector<32x1xf32> to vector<32x32xf32>
    %567 = arith.subf %559, %566 : vector<32x32xf32>
    %568 = arith.mulf %567, %567 : vector<32x32xf32>
    %cst_151 = arith.constant dense<0.000000e+00> : vector<32xf32>
    %569 = vector.multi_reduction <add>, %568, %cst_151 [1] : vector<32x32xf32> to vector<32xf32>
    %570 = vector.shape_cast %569 : vector<32xf32> to vector<32x1xf32>
    %cst_152 = arith.constant 3.200000e+01 : f32
    %571 = vector.broadcast %cst_152 : f32 to vector<32x1xf32>
    %572 = arith.divf %570, %571 : vector<32x1xf32>
    %cst_153 = arith.constant 9.99999974E-6 : f32
    %573 = vector.broadcast %cst_153 : f32 to vector<32x1xf32>
    %574 = arith.addf %572, %573 : vector<32x1xf32>
    %575 = math.rsqrt %574 : vector<32x1xf32>
    %576 = vector.broadcast %575 : vector<32x1xf32> to vector<32x32xf32>
    %577 = arith.mulf %567, %576 : vector<32x32xf32>
    %578 = vector.broadcast %560 : vector<1x32xf32> to vector<32x32xf32>
    %579 = arith.mulf %577, %578 : vector<32x32xf32>
    %580 = vector.broadcast %561 : vector<1x32xf32> to vector<32x32xf32>
    %581 = arith.addf %579, %580 : vector<32x32xf32>
    %c0_154 = arith.constant 0 : index
    %c0_155 = arith.constant 0 : index
    %582 = vector.load %arg8[%c0_154, %c0_155] : memref<32x8xf32, #tpu.memory_space<vmem>>, vector<32x8xf32>
    %583 = arith.truncf %581 : vector<32x32xf32> to vector<32x32xbf16>
    %584 = arith.truncf %582 : vector<32x8xf32> to vector<32x8xbf16>
    %cst_156 = arith.constant dense<0.000000e+00> : vector<32x8xf32>
    %585 = tpu.matmul %583, %584, %cst_156 {dimension_numbers = #tpu.dot_dimension_numbers<[1], [0], [0], [1], [0, 0, 1, 1], [], []>} : vector<32x32xbf16>, vector<32x8xbf16>, vector<32x8xf32> -> vector<32x8xf32>
    %c4_157 = arith.constant 4 : index
    %c0_158 = arith.constant 0 : index
    %586 = vector.load %arg7[%c4_157, %c0_158] : memref<5x128xf32, #tpu.memory_space<vmem>>, vector<1x8xf32>
    %587 = vector.broadcast %586 : vector<1x8xf32> to vector<32x8xf32>
    %588 = arith.addf %585, %587 : vector<32x8xf32>
    %589 = vector.extract_strided_slice %588 {offsets = [8, 0], sizes = [2, 8], strides = [1, 1]} : vector<32x8xf32> to vector<2x8xf32>
    %c0_159 = arith.constant 0 : index
    %c0_160 = arith.constant 0 : index
    %c0_161 = arith.constant 0 : index
    %590 = vector.load %arg9[%c0_159, %c0_160, %c0_161] : memref<2x2x8xf32, #tpu.memory_space<vmem>>, vector<1x2x8xf32>
    %591 = vector.shape_cast %590 : vector<1x2x8xf32> to vector<2x8xf32>
    %592 = vector.shape_cast %589 : vector<2x8xf32> to vector<1x2x8xf32>
    tpu.vector_store %arg9[%c0_159, %c0_160, %c0_161], %592 {strides = array<i32>} : memref<2x2x8xf32, #tpu.memory_space<vmem>>, vector<1x2x8xf32>,
    %593 = vector.extract_strided_slice %588 {offsets = [24, 0], sizes = [2, 8], strides = [1, 1]} : vector<32x8xf32> to vector<2x8xf32>
    %c1_162 = arith.constant 1 : index
    %c0_163 = arith.constant 0 : index
    %c0_164 = arith.constant 0 : index
    %594 = vector.load %arg9[%c1_162, %c0_163, %c0_164] : memref<2x2x8xf32, #tpu.memory_space<vmem>>, vector<1x2x8xf32>
    %595 = vector.shape_cast %594 : vector<1x2x8xf32> to vector<2x8xf32>
    %596 = vector.shape_cast %593 : vector<2x8xf32> to vector<1x2x8xf32>
    tpu.vector_store %arg9[%c1_162, %c0_163, %c0_164], %596 {strides = array<i32>} : memref<2x2x8xf32, #tpu.memory_space<vmem>>, vector<1x2x8xf32>,
    return
  }
  func.func @transform_0(%arg0: i32) -> (i32, i32) {
    %c0_i32 = arith.constant 0 : i32
    %c0_i32_0 = arith.constant 0 : i32
    return %arg0, %c0_i32 : i32, i32
  }
  func.func @transform_1(%arg0: i32) -> (i32, i32, i32) {
    %c0_i32 = arith.constant 0 : i32
    %c0_i32_0 = arith.constant 0 : i32
    %c0_i32_1 = arith.constant 0 : i32
    return %arg0, %c0_i32, %c0_i32_0 : i32, i32, i32
  }
  func.func @transform_2(%arg0: i32) -> (i32, i32, i32) {
    %c0_i32 = arith.constant 0 : i32
    %c0_i32_0 = arith.constant 0 : i32
    %c0_i32_1 = arith.constant 0 : i32
    %c0_i32_2 = arith.constant 0 : i32
    return %c0_i32, %c0_i32_0, %c0_i32_1 : i32, i32, i32
  }
  func.func @transform_3(%arg0: i32) -> (i32, i32) {
    %c0_i32 = arith.constant 0 : i32
    %c0_i32_0 = arith.constant 0 : i32
    %c0_i32_1 = arith.constant 0 : i32
    return %c0_i32, %c0_i32_0 : i32, i32
  }
  func.func @transform_4(%arg0: i32) -> (i32, i32, i32) {
    %c0_i32 = arith.constant 0 : i32
    %c0_i32_0 = arith.constant 0 : i32
    %c0_i32_1 = arith.constant 0 : i32
    %c0_i32_2 = arith.constant 0 : i32
    return %c0_i32, %c0_i32_0, %c0_i32_1 : i32, i32, i32
  }
  func.func @transform_5(%arg0: i32) -> (i32, i32, i32) {
    %c0_i32 = arith.constant 0 : i32
    %c0_i32_0 = arith.constant 0 : i32
    %c0_i32_1 = arith.constant 0 : i32
    %c0_i32_2 = arith.constant 0 : i32
    return %c0_i32, %c0_i32_0, %c0_i32_1 : i32, i32, i32
  }
  func.func @transform_6(%arg0: i32) -> (i32, i32) {
    %c0_i32 = arith.constant 0 : i32
    %c0_i32_0 = arith.constant 0 : i32
    %c0_i32_1 = arith.constant 0 : i32
    return %c0_i32, %c0_i32_0 : i32, i32
  }
  func.func @transform_7(%arg0: i32) -> (i32, i32) {
    %c0_i32 = arith.constant 0 : i32
    %c0_i32_0 = arith.constant 0 : i32
    %c0_i32_1 = arith.constant 0 : i32
    return %c0_i32, %c0_i32_0 : i32, i32
  }
  func.func @transform_8(%arg0: i32) -> (i32, i32, i32) {
    %c0_i32 = arith.constant 0 : i32
    %c0_i32_0 = arith.constant 0 : i32
    %c0_i32_1 = arith.constant 0 : i32
    return %arg0, %c0_i32, %c0_i32_0 : i32, i32, i32
  }
}

</mosaic_0001>

<llo_original>
// kernel: custom-call.2
$region0: #{custom-call.2}
  %s0 = inlined_call_operand.vmem [shape: s32[2,8], index: 0, kind: output, shape index: {}]

// kernel: _lambda_.1
$region0: #{_lambda_.1}
  #allocation0 [shape = 'u32[]', space=smem, size = 0x4, offset = 0x4, fixed_abs, tag = 'smem constant byte address 0x4 - core index']
  #allocation1 [shape = 'u32[72,128]{1,0:T(1,128)}', space=vmem, size = 0x9000, scoped, tag = 'internal scratch']
  %s0 = inlined_call_operand.vmem [shape: f32[32,32], index: 0, kind: input, shape index: {}]
  %s1 = inlined_call_operand.vmem [shape: f32[2,1,16], index: 1, kind: input, shape index: {}]
  %s2 = inlined_call_operand.vmem [shape: f32[2,32,32], index: 2, kind: input, shape index: {}]
  %s3 = inlined_call_operand.vmem [shape: f32[8,32], index: 3, kind: input, shape index: {}]
  %s4 = inlined_call_operand.hbm [shape: f32[2,32,320], index: 4, kind: input, shape index: {}]
  %s5 = inlined_call_operand.hbm [shape: f32[2,128,32], index: 5, kind: input, shape index: {}]
  %s6 = inlined_call_operand.vmem [shape: f32[5,128], index: 6, kind: input, shape index: {}]
  %s7 = inlined_call_operand.vmem [shape: f32[32,8], index: 7, kind: input, shape index: {}]
  %s8 = inlined_call_operand.vmem [shape: f32[2,2,8], index: 8, kind: output, shape index: {}]
  %s9 = sld [smem:[#allocation0]]
  $region50: #{_lambda_.1} parent=0
    _
  %s11 = ssub.s32 1, %s9
  %s12 = scalar_select 0, %s11, %s9
  $region1: #{_lambda_.1} parent=0
    #allocation2 [shape = 'u8[98304]{0}', space=vmem, size = 0x18000, scoped, tag = 'input window, operand 4, single buffered']
    #allocation3 [shape = 's32[1]{0}', space=sflag, size = 0x4, scoped, tag = 'scoped memory for _lambda_.1']
    #allocation4 [shape = 'u8[131072]{0}', space=vmem, size = 0x20000, scoped, tag = 'input window, operand 5, single buffered']
    #allocation5 [shape = 's32[1]{0}', space=sflag, size = 0x4, scoped, tag = 'scoped memory for _lambda_.1']
    %13 = vsyncpa [#allocation3], 0
    %14 = vsyncpa [#allocation5], 0
    // Predicated region
    $region2: #{_lambda_.1} parent=1 // pred_check
      _
    $region3: #{_lambda_.1} parent=1 // pred_check_branch
      %16 = sbr.rel (0) target = $region5
    $region4: #{_lambda_.1} parent=1 // pred_region
      _
    $region5: #{_lambda_.1} parent=1 // pred_fallthru
      _
    // Predicated region
    $region6: #{_lambda_.1} parent=1 // pred_check
      _
    $region7: #{_lambda_.1} parent=1 // pred_check_branch
      %18 = sbr.rel (0) target = $region9
    $region8: #{_lambda_.1} parent=1 // pred_region
      _
    $region9: #{_lambda_.1} parent=1 // pred_fallthru
      _
    // Predicated region
    $region10: #{_lambda_.1} parent=1 // pred_check
      _
    $region11: #{_lambda_.1} parent=1 // pred_check_branch
      %20 = sbr.rel (0) target = $region13
    $region12: #{_lambda_.1} parent=1 // pred_region
      _
    $region13: #{_lambda_.1} parent=1 // pred_fallthru
      _
    // Predicated region
    $region14: #{_lambda_.1} parent=1 // pred_check
      _
    $region15: #{_lambda_.1} parent=1 // pred_check_branch
      %22 = sbr.rel (0) target = $region17
    $region16: #{_lambda_.1} parent=1 // pred_region
      _
    $region17: #{_lambda_.1} parent=1 // pred_fallthru
      _
    // Predicated region
    $region18: #{_lambda_.1} parent=1 // pred_check
      _
    $region19: #{_lambda_.1} parent=1 // pred_check_branch
      %24 = sbr.rel (0) target = $region21
    $region20: #{_lambda_.1} parent=1 // pred_region
      %26 = vsyncadd [#allocation3], 0
      %s27 = sshll.u32 %s4, 4
      %s28 = int_to_ptr.hbm [resolvable:$true] %s27
      %s29 = sshll.u32 [#allocation2], 4
      %s30 = int_to_ptr.vmem [resolvable:$true] %s29
      %35 = dma.hbm_to_vmem [thread:$0]  %s28, 3072, %s30, [#allocation3], 384, 384, 24
    $region21: #{_lambda_.1} parent=1 // pred_fallthru
      _
    // Predicated region
    $region22: #{_lambda_.1} parent=1 // pred_check
      _
    $region23: #{_lambda_.1} parent=1 // pred_check_branch
      %37 = sbr.rel (0) target = $region25
    $region24: #{_lambda_.1} parent=1 // pred_region
      %39 = vsyncadd [#allocation5], 0
      %s40 = sshll.u32 %s5, 4
      %s41 = int_to_ptr.hbm [resolvable:$true] %s40
      %s42 = sshll.u32 [#allocation4], 4
      %s43 = int_to_ptr.vmem [resolvable:$true] %s42
      %48 = dma.hbm_to_vmem [thread:$0]  %s41, 4096, %s43, [#allocation5], 128, 128, 8
    $region25: #{_lambda_.1} parent=1 // pred_fallthru
      _
    // Predicated region
    $region26: #{_lambda_.1} parent=1 // pred_check
      _
    $region27: #{_lambda_.1} parent=1 // pred_check_branch
      %50 = sbr.rel (0) target = $region29
    $region28: #{_lambda_.1} parent=1 // pred_region
      _
    $region29: #{_lambda_.1} parent=1 // pred_fallthru
      _
    // Predicated region
    $region30: #{_lambda_.1} parent=1 // pred_check
      _
    $region31: #{_lambda_.1} parent=1 // pred_check_branch
      %52 = sbr.rel (0) target = $region33
    $region32: #{_lambda_.1} parent=1 // pred_region
      _
    $region33: #{_lambda_.1} parent=1 // pred_fallthru
      _
    // Predicated region
    $region34: #{_lambda_.1} parent=1 // pred_check
      _
    $region35: #{_lambda_.1} parent=1 // pred_check_branch
      %54 = sbr.rel (0) target = $region37
    $region36: #{_lambda_.1} parent=1 // pred_region
      %56 = dma.done [#allocation3], 3072
    $region37: #{_lambda_.1} parent=1 // pred_fallthru
      _
    // Predicated region
    $region38: #{_lambda_.1} parent=1 // pred_check
      _
    $region39: #{_lambda_.1} parent=1 // pred_check_branch
      %58 = sbr.rel (0) target = $region41
    $region40: #{_lambda_.1} parent=1 // pred_region
      %60 = dma.done [#allocation5], 4096
    $region41: #{_lambda_.1} parent=1 // pred_fallthru
      _
    %v62 = vld [vmem:[%s2] sm:$0xff]
    %v63 = vld [vmem:[%s2 + $0x8] sm:$0xff]
    %v64 = vld [vmem:[%s2 + $0x10] sm:$0xff]
    %v65 = vld [vmem:[%s2 + $0x18] sm:$0xff]
    %s66 = scalar_lea.vmem %s2, 32
    %v67 = vld [vmem:[%s66] sm:$0xff]
    %v68 = vld [vmem:[%s66 + $0x8] sm:$0xff]
    %v69 = vld [vmem:[%s66 + $0x10] sm:$0xff]
    %v70 = vld [vmem:[%s66 + $0x18] sm:$0xff]
    %v71 = vld [vmem:[%s1] sm:$0x1]
    %v72 = vld [vmem:[%s1 + $0x1] sm:$0x1]
    %v73 = vlaneseq
    %v74 = vshrl.u32 %v73, 7
    %v75 = vadd.s32 %v74, 8
    %v76 = vlaneseq
    %v77 = vand.u32 %v76, 127
    %vm78 = vcmp.le.s32.totalorder %v77, %v74
    %vm79 = vcmp.le.s32.totalorder %v77, %v75
    %v80 = vsel %vm78, 0.0, -1e+30
    %v81 = vsel %vm79, 0.0, -1e+30
    %v82 = vld [vmem:[%s0] sm:$0xff]
    %v83 = vld [vmem:[%s0 + $0x8] sm:$0xff]
    %v84 = vld [vmem:[%s0 + $0x10] sm:$0xff]
    %v85 = vld [vmem:[%s0 + $0x18] sm:$0xff]
    %v86 = vld [vmem:[%s3] sm:$0x1]
    %v87 = vld [vmem:[%s3 + $0x1] sm:$0x1]
    %vm88 = vcmask 261120
    %v89 = vsel %vm88, %v82, 0.0
    %90 = vadd.xlane.f32.xlu0 %v89
    %v91 = vpop.xlane.xlu0 %90
    %v92 = vsel %vm88, %v83, 0.0
    %93 = vadd.xlane.f32.xlu0 %v92
    %v94 = vpop.xlane.xlu0 %93
    %v95 = vsel %vm88, %v84, 0.0
    %96 = vadd.xlane.f32.xlu0 %v95
    %v97 = vpop.xlane.xlu0 %96
    %v98 = vsel %vm88, %v85, 0.0
    %99 = vadd.xlane.f32.xlu0 %v98
    %v100 = vpop.xlane.xlu0 %99
    %v101 = vrcp.pop 32.0
    %v102 = vmul.f32 32.0, %v101
    %v103 = vsub.f32 1.0, %v102
    %v104 = vmul.f32 %v101, %v103
    %v105 = vadd.f32 %v101, %v104
    %vm106 = vweird.f32 %v101
    %v107 = vsel %vm106, %v101, %v105
    %v108 = vmul.f32 %v91, %v107
    %v109 = vmul.f32 %v94, %v107
    %v110 = vmul.f32 %v97, %v107
    %v111 = vmul.f32 %v100, %v107
    %v112 = vsub.f32 %v82, %v108
    %v113 = vsub.f32 %v83, %v109
    %v114 = vsub.f32 %v84, %v110
    %v115 = vsub.f32 %v85, %v111
    %v116 = vmul.f32 %v112, %v112
    %v117 = vmul.f32 %v113, %v113
    %v118 = vmul.f32 %v114, %v114
    %v119 = vmul.f32 %v115, %v115
    %v120 = vsel %vm88, %v116, 0.0
    %121 = vadd.xlane.f32.xlu0 %v120
    %v122 = vpop.xlane.xlu0 %121
    %v123 = vsel %vm88, %v117, 0.0
    %124 = vadd.xlane.f32.xlu0 %v123
    %v125 = vpop.xlane.xlu0 %124
    %v126 = vsel %vm88, %v118, 0.0
    %127 = vadd.xlane.f32.xlu0 %v126
    %v128 = vpop.xlane.xlu0 %127
    %v129 = vsel %vm88, %v119, 0.0
    %130 = vadd.xlane.f32.xlu0 %v129
    %v131 = vpop.xlane.xlu0 %130
    %v132 = vmul.f32 %v122, %v107
    %v133 = vmul.f32 %v125, %v107
    %v134 = vmul.f32 %v128, %v107
    %v135 = vmul.f32 %v131, %v107
    %v136 = vadd.f32 %v132, 1e-05
    %v137 = vadd.f32 %v133, 1e-05
    %v138 = vadd.f32 %v134, 1e-05
    %v139 = vadd.f32 %v135, 1e-05
    %v140 = vrsqrt.pop %v136
    %v141 = vmul.f32 %v140, %v136
    %v142 = vmul.f32 %v141, %v140
    %v143 = vmul.f32 0.5, %v142
    %v144 = vsub.f32 1.5, %v143
    %v145 = vmul.f32 %v140, %v144
    %vm146 = vweird.f32 %v136
    %vm147 = vweird.f32 %v140
    %vm148 = vmor %vm146, %vm147
    %v149 = vsel %vm148, %v140, %v145
    %v150 = vrsqrt.pop %v137
    %v151 = vmul.f32 %v150, %v137
    %v152 = vmul.f32 %v151, %v150
    %v153 = vmul.f32 0.5, %v152
    %v154 = vsub.f32 1.5, %v153
    %v155 = vmul.f32 %v150, %v154
    %vm156 = vweird.f32 %v137
    %vm157 = vweird.f32 %v150
    %vm158 = vmor %vm156, %vm157
    %v159 = vsel %vm158, %v150, %v155
    %v160 = vrsqrt.pop %v138
    %v161 = vmul.f32 %v160, %v138
    %v162 = vmul.f32 %v161, %v160
    %v163 = vmul.f32 0.5, %v162
    %v164 = vsub.f32 1.5, %v163
    %v165 = vmul.f32 %v160, %v164
    %vm166 = vweird.f32 %v138
    %vm167 = vweird.f32 %v160
    %vm168 = vmor %vm166, %vm167
    %v169 = vsel %vm168, %v160, %v165
    %v170 = vrsqrt.pop %v139
    %v171 = vmul.f32 %v170, %v139
    %v172 = vmul.f32 %v171, %v170
    %v173 = vmul.f32 0.5, %v172
    %v174 = vsub.f32 1.5, %v173
    %v175 = vmul.f32 %v170, %v174
    %vm176 = vweird.f32 %v139
    %vm177 = vweird.f32 %v170
    %vm178 = vmor %vm176, %vm177
    %v179 = vsel %vm178, %v170, %v175
    %v180 = vmul.f32 %v112, %v149
    %v181 = vmul.f32 %v113, %v159
    %v182 = vmul.f32 %v114, %v169
    %v183 = vmul.f32 %v115, %v179
    %v184 = vperm.slane %v86, 0
    %v185 = vmul.f32 %v180, %v184
    %v186 = vmul.f32 %v181, %v184
    %v187 = vmul.f32 %v182, %v184
    %v188 = vmul.f32 %v183, %v184
    %v189 = vperm.slane %v87, 0
    %v190 = vadd.f32 %v185, %v189
    %v191 = vadd.f32 %v186, %v189
    %v192 = vadd.f32 %v187, %v189
    %v193 = vadd.f32 %v188, %v189
    %v194 = vld [vmem:[%s3 + $0x2] sm:$0x1]
    %v195 = vld [vmem:[%s3 + $0x3] sm:$0x1]
    %v196 = vsel %vm88, %v190, 0.0
    %197 = vadd.xlane.f32.xlu0 %v196
    %v198 = vpop.xlane.xlu0 %197
    %v199 = vsel %vm88, %v191, 0.0
    %200 = vadd.xlane.f32.xlu0 %v199
    %v201 = vpop.xlane.xlu0 %200
    %v202 = vsel %vm88, %v192, 0.0
    %203 = vadd.xlane.f32.xlu0 %v202
    %v204 = vpop.xlane.xlu0 %203
    %v205 = vsel %vm88, %v193, 0.0
    %206 = vadd.xlane.f32.xlu0 %v205
    %v207 = vpop.xlane.xlu0 %206
    %v208 = vmul.f32 %v198, %v107
    %v209 = vmul.f32 %v201, %v107
    %v210 = vmul.f32 %v204, %v107
    %v211 = vmul.f32 %v207, %v107
    %v212 = vsub.f32 %v190, %v208
    %v213 = vsub.f32 %v191, %v209
    %v214 = vsub.f32 %v192, %v210
    %v215 = vsub.f32 %v193, %v211
    %v216 = vmul.f32 %v212, %v212
    %v217 = vmul.f32 %v213, %v213
    %v218 = vmul.f32 %v214, %v214
    %v219 = vmul.f32 %v215, %v215
    %v220 = vsel %vm88, %v216, 0.0
    %221 = vadd.xlane.f32.xlu0 %v220
    %v222 = vpop.xlane.xlu0 %221
    %v223 = vsel %vm88, %v217, 0.0
    %224 = vadd.xlane.f32.xlu0 %v223
    %v225 = vpop.xlane.xlu0 %224
    %v226 = vsel %vm88, %v218, 0.0
    %227 = vadd.xlane.f32.xlu0 %v226
    %v228 = vpop.xlane.xlu0 %227
    %v229 = vsel %vm88, %v219, 0.0
    %230 = vadd.xlane.f32.xlu0 %v229
    %v231 = vpop.xlane.xlu0 %230
    %v232 = vmul.f32 %v222, %v107
    %v233 = vmul.f32 %v225, %v107
    %v234 = vmul.f32 %v228, %v107
    %v235 = vmul.f32 %v231, %v107
    %v236 = vadd.f32 %v232, 1e-05
    %v237 = vadd.f32 %v233, 1e-05
    %v238 = vadd.f32 %v234, 1e-05
    %v239 = vadd.f32 %v235, 1e-05
    %v240 = vrsqrt.pop %v236
    %v241 = vmul.f32 %v240, %v236
    %v242 = vmul.f32 %v241, %v240
    %v243 = vmul.f32 0.5, %v242
    %v244 = vsub.f32 1.5, %v243
    %v245 = vmul.f32 %v240, %v244
    %vm246 = vweird.f32 %v236
    %vm247 = vweird.f32 %v240
    %vm248 = vmor %vm246, %vm247
    %v249 = vsel %vm248, %v240, %v245
    %v250 = vrsqrt.pop %v237
    %v251 = vmul.f32 %v250, %v237
    %v252 = vmul.f32 %v251, %v250
    %v253 = vmul.f32 0.5, %v252
    %v254 = vsub.f32 1.5, %v253
    %v255 = vmul.f32 %v250, %v254
    %vm256 = vweird.f32 %v237
    %vm257 = vweird.f32 %v250
    %vm258 = vmor %vm256, %vm257
    %v259 = vsel %vm258, %v250, %v255
    %v260 = vrsqrt.pop %v238
    %v261 = vmul.f32 %v260, %v238
    %v262 = vmul.f32 %v261, %v260
    %v263 = vmul.f32 0.5, %v262
    %v264 = vsub.f32 1.5, %v263
    %v265 = vmul.f32 %v260, %v264
    %vm266 = vweird.f32 %v238
    %vm267 = vweird.f32 %v260
    %vm268 = vmor %vm266, %vm267
    %v269 = vsel %vm268, %v260, %v265
    %v270 = vrsqrt.pop %v239
    %v271 = vmul.f32 %v270, %v239
    %v272 = vmul.f32 %v271, %v270
    %v273 = vmul.f32 0.5, %v272
    %v274 = vsub.f32 1.5, %v273
    %v275 = vmul.f32 %v270, %v274
    %vm276 = vweird.f32 %v239
    %vm277 = vweird.f32 %v270
    %vm278 = vmor %vm276, %vm277
    %v279 = vsel %vm278, %v270, %v275
    %v280 = vmul.f32 %v212, %v249
    %v281 = vmul.f32 %v213, %v259
    %v282 = vmul.f32 %v214, %v269
    %v283 = vmul.f32 %v215, %v279
    %v284 = vperm.slane %v194, 0
    %v285 = vmul.f32 %v280, %v284
    %v286 = vmul.f32 %v281, %v284
    %v287 = vmul.f32 %v282, %v284
    %v288 = vmul.f32 %v283, %v284
    %v289 = vperm.slane %v195, 0
    %v290 = vadd.f32 %v285, %v289
    %v291 = vadd.f32 %v286, %v289
    %v292 = vadd.f32 %v287, %v289
    %v293 = vadd.f32 %v288, %v289
    %v294 = vld [vmem:[#allocation2] sm:$0xff]
    %v295 = vld [vmem:[#allocation2 + $0x8] sm:$0xff]
    %v296 = vld [vmem:[#allocation2 + $0x10] sm:$0xff]
    %v297 = vld [vmem:[#allocation2 + $0x18] sm:$0xff]
    %v298 = vld [vmem:[#allocation2 + $0x20] sm:$0xff]
    %v299 = vld [vmem:[#allocation2 + $0x28] sm:$0xff]
    %v300 = vld [vmem:[#allocation2 + $0x30] sm:$0xff]
    %v301 = vld [vmem:[#allocation2 + $0x38] sm:$0xff]
    %v302 = vld [vmem:[#allocation2 + $0x40] sm:$0xff]
    %v303 = vld [vmem:[#allocation2 + $0x48] sm:$0xff]
    %v304 = vld [vmem:[#allocation2 + $0x50] sm:$0xff]
    %v305 = vld [vmem:[#allocation2 + $0x58] sm:$0xff]
    %v306 = vpack.c.bf16 %v291, %v290
    %v307 = vpack.c.bf16 %v293, %v292
    %v308 = vpack.c.bf16 %v297, %v294
    %v309 = vpack.c.bf16 %v298, %v295
    %v310 = vpack.c.bf16 %v299, %v296
    %v311 = vpack.c.bf16 %v303, %v300
    %v312 = vpack.c.bf16 %v304, %v301
    %v313 = vpack.c.bf16 %v305, %v302
    %v315 = vsel %vm88, %v306, 0
    %v318 = vsel %vm88, %v307, 0
    %320 = vmatpush.bf16.msra.mxu0 0
    %321 = vmatpush.bf16.msra.mxu0 0
    %322 = vmatpush.bf16.msra.mxu0 0
    %323 = vmatpush.bf16.msra.mxu0 0
    %324 = vmatpush.bf16.msra.mxu0 0
    %325 = vmatpush.bf16.msra.mxu0 0
    %326 = vmatpush.bf16.msra.mxu0 %v311
    %327 = vmatpush.bf16.msra.mxu0 %v308
    %328 = vmatmul.bf16.gmra.mxu0 %v315
    %v329 = vpop.f32.mrf.mxu0
    %v330 = vadd.f32 0.0, %v329
    %v331 = vpop.f32.mrf.mxu0
    %v332 = vadd.f32 0.0, %v331
    %333 = vmatmul.bf16.gmra.mxu0 %v318
    %v334 = vpop.f32.mrf.mxu0
    %v335 = vadd.f32 0.0, %v334
    %v336 = vpop.f32.mrf.mxu0
    %v337 = vadd.f32 0.0, %v336
    %338 = vdwg.mxu0
    %339 = vmatpush.bf16.msra.mxu0 0
    %340 = vmatpush.bf16.msra.mxu0 0
    %341 = vmatpush.bf16.msra.mxu0 0
    %342 = vmatpush.bf16.msra.mxu0 0
    %343 = vmatpush.bf16.msra.mxu0 0
    %344 = vmatpush.bf16.msra.mxu0 0
    %345 = vmatpush.bf16.msra.mxu0 %v312
    %346 = vmatpush.bf16.msra.mxu0 %v309
    %347 = vmatmul.bf16.gmra.mxu0 %v315
    %v348 = vpop.f32.mrf.mxu0
    %v349 = vadd.f32 0.0, %v348
    %v350 = vpop.f32.mrf.mxu0
    %v351 = vadd.f32 0.0, %v350
    %352 = vmatmul.bf16.gmra.mxu0 %v318
    %v353 = vpop.f32.mrf.mxu0
    %v354 = vadd.f32 0.0, %v353
    %v355 = vpop.f32.mrf.mxu0
    %v356 = vadd.f32 0.0, %v355
    %357 = vdwg.mxu0
    %358 = vmatpush.bf16.msra.mxu0 0
    %359 = vmatpush.bf16.msra.mxu0 0
    %360 = vmatpush.bf16.msra.mxu0 0
    %361 = vmatpush.bf16.msra.mxu0 0
    %362 = vmatpush.bf16.msra.mxu0 0
    %363 = vmatpush.bf16.msra.mxu0 0
    %364 = vmatpush.bf16.msra.mxu0 %v313
    %365 = vmatpush.bf16.msra.mxu0 %v310
    %366 = vmatmul.bf16.gmra.mxu0 %v315
    %v367 = vpop.f32.mrf.mxu0
    %v368 = vadd.f32 0.0, %v367
    %v369 = vpop.f32.mrf.mxu0
    %v370 = vadd.f32 0.0, %v369
    %371 = vmatmul.bf16.gmra.mxu0 %v318
    %v372 = vpop.f32.mrf.mxu0
    %v373 = vadd.f32 0.0, %v372
    %v374 = vpop.f32.mrf.mxu0
    %v375 = vadd.f32 0.0, %v374
    %376 = vdwg.mxu0
    %v377 = vmul.f32 %v330, %v67
    %v378 = vmul.f32 %v332, %v68
    %v379 = vmul.f32 %v335, %v69
    %v380 = vmul.f32 %v337, %v70
    %385 = vrot.lane.b32.xlu0 %v62, 96
    %v386 = vpop.permute.xlu0 %385
    %387 = vrot.lane.b32.xlu0 %v63, 96
    %v388 = vpop.permute.xlu0 %387
    %389 = vrot.lane.b32.xlu0 %v64, 96
    %v390 = vpop.permute.xlu0 %389
    %391 = vrot.lane.b32.xlu0 %v65, 96
    %v392 = vpop.permute.xlu0 %391
    %v397 = vmul.f32 %v330, %v386
    %v398 = vmul.f32 %v332, %v388
    %v399 = vmul.f32 %v335, %v390
    %v400 = vmul.f32 %v337, %v392
    %405 = vrot.lane.b32.xlu0 %v397, 32
    %v406 = vpop.permute.xlu0 %405
    %407 = vrot.lane.b32.xlu0 %v398, 32
    %v408 = vpop.permute.xlu0 %407
    %409 = vrot.lane.b32.xlu0 %v399, 32
    %v410 = vpop.permute.xlu0 %409
    %411 = vrot.lane.b32.xlu0 %v400, 32
    %v412 = vpop.permute.xlu0 %411
    %v417 = vadd.f32 %v377, %v406
    %v418 = vadd.f32 %v378, %v408
    %v419 = vadd.f32 %v379, %v410
    %v420 = vadd.f32 %v380, %v412
    %425 = vrot.lane.b32.xlu0 %v67, 32
    %v426 = vpop.permute.xlu0 %425
    %427 = vrot.lane.b32.xlu0 %v68, 32
    %v428 = vpop.permute.xlu0 %427
    %429 = vrot.lane.b32.xlu0 %v69, 32
    %v430 = vpop.permute.xlu0 %429
    %431 = vrot.lane.b32.xlu0 %v70, 32
    %v432 = vpop.permute.xlu0 %431
    %v437 = vmul.f32 %v330, %v426
    %v438 = vmul.f32 %v332, %v428
    %v439 = vmul.f32 %v335, %v430
    %v440 = vmul.f32 %v337, %v432
    %v441 = vmul.f32 %v349, %v62
    %v442 = vmul.f32 %v351, %v63
    %v443 = vmul.f32 %v354, %v64
    %v444 = vmul.f32 %v356, %v65
    %449 = vrot.lane.b32.xlu0 %v441, 32
    %v450 = vpop.permute.xlu0 %449
    %451 = vrot.lane.b32.xlu0 %v442, 32
    %v452 = vpop.permute.xlu0 %451
    %453 = vrot.lane.b32.xlu0 %v443, 32
    %v454 = vpop.permute.xlu0 %453
    %455 = vrot.lane.b32.xlu0 %v444, 32
    %v456 = vpop.permute.xlu0 %455
    %v461 = vadd.f32 %v437, %v450
    %v462 = vadd.f32 %v438, %v452
    %v463 = vadd.f32 %v439, %v454
    %v464 = vadd.f32 %v440, %v456
    %v465 = vld [vmem:[%s6] sm:$0x1]
    %v466 = vperm.slane %v465, 0
    %468 = vrot.lane.b32.xlu0 %v466, 32
    %v469 = vpop.permute.xlu0 %468
    %v471 = vadd.f32 %v349, %v469
    %v472 = vadd.f32 %v368, %v469
    %v473 = vadd.f32 %v351, %v469
    %v474 = vadd.f32 %v370, %v469
    %v475 = vadd.f32 %v354, %v469
    %v476 = vadd.f32 %v373, %v469
    %v477 = vadd.f32 %v356, %v469
    %v478 = vadd.f32 %v375, %v469
    %v479 = vmul.f32 %v471, 0.5
    %v480 = vmul.f32 %v472, 0.5
    %v481 = vmul.f32 %v473, 0.5
    %v482 = vmul.f32 %v474, 0.5
    %v483 = vmul.f32 %v475, 0.5
    %v484 = vmul.f32 %v476, 0.5
    %v485 = vmul.f32 %v477, 0.5
    %v486 = vmul.f32 %v478, 0.5
    %v487 = vmul.f32 %v471, 0.044715
    %v488 = vmul.f32 %v472, 0.044715
    %v489 = vmul.f32 %v473, 0.044715
    %v490 = vmul.f32 %v474, 0.044715
    %v491 = vmul.f32 %v475, 0.044715
    %v492 = vmul.f32 %v476, 0.044715
    %v493 = vmul.f32 %v477, 0.044715
    %v494 = vmul.f32 %v478, 0.044715
    %v495 = vmul.f32 %v487, %v471
    %v496 = vmul.f32 %v488, %v472
    %v497 = vmul.f32 %v489, %v473
    %v498 = vmul.f32 %v490, %v474
    %v499 = vmul.f32 %v491, %v475
    %v500 = vmul.f32 %v492, %v476
    %v501 = vmul.f32 %v493, %v477
    %v502 = vmul.f32 %v494, %v478
    %v503 = vmul.f32 %v495, %v471
    %v504 = vmul.f32 %v496, %v472
    %v505 = vmul.f32 %v497, %v473
    %v506 = vmul.f32 %v498, %v474
    %v507 = vmul.f32 %v499, %v475
    %v508 = vmul.f32 %v500, %v476
    %v509 = vmul.f32 %v501, %v477
    %v510 = vmul.f32 %v502, %v478
    %v511 = vadd.f32 %v471, %v503
    %v512 = vadd.f32 %v472, %v504
    %v513 = vadd.f32 %v473, %v505
    %v514 = vadd.f32 %v474, %v506
    %v515 = vadd.f32 %v475, %v507
    %v516 = vadd.f32 %v476, %v508
    %v517 = vadd.f32 %v477, %v509
    %v518 = vadd.f32 %v478, %v510
    %v519 = vmul.f32 %v511, 0.7978846
    %v520 = vmul.f32 %v512, 0.7978846
    %v521 = vmul.f32 %v513, 0.7978846
    %v522 = vmul.f32 %v514, 0.7978846
    %v523 = vmul.f32 %v515, 0.7978846
    %v524 = vmul.f32 %v516, 0.7978846
    %v525 = vmul.f32 %v517, 0.7978846
    %v526 = vmul.f32 %v518, 0.7978846
    %v527 = vtanh.pop %v519
    %v528 = vtanh.pop %v520
    %v529 = vtanh.pop %v521
    %v530 = vtanh.pop %v522
    %v531 = vtanh.pop %v523
    %v532 = vtanh.pop %v524
    %v533 = vtanh.pop %v525
    %v534 = vtanh.pop %v526
    %v535 = vadd.f32 %v527, 1.0
    %v536 = vadd.f32 %v528, 1.0
    %v537 = vadd.f32 %v529, 1.0
    %v538 = vadd.f32 %v530, 1.0
    %v539 = vadd.f32 %v531, 1.0
    %v540 = vadd.f32 %v532, 1.0
    %v541 = vadd.f32 %v533, 1.0
    %v542 = vadd.f32 %v534, 1.0
    %v543 = vmul.f32 %v479, %v535
    %v544 = vmul.f32 %v480, %v536
    %v545 = vmul.f32 %v481, %v537
    %v546 = vmul.f32 %v482, %v538
    %v547 = vmul.f32 %v483, %v539
    %v548 = vmul.f32 %v484, %v540
    %v549 = vmul.f32 %v485, %v541
    %v550 = vmul.f32 %v486, %v542
    %v551 = vld [vmem:[#allocation4] sm:$0xff]
    %v552 = vld [vmem:[#allocation4 + $0x8] sm:$0xff]
    %v553 = vld [vmem:[#allocation4 + $0x10] sm:$0xff]
    %v554 = vld [vmem:[#allocation4 + $0x18] sm:$0xff]
    %v555 = vld [vmem:[#allocation4 + $0x20] sm:$0xff]
    %v556 = vld [vmem:[#allocation4 + $0x28] sm:$0xff]
    %v557 = vld [vmem:[#allocation4 + $0x30] sm:$0xff]
    %v558 = vld [vmem:[#allocation4 + $0x38] sm:$0xff]
    %v559 = vld [vmem:[#allocation4 + $0x40] sm:$0xff]
    %v560 = vld [vmem:[#allocation4 + $0x48] sm:$0xff]
    %v561 = vld [vmem:[#allocation4 + $0x50] sm:$0xff]
    %v562 = vld [vmem:[#allocation4 + $0x58] sm:$0xff]
    %v563 = vld [vmem:[#allocation4 + $0x60] sm:$0xff]
    %v564 = vld [vmem:[#allocation4 + $0x68] sm:$0xff]
    %v565 = vld [vmem:[#allocation4 + $0x70] sm:$0xff]
    %v566 = vld [vmem:[#allocation4 + $0x78] sm:$0xff]
    %v567 = vpack.c.bf16 %v545, %v543
    %v568 = vpack.c.bf16 %v546, %v544
    %v569 = vpack.c.bf16 %v549, %v547
    %v570 = vpack.c.bf16 %v550, %v548
    %v571 = vpack.c.bf16 %v552, %v551
    %v572 = vpack.c.bf16 %v554, %v553
    %v573 = vpack.c.bf16 %v556, %v555
    %v574 = vpack.c.bf16 %v558, %v557
    %v575 = vpack.c.bf16 %v560, %v559
    %v576 = vpack.c.bf16 %v562, %v561
    %v577 = vpack.c.bf16 %v564, %v563
    %v578 = vpack.c.bf16 %v566, %v565
    %v579 = vld [vmem:[%s6 + $0x2] sm:$0x1]
    %v580 = vperm.slane %v579, 0
    %585 = vrot.lane.b32.xlu0 %v567, 96
    %v586 = vpop.permute.xlu0 %585
    %587 = vrot.lane.b32.xlu0 %v568, 96
    %v588 = vpop.permute.xlu0 %587
    %589 = vrot.lane.b32.xlu0 %v569, 96
    %v590 = vpop.permute.xlu0 %589
    %591 = vrot.lane.b32.xlu0 %v570, 96
    %v592 = vpop.permute.xlu0 %591
    %vm593 = vcmask 785408
    %v594 = vsel %vm593, %v586, %v588
    %v595 = vsel %vm593, %v590, %v592
    %598 = vmatpush.bf16.msra.mxu0 %v578
    %599 = vmatpush.bf16.msra.mxu0 %v577
    %600 = vmatpush.bf16.msra.mxu0 %v576
    %601 = vmatpush.bf16.msra.mxu0 %v575
    %602 = vmatpush.bf16.msra.mxu0 %v574
    %603 = vmatpush.bf16.msra.mxu0 %v573
    %604 = vmatpush.bf16.msra.mxu0 %v572
    %605 = vmatpush.bf16.msra.mxu0 %v571
    %606 = vmatmul.bf16.gmra.mxu0 %v594
    %v607 = vpop.f32.mrf.mxu0
    %v608 = vadd.f32 %v580, %v607
    %v609 = vpop.f32.mrf.mxu0
    %v610 = vadd.f32 %v580, %v609
    %611 = vmatmul.bf16.gmra.mxu0 %v595
    %v612 = vpop.f32.mrf.mxu0
    %v613 = vadd.f32 %v580, %v612
    %v614 = vpop.f32.mrf.mxu0
    %v615 = vadd.f32 %v580, %v614
    %616 = vdwg.mxu0
    %v618 = vperm.slane %v71, 0
    %v620 = vadd.f32 %v80, %v618
    %v621 = vadd.f32 %v81, %v618
    %v622 = vpack.c.bf16 %v418, %v417
    %v623 = vpack.c.bf16 %v462, %v461
    %625 = vrot.lane.b32.xlu0 %v623, 96
    %v626 = vpop.permute.xlu0 %625
    %vm627 = vcmask 64512
    %v629 = vsel %vm627, %v622, 0
    %v632 = vsel %vm627, %v626, 0
    %634 = vmatpush.bf16.xpose.msra.mxu0 0
    %635 = vmatpush.bf16.xpose.msra.mxu0 0
    %636 = vmatpush.bf16.xpose.msra.mxu0 0
    %637 = vmatpush.bf16.xpose.msra.mxu0 0
    %638 = vmatpush.bf16.xpose.msra.mxu0 0
    %639 = vmatpush.bf16.xpose.msra.mxu0 0
    %640 = vmatpush.bf16.xpose.msra.mxu0 0
    %641 = vmatpush.bf16.xpose.msra.mxu0 %v632
    %642 = vmatmul.bf16.gmra.mxu0 %v629
    %v643 = vpop.f32.mrf.mxu0
    %v644 = vadd.f32 0.0, %v643
    %v645 = vpop.f32.mrf.mxu0
    %v646 = vadd.f32 0.0, %v645
    %647 = vdwg.mxu0
    %v648 = vmul.f32 %v644, 0.35355338
    %v649 = vmul.f32 %v646, 0.35355338
    %v650 = vadd.f32 %v648, %v620
    %v651 = vadd.f32 %v649, %v621
    %vm652 = vcmask 130048
    %v653 = vsel %vm652, %v650, -inf
    %654 = vmax.xlane.f32.xlu0 %v653
    %v655 = vpop.xlane.xlu0 %654
    %v656 = vsel %vm652, %v651, -inf
    %657 = vmax.xlane.f32.xlu0 %v656
    %v658 = vpop.xlane.xlu0 %657
    %v659 = vsub.f32 %v650, %v655
    %v660 = vsub.f32 %v651, %v658
    %v661 = vmul.f32 %v659, 1.442695
    %v662 = vpow.pop %v661
    %v663 = vmul.f32 %v660, 1.442695
    %v664 = vpow.pop %v663
    %v665 = vsel %vm652, %v662, 0.0
    %666 = vadd.xlane.f32.xlu0 %v665
    %v667 = vpop.xlane.xlu0 %666
    %v668 = vsel %vm652, %v664, 0.0
    %669 = vadd.xlane.f32.xlu0 %v668
    %v670 = vpop.xlane.xlu0 %669
    %v671 = vrcp.pop %v667
    %v672 = vrcp.pop %v670
    %v673 = vmul.f32 %v662, %v671
    %v674 = vmul.f32 %v664, %v672
    %v675 = vpack.c.bf16 %v674, %v673
    %v676 = vpack.c.bf16 %v332, %v330
    %678 = vrot.lane.b32.xlu0 %v676, 64
    %v679 = vpop.permute.xlu0 %678
    %v682 = vsel %vm652, %v675, 0
    %684 = vmatpush.bf16.msra.mxu0 0
    %685 = vmatpush.bf16.msra.mxu0 0
    %686 = vmatpush.bf16.msra.mxu0 0
    %687 = vmatpush.bf16.msra.mxu0 0
    %688 = vmatpush.bf16.msra.mxu0 0
    %689 = vmatpush.bf16.msra.mxu0 0
    %690 = vmatpush.bf16.msra.mxu0 0
    %691 = vmatpush.bf16.msra.mxu0 %v679
    %692 = vmatmul.bf16.gmra.mxu0 %v682
    %v693 = vpop.f32.mrf.mxu0
    %v694 = vadd.f32 0.0, %v693
    %v695 = vpop.f32.mrf.mxu0
    %v696 = vadd.f32 0.0, %v695
    %697 = vdwg.mxu0
    %699 = vrot.lane.b32.xlu0 %v622, 120
    %v700 = vpop.permute.xlu0 %699
    %701 = vrot.lane.b32.xlu0 %v623, 88
    %v702 = vpop.permute.xlu0 %701
    %v704 = vsel %vm627, %v700, 0
    %v707 = vsel %vm627, %v702, 0
    %709 = vmatpush.bf16.xpose.msra.mxu0 0
    %710 = vmatpush.bf16.xpose.msra.mxu0 0
    %711 = vmatpush.bf16.xpose.msra.mxu0 0
    %712 = vmatpush.bf16.xpose.msra.mxu0 0
    %713 = vmatpush.bf16.xpose.msra.mxu0 0
    %714 = vmatpush.bf16.xpose.msra.mxu0 0
    %715 = vmatpush.bf16.xpose.msra.mxu0 0
    %716 = vmatpush.bf16.xpose.msra.mxu0 %v707
    %717 = vmatmul.bf16.gmra.mxu0 %v704
    %v718 = vpop.f32.mrf.mxu0
    %v719 = vadd.f32 0.0, %v718
    %v720 = vpop.f32.mrf.mxu0
    %v721 = vadd.f32 0.0, %v720
    %722 = vdwg.mxu0
    %v723 = vmul.f32 %v719, 0.35355338
    %v724 = vmul.f32 %v721, 0.35355338
    %v725 = vadd.f32 %v723, %v620
    %v726 = vadd.f32 %v724, %v621
    %v727 = vsel %vm652, %v725, -inf
    %728 = vmax.xlane.f32.xlu0 %v727
    %v729 = vpop.xlane.xlu0 %728
    %v730 = vsel %vm652, %v726, -inf
    %731 = vmax.xlane.f32.xlu0 %v730
    %v732 = vpop.xlane.xlu0 %731
    %v733 = vsub.f32 %v725, %v729
    %v734 = vsub.f32 %v726, %v732
    %v735 = vmul.f32 %v733, 1.442695
    %v736 = vpow.pop %v735
    %v737 = vmul.f32 %v734, 1.442695
    %v738 = vpow.pop %v737
    %v739 = vsel %vm652, %v736, 0.0
    %740 = vadd.xlane.f32.xlu0 %v739
    %v741 = vpop.xlane.xlu0 %740
    %v742 = vsel %vm652, %v738, 0.0
    %743 = vadd.xlane.f32.xlu0 %v742
    %v744 = vpop.xlane.xlu0 %743
    %v745 = vrcp.pop %v741
    %v746 = vrcp.pop %v744
    %v747 = vmul.f32 %v736, %v745
    %v748 = vmul.f32 %v738, %v746
    %v749 = vpack.c.bf16 %v748, %v747
    %750 = vrot.lane.b32.xlu0 %v676, 56
    %v751 = vpop.permute.xlu0 %750
    %v754 = vsel %vm652, %v749, 0
    %756 = vmatpush.bf16.msra.mxu0 0
    %757 = vmatpush.bf16.msra.mxu0 0
    %758 = vmatpush.bf16.msra.mxu0 0
    %759 = vmatpush.bf16.msra.mxu0 0
    %760 = vmatpush.bf16.msra.mxu0 0
    %761 = vmatpush.bf16.msra.mxu0 0
    %762 = vmatpush.bf16.msra.mxu0 0
    %763 = vmatpush.bf16.msra.mxu0 %v751
    %764 = vmatmul.bf16.gmra.mxu0 %v754
    %v765 = vpop.f32.mrf.mxu0
    %v766 = vadd.f32 0.0, %v765
    %v767 = vpop.f32.mrf.mxu0
    %v768 = vadd.f32 0.0, %v767
    %769 = vdwg.mxu0
    %770 = vrot.lane.b32.xlu0 %v622, 112
    %v771 = vpop.permute.xlu0 %770
    %772 = vrot.lane.b32.xlu0 %v623, 80
    %v773 = vpop.permute.xlu0 %772
    %v775 = vsel %vm627, %v771, 0
    %v778 = vsel %vm627, %v773, 0
    %780 = vmatpush.bf16.xpose.msra.mxu0 0
    %781 = vmatpush.bf16.xpose.msra.mxu0 0
    %782 = vmatpush.bf16.xpose.msra.mxu0 0
    %783 = vmatpush.bf16.xpose.msra.mxu0 0
    %784 = vmatpush.bf16.xpose.msra.mxu0 0
    %785 = vmatpush.bf16.xpose.msra.mxu0 0
    %786 = vmatpush.bf16.xpose.msra.mxu0 0
    %787 = vmatpush.bf16.xpose.msra.mxu0 %v778
    %788 = vmatmul.bf16.gmra.mxu0 %v775
    %v789 = vpop.f32.mrf.mxu0
    %v790 = vadd.f32 0.0, %v789
    %v791 = vpop.f32.mrf.mxu0
    %v792 = vadd.f32 0.0, %v791
    %793 = vdwg.mxu0
    %v794 = vmul.f32 %v790, 0.35355338
    %v795 = vmul.f32 %v792, 0.35355338
    %v796 = vadd.f32 %v794, %v620
    %v797 = vadd.f32 %v795, %v621
    %v798 = vsel %vm652, %v796, -inf
    %799 = vmax.xlane.f32.xlu0 %v798
    %v800 = vpop.xlane.xlu0 %799
    %v801 = vsel %vm652, %v797, -inf
    %802 = vmax.xlane.f32.xlu0 %v801
    %v803 = vpop.xlane.xlu0 %802
    %v804 = vsub.f32 %v796, %v800
    %v805 = vsub.f32 %v797, %v803
    %v806 = vmul.f32 %v804, 1.442695
    %v807 = vpow.pop %v806
    %v808 = vmul.f32 %v805, 1.442695
    %v809 = vpow.pop %v808
    %v810 = vsel %vm652, %v807, 0.0
    %811 = vadd.xlane.f32.xlu0 %v810
    %v812 = vpop.xlane.xlu0 %811
    %v813 = vsel %vm652, %v809, 0.0
    %814 = vadd.xlane.f32.xlu0 %v813
    %v815 = vpop.xlane.xlu0 %814
    %v816 = vrcp.pop %v812
    %v817 = vrcp.pop %v815
    %v818 = vmul.f32 %v807, %v816
    %v819 = vmul.f32 %v809, %v817
    %v820 = vpack.c.bf16 %v819, %v818
    %821 = vrot.lane.b32.xlu0 %v676, 48
    %v822 = vpop.permute.xlu0 %821
    %v825 = vsel %vm652, %v820, 0
    %827 = vmatpush.bf16.msra.mxu0 0
    %828 = vmatpush.bf16.msra.mxu0 0
    %829 = vmatpush.bf16.msra.mxu0 0
    %830 = vmatpush.bf16.msra.mxu0 0
    %831 = vmatpush.bf16.msra.mxu0 0
    %832 = vmatpush.bf16.msra.mxu0 0
    %833 = vmatpush.bf16.msra.mxu0 0
    %834 = vmatpush.bf16.msra.mxu0 %v822
    %835 = vmatmul.bf16.gmra.mxu0 %v825
    %v836 = vpop.f32.mrf.mxu0
    %v837 = vadd.f32 0.0, %v836
    %v838 = vpop.f32.mrf.mxu0
    %v839 = vadd.f32 0.0, %v838
    %840 = vdwg.mxu0
    %841 = vrot.lane.b32.xlu0 %v622, 104
    %v842 = vpop.permute.xlu0 %841
    %843 = vrot.lane.b32.xlu0 %v623, 72
    %v844 = vpop.permute.xlu0 %843
    %v846 = vsel %vm627, %v842, 0
    %v849 = vsel %vm627, %v844, 0
    %851 = vmatpush.bf16.xpose.msra.mxu0 0
    %852 = vmatpush.bf16.xpose.msra.mxu0 0
    %853 = vmatpush.bf16.xpose.msra.mxu0 0
    %854 = vmatpush.bf16.xpose.msra.mxu0 0
    %855 = vmatpush.bf16.xpose.msra.mxu0 0
    %856 = vmatpush.bf16.xpose.msra.mxu0 0
    %857 = vmatpush.bf16.xpose.msra.mxu0 0
    %858 = vmatpush.bf16.xpose.msra.mxu0 %v849
    %859 = vmatmul.bf16.gmra.mxu0 %v846
    %v860 = vpop.f32.mrf.mxu0
    %v861 = vadd.f32 0.0, %v860
    %v862 = vpop.f32.mrf.mxu0
    %v863 = vadd.f32 0.0, %v862
    %864 = vdwg.mxu0
    %v865 = vmul.f32 %v861, 0.35355338
    %v866 = vmul.f32 %v863, 0.35355338
    %v867 = vadd.f32 %v865, %v620
    %v868 = vadd.f32 %v866, %v621
    %v869 = vsel %vm652, %v867, -inf
    %870 = vmax.xlane.f32.xlu0 %v869
    %v871 = vpop.xlane.xlu0 %870
    %v872 = vsel %vm652, %v868, -inf
    %873 = vmax.xlane.f32.xlu0 %v872
    %v874 = vpop.xlane.xlu0 %873
    %v875 = vsub.f32 %v867, %v871
    %v876 = vsub.f32 %v868, %v874
    %v877 = vmul.f32 %v875, 1.442695
    %v878 = vpow.pop %v877
    %v879 = vmul.f32 %v876, 1.442695
    %v880 = vpow.pop %v879
    %v881 = vsel %vm652, %v878, 0.0
    %882 = vadd.xlane.f32.xlu0 %v881
    %v883 = vpop.xlane.xlu0 %882
    %v884 = vsel %vm652, %v880, 0.0
    %885 = vadd.xlane.f32.xlu0 %v884
    %v886 = vpop.xlane.xlu0 %885
    %v887 = vrcp.pop %v883
    %v888 = vrcp.pop %v886
    %v889 = vmul.f32 %v878, %v887
    %v890 = vmul.f32 %v880, %v888
    %v891 = vpack.c.bf16 %v890, %v889
    %892 = vrot.lane.b32.xlu0 %v676, 40
    %v893 = vpop.permute.xlu0 %892
    %v896 = vsel %vm652, %v891, 0
    %898 = vmatpush.bf16.msra.mxu0 0
    %899 = vmatpush.bf16.msra.mxu0 0
    %900 = vmatpush.bf16.msra.mxu0 0
    %901 = vmatpush.bf16.msra.mxu0 0
    %902 = vmatpush.bf16.msra.mxu0 0
    %903 = vmatpush.bf16.msra.mxu0 0
    %904 = vmatpush.bf16.msra.mxu0 0
    %905 = vmatpush.bf16.msra.mxu0 %v893
    %906 = vmatmul.bf16.gmra.mxu0 %v896
    %v907 = vpop.f32.mrf.mxu0
    %v908 = vadd.f32 0.0, %v907
    %v909 = vpop.f32.mrf.mxu0
    %v910 = vadd.f32 0.0, %v909
    %911 = vdwg.mxu0
    %914 = vrot.lane.b32.xlu0 %v766, 8
    %v915 = vpop.permute.xlu0 %914
    %916 = vrot.lane.b32.xlu0 %v768, 8
    %v917 = vpop.permute.xlu0 %916
    %922 = vrot.lane.b32.xlu0 %v837, 16
    %v923 = vpop.permute.xlu0 %922
    %924 = vrot.lane.b32.xlu0 %v839, 16
    %v925 = vpop.permute.xlu0 %924
    %930 = vrot.lane.b32.xlu0 %v908, 24
    %v931 = vpop.permute.xlu0 %930
    %932 = vrot.lane.b32.xlu0 %v910, 24
    %v933 = vpop.permute.xlu0 %932
    %v936 = vsel %vm627, %v694, %v915
    %v937 = vsel %vm627, %v696, %v917
    %v938 = vsel %vm652, %v936, %v923
    %v939 = vsel %vm652, %v937, %v925
    %vm940 = vcmask 195584
    %v941 = vsel %vm940, %v938, %v931
    %v942 = vsel %vm940, %v939, %v933
    %v944 = vperm.slane %v72, 0
    %v946 = vadd.f32 %v80, %v944
    %v947 = vadd.f32 %v81, %v944
    %v948 = vpack.c.bf16 %v420, %v419
    %v949 = vpack.c.bf16 %v464, %v463
    %951 = vrot.lane.b32.xlu0 %v949, 96
    %v952 = vpop.permute.xlu0 %951
    %v954 = vsel %vm627, %v948, 0
    %v957 = vsel %vm627, %v952, 0
    %959 = vmatpush.bf16.xpose.msra.mxu0 0
    %960 = vmatpush.bf16.xpose.msra.mxu0 0
    %961 = vmatpush.bf16.xpose.msra.mxu0 0
    %962 = vmatpush.bf16.xpose.msra.mxu0 0
    %963 = vmatpush.bf16.xpose.msra.mxu0 0
    %964 = vmatpush.bf16.xpose.msra.mxu0 0
    %965 = vmatpush.bf16.xpose.msra.mxu0 0
    %966 = vmatpush.bf16.xpose.msra.mxu0 %v957
    %967 = vmatmul.bf16.gmra.mxu0 %v954
    %v968 = vpop.f32.mrf.mxu0
    %v969 = vadd.f32 0.0, %v968
    %v970 = vpop.f32.mrf.mxu0
    %v971 = vadd.f32 0.0, %v970
    %972 = vdwg.mxu0
    %v973 = vmul.f32 %v969, 0.35355338
    %v974 = vmul.f32 %v971, 0.35355338
    %v975 = vadd.f32 %v973, %v946
    %v976 = vadd.f32 %v974, %v947
    %v977 = vsel %vm652, %v975, -inf
    %978 = vmax.xlane.f32.xlu0 %v977
    %v979 = vpop.xlane.xlu0 %978
    %v980 = vsel %vm652, %v976, -inf
    %981 = vmax.xlane.f32.xlu0 %v980
    %v982 = vpop.xlane.xlu0 %981
    %v983 = vsub.f32 %v975, %v979
    %v984 = vsub.f32 %v976, %v982
    %v985 = vmul.f32 %v983, 1.442695
    %v986 = vpow.pop %v985
    %v987 = vmul.f32 %v984, 1.442695
    %v988 = vpow.pop %v987
    %v989 = vsel %vm652, %v986, 0.0
    %990 = vadd.xlane.f32.xlu0 %v989
    %v991 = vpop.xlane.xlu0 %990
    %v992 = vsel %vm652, %v988, 0.0
    %993 = vadd.xlane.f32.xlu0 %v992
    %v994 = vpop.xlane.xlu0 %993
    %v995 = vrcp.pop %v991
    %v996 = vrcp.pop %v994
    %v997 = vmul.f32 %v986, %v995
    %v998 = vmul.f32 %v988, %v996
    %v999 = vpack.c.bf16 %v998, %v997
    %v1000 = vpack.c.bf16 %v337, %v335
    %1002 = vrot.lane.b32.xlu0 %v1000, 64
    %v1003 = vpop.permute.xlu0 %1002
    %v1006 = vsel %vm652, %v999, 0
    %1008 = vmatpush.bf16.msra.mxu0 0
    %1009 = vmatpush.bf16.msra.mxu0 0
    %1010 = vmatpush.bf16.msra.mxu0 0
    %1011 = vmatpush.bf16.msra.mxu0 0
    %1012 = vmatpush.bf16.msra.mxu0 0
    %1013 = vmatpush.bf16.msra.mxu0 0
    %1014 = vmatpush.bf16.msra.mxu0 0
    %1015 = vmatpush.bf16.msra.mxu0 %v1003
    %1016 = vmatmul.bf16.gmra.mxu0 %v1006
    %v1017 = vpop.f32.mrf.mxu0
    %v1018 = vadd.f32 0.0, %v1017
    %v1019 = vpop.f32.mrf.mxu0
    %v1020 = vadd.f32 0.0, %v1019
    %1021 = vdwg.mxu0
    %1023 = vrot.lane.b32.xlu0 %v948, 120
    %v1024 = vpop.permute.xlu0 %1023
    %1025 = vrot.lane.b32.xlu0 %v949, 88
    %v1026 = vpop.permute.xlu0 %1025
    %v1028 = vsel %vm627, %v1024, 0
    %v1031 = vsel %vm627, %v1026, 0
    %1033 = vmatpush.bf16.xpose.msra.mxu0 0
    %1034 = vmatpush.bf16.xpose.msra.mxu0 0
    %1035 = vmatpush.bf16.xpose.msra.mxu0 0
    %1036 = vmatpush.bf16.xpose.msra.mxu0 0
    %1037 = vmatpush.bf16.xpose.msra.mxu0 0
    %1038 = vmatpush.bf16.xpose.msra.mxu0 0
    %1039 = vmatpush.bf16.xpose.msra.mxu0 0
    %1040 = vmatpush.bf16.xpose.msra.mxu0 %v1031
    %1041 = vmatmul.bf16.gmra.mxu0 %v1028
    %v1042 = vpop.f32.mrf.mxu0
    %v1043 = vadd.f32 0.0, %v1042
    %v1044 = vpop.f32.mrf.mxu0
    %v1045 = vadd.f32 0.0, %v1044
    %1046 = vdwg.mxu0
    %v1047 = vmul.f32 %v1043, 0.35355338
    %v1048 = vmul.f32 %v1045, 0.35355338
    %v1049 = vadd.f32 %v1047, %v946
    %v1050 = vadd.f32 %v1048, %v947
    %v1051 = vsel %vm652, %v1049, -inf
    %1052 = vmax.xlane.f32.xlu0 %v1051
    %v1053 = vpop.xlane.xlu0 %1052
    %v1054 = vsel %vm652, %v1050, -inf
    %1055 = vmax.xlane.f32.xlu0 %v1054
    %v1056 = vpop.xlane.xlu0 %1055
    %v1057 = vsub.f32 %v1049, %v1053
    %v1058 = vsub.f32 %v1050, %v1056
    %v1059 = vmul.f32 %v1057, 1.442695
    %v1060 = vpow.pop %v1059
    %v1061 = vmul.f32 %v1058, 1.442695
    %v1062 = vpow.pop %v1061
    %v1063 = vsel %vm652, %v1060, 0.0
    %1064 = vadd.xlane.f32.xlu0 %v1063
    %v1065 = vpop.xlane.xlu0 %1064
    %v1066 = vsel %vm652, %v1062, 0.0
    %1067 = vadd.xlane.f32.xlu0 %v1066
    %v1068 = vpop.xlane.xlu0 %1067
    %v1069 = vrcp.pop %v1065
    %v1070 = vrcp.pop %v1068
    %v1071 = vmul.f32 %v1060, %v1069
    %v1072 = vmul.f32 %v1062, %v1070
    %v1073 = vpack.c.bf16 %v1072, %v1071
    %1074 = vrot.lane.b32.xlu0 %v1000, 56
    %v1075 = vpop.permute.xlu0 %1074
    %v1078 = vsel %vm652, %v1073, 0
    %1080 = vmatpush.bf16.msra.mxu0 0
    %1081 = vmatpush.bf16.msra.mxu0 0
    %1082 = vmatpush.bf16.msra.mxu0 0
    %1083 = vmatpush.bf16.msra.mxu0 0
    %1084 = vmatpush.bf16.msra.mxu0 0
    %1085 = vmatpush.bf16.msra.mxu0 0
    %1086 = vmatpush.bf16.msra.mxu0 0
    %1087 = vmatpush.bf16.msra.mxu0 %v1075
    %1088 = vmatmul.bf16.gmra.mxu0 %v1078
    %v1089 = vpop.f32.mrf.mxu0
    %v1090 = vadd.f32 0.0, %v1089
    %v1091 = vpop.f32.mrf.mxu0
    %v1092 = vadd.f32 0.0, %v1091
    %1093 = vdwg.mxu0
    %1094 = vrot.lane.b32.xlu0 %v948, 112
    %v1095 = vpop.permute.xlu0 %1094
    %1096 = vrot.lane.b32.xlu0 %v949, 80
    %v1097 = vpop.permute.xlu0 %1096
    %v1099 = vsel %vm627, %v1095, 0
    %v1102 = vsel %vm627, %v1097, 0
    %1104 = vmatpush.bf16.xpose.msra.mxu0 0
    %1105 = vmatpush.bf16.xpose.msra.mxu0 0
    %1106 = vmatpush.bf16.xpose.msra.mxu0 0
    %1107 = vmatpush.bf16.xpose.msra.mxu0 0
    %1108 = vmatpush.bf16.xpose.msra.mxu0 0
    %1109 = vmatpush.bf16.xpose.msra.mxu0 0
    %1110 = vmatpush.bf16.xpose.msra.mxu0 0
    %1111 = vmatpush.bf16.xpose.msra.mxu0 %v1102
    %1112 = vmatmul.bf16.gmra.mxu0 %v1099
    %v1113 = vpop.f32.mrf.mxu0
    %v1114 = vadd.f32 0.0, %v1113
    %v1115 = vpop.f32.mrf.mxu0
    %v1116 = vadd.f32 0.0, %v1115
    %1117 = vdwg.mxu0
    %v1118 = vmul.f32 %v1114, 0.35355338
    %v1119 = vmul.f32 %v1116, 0.35355338
    %v1120 = vadd.f32 %v1118, %v946
    %v1121 = vadd.f32 %v1119, %v947
    %v1122 = vsel %vm652, %v1120, -inf
    %1123 = vmax.xlane.f32.xlu0 %v1122
    %v1124 = vpop.xlane.xlu0 %1123
    %v1125 = vsel %vm652, %v1121, -inf
    %1126 = vmax.xlane.f32.xlu0 %v1125
    %v1127 = vpop.xlane.xlu0 %1126
    %v1128 = vsub.f32 %v1120, %v1124
    %v1129 = vsub.f32 %v1121, %v1127
    %v1130 = vmul.f32 %v1128, 1.442695
    %v1131 = vpow.pop %v1130
    %v1132 = vmul.f32 %v1129, 1.442695
    %v1133 = vpow.pop %v1132
    %v1134 = vsel %vm652, %v1131, 0.0
    %1135 = vadd.xlane.f32.xlu0 %v1134
    %v1136 = vpop.xlane.xlu0 %1135
    %v1137 = vsel %vm652, %v1133, 0.0
    %1138 = vadd.xlane.f32.xlu0 %v1137
    %v1139 = vpop.xlane.xlu0 %1138
    %v1140 = vrcp.pop %v1136
    %v1141 = vrcp.pop %v1139
    %v1142 = vmul.f32 %v1131, %v1140
    %v1143 = vmul.f32 %v1133, %v1141
    %v1144 = vpack.c.bf16 %v1143, %v1142
    %1145 = vrot.lane.b32.xlu0 %v1000, 48
    %v1146 = vpop.permute.xlu0 %1145
    %v1149 = vsel %vm652, %v1144, 0
    %1151 = vmatpush.bf16.msra.mxu0 0
    %1152 = vmatpush.bf16.msra.mxu0 0
    %1153 = vmatpush.bf16.msra.mxu0 0
    %1154 = vmatpush.bf16.msra.mxu0 0
    %1155 = vmatpush.bf16.msra.mxu0 0
    %1156 = vmatpush.bf16.msra.mxu0 0
    %1157 = vmatpush.bf16.msra.mxu0 0
    %1158 = vmatpush.bf16.msra.mxu0 %v1146
    %1159 = vmatmul.bf16.gmra.mxu0 %v1149
    %v1160 = vpop.f32.mrf.mxu0
    %v1161 = vadd.f32 0.0, %v1160
    %v1162 = vpop.f32.mrf.mxu0
    %v1163 = vadd.f32 0.0, %v1162
    %1164 = vdwg.mxu0
    %1165 = vrot.lane.b32.xlu0 %v948, 104
    %v1166 = vpop.permute.xlu0 %1165
    %1167 = vrot.lane.b32.xlu0 %v949, 72
    %v1168 = vpop.permute.xlu0 %1167
    %v1170 = vsel %vm627, %v1166, 0
    %v1173 = vsel %vm627, %v1168, 0
    %1175 = vmatpush.bf16.xpose.msra.mxu0 0
    %1176 = vmatpush.bf16.xpose.msra.mxu0 0
    %1177 = vmatpush.bf16.xpose.msra.mxu0 0
    %1178 = vmatpush.bf16.xpose.msra.mxu0 0
    %1179 = vmatpush.bf16.xpose.msra.mxu0 0
    %1180 = vmatpush.bf16.xpose.msra.mxu0 0
    %1181 = vmatpush.bf16.xpose.msra.mxu0 0
    %1182 = vmatpush.bf16.xpose.msra.mxu0 %v1173
    %1183 = vmatmul.bf16.gmra.mxu0 %v1170
    %v1184 = vpop.f32.mrf.mxu0
    %v1185 = vadd.f32 0.0, %v1184
    %v1186 = vpop.f32.mrf.mxu0
    %v1187 = vadd.f32 0.0, %v1186
    %1188 = vdwg.mxu0
    %v1189 = vmul.f32 %v1185, 0.35355338
    %v1190 = vmul.f32 %v1187, 0.35355338
    %v1191 = vadd.f32 %v1189, %v946
    %v1192 = vadd.f32 %v1190, %v947
    %v1193 = vsel %vm652, %v1191, -inf
    %1194 = vmax.xlane.f32.xlu0 %v1193
    %v1195 = vpop.xlane.xlu0 %1194
    %v1196 = vsel %vm652, %v1192, -inf
    %1197 = vmax.xlane.f32.xlu0 %v1196
    %v1198 = vpop.xlane.xlu0 %1197
    %v1199 = vsub.f32 %v1191, %v1195
    %v1200 = vsub.f32 %v1192, %v1198
    %v1201 = vmul.f32 %v1199, 1.442695
    %v1202 = vpow.pop %v1201
    %v1203 = vmul.f32 %v1200, 1.442695
    %v1204 = vpow.pop %v1203
    %v1205 = vsel %vm652, %v1202, 0.0
    %1206 = vadd.xlane.f32.xlu0 %v1205
    %v1207 = vpop.xlane.xlu0 %1206
    %v1208 = vsel %vm652, %v1204, 0.0
    %1209 = vadd.xlane.f32.xlu0 %v1208
    %v1210 = vpop.xlane.xlu0 %1209
    %v1211 = vrcp.pop %v1207
    %v1212 = vrcp.pop %v1210
    %v1213 = vmul.f32 %v1202, %v1211
    %v1214 = vmul.f32 %v1204, %v1212
    %v1215 = vpack.c.bf16 %v1214, %v1213
    %1216 = vrot.lane.b32.xlu0 %v1000, 40
    %v1217 = vpop.permute.xlu0 %1216
    %v1220 = vsel %vm652, %v1215, 0
    %1222 = vmatpush.bf16.msra.mxu0 0
    %1223 = vmatpush.bf16.msra.mxu0 0
    %1224 = vmatpush.bf16.msra.mxu0 0
    %1225 = vmatpush.bf16.msra.mxu0 0
    %1226 = vmatpush.bf16.msra.mxu0 0
    %1227 = vmatpush.bf16.msra.mxu0 0
    %1228 = vmatpush.bf16.msra.mxu0 0
    %1229 = vmatpush.bf16.msra.mxu0 %v1217
    %1230 = vmatmul.bf16.gmra.mxu0 %v1220
    %v1231 = vpop.f32.mrf.mxu0
    %v1232 = vadd.f32 0.0, %v1231
    %v1233 = vpop.f32.mrf.mxu0
    %v1234 = vadd.f32 0.0, %v1233
    %1235 = vdwg.mxu0
    %1238 = vrot.lane.b32.xlu0 %v1090, 8
    %v1239 = vpop.permute.xlu0 %1238
    %1240 = vrot.lane.b32.xlu0 %v1092, 8
    %v1241 = vpop.permute.xlu0 %1240
    %1246 = vrot.lane.b32.xlu0 %v1161, 16
    %v1247 = vpop.permute.xlu0 %1246
    %1248 = vrot.lane.b32.xlu0 %v1163, 16
    %v1249 = vpop.permute.xlu0 %1248
    %1254 = vrot.lane.b32.xlu0 %v1232, 24
    %v1255 = vpop.permute.xlu0 %1254
    %1256 = vrot.lane.b32.xlu0 %v1234, 24
    %v1257 = vpop.permute.xlu0 %1256
    %v1260 = vsel %vm627, %v1018, %v1239
    %v1261 = vsel %vm627, %v1020, %v1241
    %v1262 = vsel %vm652, %v1260, %v1247
    %v1263 = vsel %vm652, %v1261, %v1249
    %v1264 = vsel %vm940, %v1262, %v1255
    %v1265 = vsel %vm940, %v1263, %v1257
    %v1266 = vpack.c.bf16 %v942, %v941
    %v1267 = vpack.c.bf16 %v1265, %v1264
    %1270 = vrot.lane.b32.xlu0 %v310, 96
    %v1271 = vpop.permute.xlu0 %1270
    %1272 = vrot.lane.b32.xlu0 %v313, 96
    %v1273 = vpop.permute.xlu0 %1272
    %v1277 = vsel %vm88, %v1266, 0
    %v1280 = vsel %vm88, %v1267, 0
    %1282 = vmatpush.bf16.msra.mxu0 0
    %1283 = vmatpush.bf16.msra.mxu0 0
    %1284 = vmatpush.bf16.msra.mxu0 0
    %1285 = vmatpush.bf16.msra.mxu0 0
    %1286 = vmatpush.bf16.msra.mxu0 0
    %1287 = vmatpush.bf16.msra.mxu0 0
    %1288 = vmatpush.bf16.msra.mxu0 %v1273
    %1289 = vmatpush.bf16.msra.mxu0 %v1271
    %1290 = vmatmul.bf16.gmra.mxu0 %v1277
    %v1291 = vpop.f32.mrf.mxu0
    %v1292 = vadd.f32 %v608, %v1291
    %v1293 = vpop.f32.mrf.mxu0
    %v1294 = vadd.f32 %v610, %v1293
    %1295 = vmatmul.bf16.gmra.mxu0 %v1280
    %v1296 = vpop.f32.mrf.mxu0
    %v1297 = vadd.f32 %v613, %v1296
    %v1298 = vpop.f32.mrf.mxu0
    %v1299 = vadd.f32 %v615, %v1298
    %1300 = vdwg.mxu0
    %v1301 = vadd.f32 %v1292, %v190
    %v1302 = vadd.f32 %v1294, %v191
    %v1303 = vadd.f32 %v1297, %v192
    %v1304 = vadd.f32 %v1299, %v193
    %v1305 = vld [vmem:[%s3 + $0x4] sm:$0x1]
    %v1306 = vld [vmem:[%s3 + $0x5] sm:$0x1]
    %v1307 = vsel %vm88, %v1301, 0.0
    %1308 = vadd.xlane.f32.xlu0 %v1307
    %v1309 = vpop.xlane.xlu0 %1308
    %v1310 = vsel %vm88, %v1302, 0.0
    %1311 = vadd.xlane.f32.xlu0 %v1310
    %v1312 = vpop.xlane.xlu0 %1311
    %v1313 = vsel %vm88, %v1303, 0.0
    %1314 = vadd.xlane.f32.xlu0 %v1313
    %v1315 = vpop.xlane.xlu0 %1314
    %v1316 = vsel %vm88, %v1304, 0.0
    %1317 = vadd.xlane.f32.xlu0 %v1316
    %v1318 = vpop.xlane.xlu0 %1317
    %v1319 = vmul.f32 %v1309, %v107
    %v1320 = vmul.f32 %v1312, %v107
    %v1321 = vmul.f32 %v1315, %v107
    %v1322 = vmul.f32 %v1318, %v107
    %v1323 = vsub.f32 %v1301, %v1319
    %v1324 = vsub.f32 %v1302, %v1320
    %v1325 = vsub.f32 %v1303, %v1321
    %v1326 = vsub.f32 %v1304, %v1322
    %v1327 = vmul.f32 %v1323, %v1323
    %v1328 = vmul.f32 %v1324, %v1324
    %v1329 = vmul.f32 %v1325, %v1325
    %v1330 = vmul.f32 %v1326, %v1326
    %v1331 = vsel %vm88, %v1327, 0.0
    %1332 = vadd.xlane.f32.xlu0 %v1331
    %v1333 = vpop.xlane.xlu0 %1332
    %v1334 = vsel %vm88, %v1328, 0.0
    %1335 = vadd.xlane.f32.xlu0 %v1334
    %v1336 = vpop.xlane.xlu0 %1335
    %v1337 = vsel %vm88, %v1329, 0.0
    %1338 = vadd.xlane.f32.xlu0 %v1337
    %v1339 = vpop.xlane.xlu0 %1338
    %v1340 = vsel %vm88, %v1330, 0.0
    %1341 = vadd.xlane.f32.xlu0 %v1340
    %v1342 = vpop.xlane.xlu0 %1341
    %v1343 = vmul.f32 %v1333, %v107
    %v1344 = vmul.f32 %v1336, %v107
    %v1345 = vmul.f32 %v1339, %v107
    %v1346 = vmul.f32 %v1342, %v107
    %v1347 = vadd.f32 %v1343, 1e-05
    %v1348 = vadd.f32 %v1344, 1e-05
    %v1349 = vadd.f32 %v1345, 1e-05
    %v1350 = vadd.f32 %v1346, 1e-05
    %v1351 = vrsqrt.pop %v1347
    %v1352 = vmul.f32 %v1351, %v1347
    %v1353 = vmul.f32 %v1352, %v1351
    %v1354 = vmul.f32 0.5, %v1353
    %v1355 = vsub.f32 1.5, %v1354
    %v1356 = vmul.f32 %v1351, %v1355
    %vm1357 = vweird.f32 %v1347
    %vm1358 = vweird.f32 %v1351
    %vm1359 = vmor %vm1357, %vm1358
    %v1360 = vsel %vm1359, %v1351, %v1356
    %v1361 = vrsqrt.pop %v1348
    %v1362 = vmul.f32 %v1361, %v1348
    %v1363 = vmul.f32 %v1362, %v1361
    %v1364 = vmul.f32 0.5, %v1363
    %v1365 = vsub.f32 1.5, %v1364
    %v1366 = vmul.f32 %v1361, %v1365
    %vm1367 = vweird.f32 %v1348
    %vm1368 = vweird.f32 %v1361
    %vm1369 = vmor %vm1367, %vm1368
    %v1370 = vsel %vm1369, %v1361, %v1366
    %v1371 = vrsqrt.pop %v1349
    %v1372 = vmul.f32 %v1371, %v1349
    %v1373 = vmul.f32 %v1372, %v1371
    %v1374 = vmul.f32 0.5, %v1373
    %v1375 = vsub.f32 1.5, %v1374
    %v1376 = vmul.f32 %v1371, %v1375
    %vm1377 = vweird.f32 %v1349
    %vm1378 = vweird.f32 %v1371
    %vm1379 = vmor %vm1377, %vm1378
    %v1380 = vsel %vm1379, %v1371, %v1376
    %v1381 = vrsqrt.pop %v1350
    %v1382 = vmul.f32 %v1381, %v1350
    %v1383 = vmul.f32 %v1382, %v1381
    %v1384 = vmul.f32 0.5, %v1383
    %v1385 = vsub.f32 1.5, %v1384
    %v1386 = vmul.f32 %v1381, %v1385
    %vm1387 = vweird.f32 %v1350
    %vm1388 = vweird.f32 %v1381
    %vm1389 = vmor %vm1387, %vm1388
    %v1390 = vsel %vm1389, %v1381, %v1386
    %v1391 = vmul.f32 %v1323, %v1360
    %v1392 = vmul.f32 %v1324, %v1370
    %v1393 = vmul.f32 %v1325, %v1380
    %v1394 = vmul.f32 %v1326, %v1390
    %v1395 = vperm.slane %v1305, 0
    %v1396 = vmul.f32 %v1391, %v1395
    %v1397 = vmul.f32 %v1392, %v1395
    %v1398 = vmul.f32 %v1393, %v1395
    %v1399 = vmul.f32 %v1394, %v1395
    %v1400 = vperm.slane %v1306, 0
    %v1401 = vadd.f32 %v1396, %v1400
    %v1402 = vadd.f32 %v1397, %v1400
    %v1403 = vadd.f32 %v1398, %v1400
    %v1404 = vadd.f32 %v1399, %v1400
    %s1405 = scalar_lea.vmem [#allocation2], 96
    %v1406 = vld [vmem:[%s1405] sm:$0xff]
    %v1407 = vld [vmem:[%s1405 + $0x8] sm:$0xff]
    %v1408 = vld [vmem:[%s1405 + $0x10] sm:$0xff]
    %v1409 = vld [vmem:[%s1405 + $0x18] sm:$0xff]
    %v1410 = vld [vmem:[%s1405 + $0x20] sm:$0xff]
    %v1411 = vld [vmem:[%s1405 + $0x28] sm:$0xff]
    %v1412 = vld [vmem:[%s1405 + $0x30] sm:$0xff]
    %v1413 = vld [vmem:[%s1405 + $0x38] sm:$0xff]
    %v1414 = vld [vmem:[%s1405 + $0x40] sm:$0xff]
    %v1415 = vld [vmem:[%s1405 + $0x48] sm:$0xff]
    %v1416 = vld [vmem:[%s1405 + $0x50] sm:$0xff]
    %v1417 = vld [vmem:[%s1405 + $0x58] sm:$0xff]
    %v1418 = vpack.c.bf16 %v1402, %v1401
    %v1419 = vpack.c.bf16 %v1404, %v1403
    %v1420 = vpack.c.bf16 %v1409, %v1406
    %v1421 = vpack.c.bf16 %v1410, %v1407
    %v1422 = vpack.c.bf16 %v1411, %v1408
    %v1423 = vpack.c.bf16 %v1415, %v1412
    %v1424 = vpack.c.bf16 %v1416, %v1413
    %v1425 = vpack.c.bf16 %v1417, %v1414
    %v1427 = vsel %vm88, %v1418, 0
    %v1430 = vsel %vm88, %v1419, 0
    %1432 = vmatpush.bf16.msra.mxu0 0
    %1433 = vmatpush.bf16.msra.mxu0 0
    %1434 = vmatpush.bf16.msra.mxu0 0
    %1435 = vmatpush.bf16.msra.mxu0 0
    %1436 = vmatpush.bf16.msra.mxu0 0
    %1437 = vmatpush.bf16.msra.mxu0 0
    %1438 = vmatpush.bf16.msra.mxu0 %v1423
    %1439 = vmatpush.bf16.msra.mxu0 %v1420
    %1440 = vmatmul.bf16.gmra.mxu0 %v1427
    %v1441 = vpop.f32.mrf.mxu0
    %v1442 = vadd.f32 0.0, %v1441
    %v1443 = vpop.f32.mrf.mxu0
    %v1444 = vadd.f32 0.0, %v1443
    %1445 = vmatmul.bf16.gmra.mxu0 %v1430
    %v1446 = vpop.f32.mrf.mxu0
    %v1447 = vadd.f32 0.0, %v1446
    %v1448 = vpop.f32.mrf.mxu0
    %v1449 = vadd.f32 0.0, %v1448
    %1450 = vdwg.mxu0
    %1451 = vmatpush.bf16.msra.mxu0 0
    %1452 = vmatpush.bf16.msra.mxu0 0
    %1453 = vmatpush.bf16.msra.mxu0 0
    %1454 = vmatpush.bf16.msra.mxu0 0
    %1455 = vmatpush.bf16.msra.mxu0 0
    %1456 = vmatpush.bf16.msra.mxu0 0
    %1457 = vmatpush.bf16.msra.mxu0 %v1424
    %1458 = vmatpush.bf16.msra.mxu0 %v1421
    %1459 = vmatmul.bf16.gmra.mxu0 %v1427
    %v1460 = vpop.f32.mrf.mxu0
    %v1461 = vadd.f32 0.0, %v1460
    %v1462 = vpop.f32.mrf.mxu0
    %v1463 = vadd.f32 0.0, %v1462
    %1464 = vmatmul.bf16.gmra.mxu0 %v1430
    %v1465 = vpop.f32.mrf.mxu0
    %v1466 = vadd.f32 0.0, %v1465
    %v1467 = vpop.f32.mrf.mxu0
    %v1468 = vadd.f32 0.0, %v1467
    %1469 = vdwg.mxu0
    %1470 = vmatpush.bf16.msra.mxu0 0
    %1471 = vmatpush.bf16.msra.mxu0 0
    %1472 = vmatpush.bf16.msra.mxu0 0
    %1473 = vmatpush.bf16.msra.mxu0 0
    %1474 = vmatpush.bf16.msra.mxu0 0
    %1475 = vmatpush.bf16.msra.mxu0 0
    %1476 = vmatpush.bf16.msra.mxu0 %v1425
    %1477 = vmatpush.bf16.msra.mxu0 %v1422
    %1478 = vmatmul.bf16.gmra.mxu0 %v1427
    %v1479 = vpop.f32.mrf.mxu0
    %v1480 = vadd.f32 0.0, %v1479
    %v1481 = vpop.f32.mrf.mxu0
    %v1482 = vadd.f32 0.0, %v1481
    %1483 = vmatmul.bf16.gmra.mxu0 %v1430
    %v1484 = vpop.f32.mrf.mxu0
    %v1485 = vadd.f32 0.0, %v1484
    %v1486 = vpop.f32.mrf.mxu0
    %v1487 = vadd.f32 0.0, %v1486
    %1488 = vdwg.mxu0
    %v1489 = vmul.f32 %v1442, %v67
    %v1490 = vmul.f32 %v1444, %v68
    %v1491 = vmul.f32 %v1447, %v69
    %v1492 = vmul.f32 %v1449, %v70
    %v1493 = vmul.f32 %v1442, %v386
    %v1494 = vmul.f32 %v1444, %v388
    %v1495 = vmul.f32 %v1447, %v390
    %v1496 = vmul.f32 %v1449, %v392
    %1501 = vrot.lane.b32.xlu0 %v1493, 32
    %v1502 = vpop.permute.xlu0 %1501
    %1503 = vrot.lane.b32.xlu0 %v1494, 32
    %v1504 = vpop.permute.xlu0 %1503
    %1505 = vrot.lane.b32.xlu0 %v1495, 32
    %v1506 = vpop.permute.xlu0 %1505
    %1507 = vrot.lane.b32.xlu0 %v1496, 32
    %v1508 = vpop.permute.xlu0 %1507
    %v1513 = vadd.f32 %v1489, %v1502
    %v1514 = vadd.f32 %v1490, %v1504
    %v1515 = vadd.f32 %v1491, %v1506
    %v1516 = vadd.f32 %v1492, %v1508
    %v1517 = vmul.f32 %v1442, %v426
    %v1518 = vmul.f32 %v1444, %v428
    %v1519 = vmul.f32 %v1447, %v430
    %v1520 = vmul.f32 %v1449, %v432
    %v1521 = vmul.f32 %v1461, %v62
    %v1522 = vmul.f32 %v1463, %v63
    %v1523 = vmul.f32 %v1466, %v64
    %v1524 = vmul.f32 %v1468, %v65
    %1529 = vrot.lane.b32.xlu0 %v1521, 32
    %v1530 = vpop.permute.xlu0 %1529
    %1531 = vrot.lane.b32.xlu0 %v1522, 32
    %v1532 = vpop.permute.xlu0 %1531
    %1533 = vrot.lane.b32.xlu0 %v1523, 32
    %v1534 = vpop.permute.xlu0 %1533
    %1535 = vrot.lane.b32.xlu0 %v1524, 32
    %v1536 = vpop.permute.xlu0 %1535
    %v1541 = vadd.f32 %v1517, %v1530
    %v1542 = vadd.f32 %v1518, %v1532
    %v1543 = vadd.f32 %v1519, %v1534
    %v1544 = vadd.f32 %v1520, %v1536
    %v1545 = vld [vmem:[%s6 + $0x1] sm:$0x1]
    %v1546 = vperm.slane %v1545, 0
    %1548 = vrot.lane.b32.xlu0 %v1546, 32
    %v1549 = vpop.permute.xlu0 %1548
    %v1551 = vadd.f32 %v1461, %v1549
    %v1552 = vadd.f32 %v1480, %v1549
    %v1553 = vadd.f32 %v1463, %v1549
    %v1554 = vadd.f32 %v1482, %v1549
    %v1555 = vadd.f32 %v1466, %v1549
    %v1556 = vadd.f32 %v1485, %v1549
    %v1557 = vadd.f32 %v1468, %v1549
    %v1558 = vadd.f32 %v1487, %v1549
    %v1559 = vmul.f32 %v1551, 0.5
    %v1560 = vmul.f32 %v1552, 0.5
    %v1561 = vmul.f32 %v1553, 0.5
    %v1562 = vmul.f32 %v1554, 0.5
    %v1563 = vmul.f32 %v1555, 0.5
    %v1564 = vmul.f32 %v1556, 0.5
    %v1565 = vmul.f32 %v1557, 0.5
    %v1566 = vmul.f32 %v1558, 0.5
    %v1567 = vmul.f32 %v1551, 0.044715
    %v1568 = vmul.f32 %v1552, 0.044715
    %v1569 = vmul.f32 %v1553, 0.044715
    %v1570 = vmul.f32 %v1554, 0.044715
    %v1571 = vmul.f32 %v1555, 0.044715
    %v1572 = vmul.f32 %v1556, 0.044715
    %v1573 = vmul.f32 %v1557, 0.044715
    %v1574 = vmul.f32 %v1558, 0.044715
    %v1575 = vmul.f32 %v1567, %v1551
    %v1576 = vmul.f32 %v1568, %v1552
    %v1577 = vmul.f32 %v1569, %v1553
    %v1578 = vmul.f32 %v1570, %v1554
    %v1579 = vmul.f32 %v1571, %v1555
    %v1580 = vmul.f32 %v1572, %v1556
    %v1581 = vmul.f32 %v1573, %v1557
    %v1582 = vmul.f32 %v1574, %v1558
    %v1583 = vmul.f32 %v1575, %v1551
    %v1584 = vmul.f32 %v1576, %v1552
    %v1585 = vmul.f32 %v1577, %v1553
    %v1586 = vmul.f32 %v1578, %v1554
    %v1587 = vmul.f32 %v1579, %v1555
    %v1588 = vmul.f32 %v1580, %v1556
    %v1589 = vmul.f32 %v1581, %v1557
    %v1590 = vmul.f32 %v1582, %v1558
    %v1591 = vadd.f32 %v1551, %v1583
    %v1592 = vadd.f32 %v1552, %v1584
    %v1593 = vadd.f32 %v1553, %v1585
    %v1594 = vadd.f32 %v1554, %v1586
    %v1595 = vadd.f32 %v1555, %v1587
    %v1596 = vadd.f32 %v1556, %v1588
    %v1597 = vadd.f32 %v1557, %v1589
    %v1598 = vadd.f32 %v1558, %v1590
    %v1599 = vmul.f32 %v1591, 0.7978846
    %v1600 = vmul.f32 %v1592, 0.7978846
    %v1601 = vmul.f32 %v1593, 0.7978846
    %v1602 = vmul.f32 %v1594, 0.7978846
    %v1603 = vmul.f32 %v1595, 0.7978846
    %v1604 = vmul.f32 %v1596, 0.7978846
    %v1605 = vmul.f32 %v1597, 0.7978846
    %v1606 = vmul.f32 %v1598, 0.7978846
    %v1607 = vtanh.pop %v1599
    %v1608 = vtanh.pop %v1600
    %v1609 = vtanh.pop %v1601
    %v1610 = vtanh.pop %v1602
    %v1611 = vtanh.pop %v1603
    %v1612 = vtanh.pop %v1604
    %v1613 = vtanh.pop %v1605
    %v1614 = vtanh.pop %v1606
    %v1615 = vadd.f32 %v1607, 1.0
    %v1616 = vadd.f32 %v1608, 1.0
    %v1617 = vadd.f32 %v1609, 1.0
    %v1618 = vadd.f32 %v1610, 1.0
    %v1619 = vadd.f32 %v1611, 1.0
    %v1620 = vadd.f32 %v1612, 1.0
    %v1621 = vadd.f32 %v1613, 1.0
    %v1622 = vadd.f32 %v1614, 1.0
    %v1623 = vmul.f32 %v1559, %v1615
    %v1624 = vmul.f32 %v1560, %v1616
    %v1625 = vmul.f32 %v1561, %v1617
    %v1626 = vmul.f32 %v1562, %v1618
    %v1627 = vmul.f32 %v1563, %v1619
    %v1628 = vmul.f32 %v1564, %v1620
    %v1629 = vmul.f32 %v1565, %v1621
    %v1630 = vmul.f32 %v1566, %v1622
    %s1631 = scalar_lea.vmem [#allocation4], 128
    %v1632 = vld [vmem:[%s1631] sm:$0xff]
    %v1633 = vld [vmem:[%s1631 + $0x8] sm:$0xff]
    %v1634 = vld [vmem:[%s1631 + $0x10] sm:$0xff]
    %v1635 = vld [vmem:[%s1631 + $0x18] sm:$0xff]
    %v1636 = vld [vmem:[%s1631 + $0x20] sm:$0xff]
    %v1637 = vld [vmem:[%s1631 + $0x28] sm:$0xff]
    %v1638 = vld [vmem:[%s1631 + $0x30] sm:$0xff]
    %v1639 = vld [vmem:[%s1631 + $0x38] sm:$0xff]
    %v1640 = vld [vmem:[%s1631 + $0x40] sm:$0xff]
    %v1641 = vld [vmem:[%s1631 + $0x48] sm:$0xff]
    %v1642 = vld [vmem:[%s1631 + $0x50] sm:$0xff]
    %v1643 = vld [vmem:[%s1631 + $0x58] sm:$0xff]
    %v1644 = vld [vmem:[%s1631 + $0x60] sm:$0xff]
    %v1645 = vld [vmem:[%s1631 + $0x68] sm:$0xff]
    %v1646 = vld [vmem:[%s1631 + $0x70] sm:$0xff]
    %v1647 = vld [vmem:[%s1631 + $0x78] sm:$0xff]
    %v1648 = vpack.c.bf16 %v1625, %v1623
    %v1649 = vpack.c.bf16 %v1626, %v1624
    %v1650 = vpack.c.bf16 %v1629, %v1627
    %v1651 = vpack.c.bf16 %v1630, %v1628
    %v1652 = vpack.c.bf16 %v1633, %v1632
    %v1653 = vpack.c.bf16 %v1635, %v1634
    %v1654 = vpack.c.bf16 %v1637, %v1636
    %v1655 = vpack.c.bf16 %v1639, %v1638
    %v1656 = vpack.c.bf16 %v1641, %v1640
    %v1657 = vpack.c.bf16 %v1643, %v1642
    %v1658 = vpack.c.bf16 %v1645, %v1644
    %v1659 = vpack.c.bf16 %v1647, %v1646
    %v1660 = vld [vmem:[%s6 + $0x3] sm:$0x1]
    %v1661 = vperm.slane %v1660, 0
    %1666 = vrot.lane.b32.xlu0 %v1648, 96
    %v1667 = vpop.permute.xlu0 %1666
    %1668 = vrot.lane.b32.xlu0 %v1649, 96
    %v1669 = vpop.permute.xlu0 %1668
    %1670 = vrot.lane.b32.xlu0 %v1650, 96
    %v1671 = vpop.permute.xlu0 %1670
    %1672 = vrot.lane.b32.xlu0 %v1651, 96
    %v1673 = vpop.permute.xlu0 %1672
    %v1674 = vsel %vm593, %v1667, %v1669
    %v1675 = vsel %vm593, %v1671, %v1673
    %1678 = vmatpush.bf16.msra.mxu0 %v1659
    %1679 = vmatpush.bf16.msra.mxu0 %v1658
    %1680 = vmatpush.bf16.msra.mxu0 %v1657
    %1681 = vmatpush.bf16.msra.mxu0 %v1656
    %1682 = vmatpush.bf16.msra.mxu0 %v1655
    %1683 = vmatpush.bf16.msra.mxu0 %v1654
    %1684 = vmatpush.bf16.msra.mxu0 %v1653
    %1685 = vmatpush.bf16.msra.mxu0 %v1652
    %1686 = vmatmul.bf16.gmra.mxu0 %v1674
    %v1687 = vpop.f32.mrf.mxu0
    %v1688 = vadd.f32 %v1661, %v1687
    %v1689 = vpop.f32.mrf.mxu0
    %v1690 = vadd.f32 %v1661, %v1689
    %1691 = vmatmul.bf16.gmra.mxu0 %v1675
    %v1692 = vpop.f32.mrf.mxu0
    %v1693 = vadd.f32 %v1661, %v1692
    %v1694 = vpop.f32.mrf.mxu0
    %v1695 = vadd.f32 %v1661, %v1694
    %1696 = vdwg.mxu0
    %v1697 = vpack.c.bf16 %v1514, %v1513
    %v1698 = vpack.c.bf16 %v1542, %v1541
    %1700 = vrot.lane.b32.xlu0 %v1698, 96
    %v1701 = vpop.permute.xlu0 %1700
    %v1703 = vsel %vm627, %v1697, 0
    %v1706 = vsel %vm627, %v1701, 0
    %1708 = vmatpush.bf16.xpose.msra.mxu0 0
    %1709 = vmatpush.bf16.xpose.msra.mxu0 0
    %1710 = vmatpush.bf16.xpose.msra.mxu0 0
    %1711 = vmatpush.bf16.xpose.msra.mxu0 0
    %1712 = vmatpush.bf16.xpose.msra.mxu0 0
    %1713 = vmatpush.bf16.xpose.msra.mxu0 0
    %1714 = vmatpush.bf16.xpose.msra.mxu0 0
    %1715 = vmatpush.bf16.xpose.msra.mxu0 %v1706
    %1716 = vmatmul.bf16.gmra.mxu0 %v1703
    %v1717 = vpop.f32.mrf.mxu0
    %v1718 = vadd.f32 0.0, %v1717
    %v1719 = vpop.f32.mrf.mxu0
    %v1720 = vadd.f32 0.0, %v1719
    %1721 = vdwg.mxu0
    %v1722 = vmul.f32 %v1718, 0.35355338
    %v1723 = vmul.f32 %v1720, 0.35355338
    %v1724 = vadd.f32 %v1722, %v620
    %v1725 = vadd.f32 %v1723, %v621
    %v1726 = vsel %vm652, %v1724, -inf
    %1727 = vmax.xlane.f32.xlu0 %v1726
    %v1728 = vpop.xlane.xlu0 %1727
    %v1729 = vsel %vm652, %v1725, -inf
    %1730 = vmax.xlane.f32.xlu0 %v1729
    %v1731 = vpop.xlane.xlu0 %1730
    %v1732 = vsub.f32 %v1724, %v1728
    %v1733 = vsub.f32 %v1725, %v1731
    %v1734 = vmul.f32 %v1732, 1.442695
    %v1735 = vpow.pop %v1734
    %v1736 = vmul.f32 %v1733, 1.442695
    %v1737 = vpow.pop %v1736
    %v1738 = vsel %vm652, %v1735, 0.0
    %1739 = vadd.xlane.f32.xlu0 %v1738
    %v1740 = vpop.xlane.xlu0 %1739
    %v1741 = vsel %vm652, %v1737, 0.0
    %1742 = vadd.xlane.f32.xlu0 %v1741
    %v1743 = vpop.xlane.xlu0 %1742
    %v1744 = vrcp.pop %v1740
    %v1745 = vrcp.pop %v1743
    %v1746 = vmul.f32 %v1735, %v1744
    %v1747 = vmul.f32 %v1737, %v1745
    %v1748 = vpack.c.bf16 %v1747, %v1746
    %v1749 = vpack.c.bf16 %v1444, %v1442
    %1751 = vrot.lane.b32.xlu0 %v1749, 64
    %v1752 = vpop.permute.xlu0 %1751
    %v1755 = vsel %vm652, %v1748, 0
    %1757 = vmatpush.bf16.msra.mxu0 0
    %1758 = vmatpush.bf16.msra.mxu0 0
    %1759 = vmatpush.bf16.msra.mxu0 0
    %1760 = vmatpush.bf16.msra.mxu0 0
    %1761 = vmatpush.bf16.msra.mxu0 0
    %1762 = vmatpush.bf16.msra.mxu0 0
    %1763 = vmatpush.bf16.msra.mxu0 0
    %1764 = vmatpush.bf16.msra.mxu0 %v1752
    %1765 = vmatmul.bf16.gmra.mxu0 %v1755
    %v1766 = vpop.f32.mrf.mxu0
    %v1767 = vadd.f32 0.0, %v1766
    %v1768 = vpop.f32.mrf.mxu0
    %v1769 = vadd.f32 0.0, %v1768
    %1770 = vdwg.mxu0
    %1772 = vrot.lane.b32.xlu0 %v1697, 120
    %v1773 = vpop.permute.xlu0 %1772
    %1774 = vrot.lane.b32.xlu0 %v1698, 88
    %v1775 = vpop.permute.xlu0 %1774
    %v1777 = vsel %vm627, %v1773, 0
    %v1780 = vsel %vm627, %v1775, 0
    %1782 = vmatpush.bf16.xpose.msra.mxu0 0
    %1783 = vmatpush.bf16.xpose.msra.mxu0 0
    %1784 = vmatpush.bf16.xpose.msra.mxu0 0
    %1785 = vmatpush.bf16.xpose.msra.mxu0 0
    %1786 = vmatpush.bf16.xpose.msra.mxu0 0
    %1787 = vmatpush.bf16.xpose.msra.mxu0 0
    %1788 = vmatpush.bf16.xpose.msra.mxu0 0
    %1789 = vmatpush.bf16.xpose.msra.mxu0 %v1780
    %1790 = vmatmul.bf16.gmra.mxu0 %v1777
    %v1791 = vpop.f32.mrf.mxu0
    %v1792 = vadd.f32 0.0, %v1791
    %v1793 = vpop.f32.mrf.mxu0
    %v1794 = vadd.f32 0.0, %v1793
    %1795 = vdwg.mxu0
    %v1796 = vmul.f32 %v1792, 0.35355338
    %v1797 = vmul.f32 %v1794, 0.35355338
    %v1798 = vadd.f32 %v1796, %v620
    %v1799 = vadd.f32 %v1797, %v621
    %v1800 = vsel %vm652, %v1798, -inf
    %1801 = vmax.xlane.f32.xlu0 %v1800
    %v1802 = vpop.xlane.xlu0 %1801
    %v1803 = vsel %vm652, %v1799, -inf
    %1804 = vmax.xlane.f32.xlu0 %v1803
    %v1805 = vpop.xlane.xlu0 %1804
    %v1806 = vsub.f32 %v1798, %v1802
    %v1807 = vsub.f32 %v1799, %v1805
    %v1808 = vmul.f32 %v1806, 1.442695
    %v1809 = vpow.pop %v1808
    %v1810 = vmul.f32 %v1807, 1.442695
    %v1811 = vpow.pop %v1810
    %v1812 = vsel %vm652, %v1809, 0.0
    %1813 = vadd.xlane.f32.xlu0 %v1812
    %v1814 = vpop.xlane.xlu0 %1813
    %v1815 = vsel %vm652, %v1811, 0.0
    %1816 = vadd.xlane.f32.xlu0 %v1815
    %v1817 = vpop.xlane.xlu0 %1816
    %v1818 = vrcp.pop %v1814
    %v1819 = vrcp.pop %v1817
    %v1820 = vmul.f32 %v1809, %v1818
    %v1821 = vmul.f32 %v1811, %v1819
    %v1822 = vpack.c.bf16 %v1821, %v1820
    %1823 = vrot.lane.b32.xlu0 %v1749, 56
    %v1824 = vpop.permute.xlu0 %1823
    %v1827 = vsel %vm652, %v1822, 0
    %1829 = vmatpush.bf16.msra.mxu0 0
    %1830 = vmatpush.bf16.msra.mxu0 0
    %1831 = vmatpush.bf16.msra.mxu0 0
    %1832 = vmatpush.bf16.msra.mxu0 0
    %1833 = vmatpush.bf16.msra.mxu0 0
    %1834 = vmatpush.bf16.msra.mxu0 0
    %1835 = vmatpush.bf16.msra.mxu0 0
    %1836 = vmatpush.bf16.msra.mxu0 %v1824
    %1837 = vmatmul.bf16.gmra.mxu0 %v1827
    %v1838 = vpop.f32.mrf.mxu0
    %v1839 = vadd.f32 0.0, %v1838
    %v1840 = vpop.f32.mrf.mxu0
    %v1841 = vadd.f32 0.0, %v1840
    %1842 = vdwg.mxu0
    %1843 = vrot.lane.b32.xlu0 %v1697, 112
    %v1844 = vpop.permute.xlu0 %1843
    %1845 = vrot.lane.b32.xlu0 %v1698, 80
    %v1846 = vpop.permute.xlu0 %1845
    %v1848 = vsel %vm627, %v1844, 0
    %v1851 = vsel %vm627, %v1846, 0
    %1853 = vmatpush.bf16.xpose.msra.mxu0 0
    %1854 = vmatpush.bf16.xpose.msra.mxu0 0
    %1855 = vmatpush.bf16.xpose.msra.mxu0 0
    %1856 = vmatpush.bf16.xpose.msra.mxu0 0
    %1857 = vmatpush.bf16.xpose.msra.mxu0 0
    %1858 = vmatpush.bf16.xpose.msra.mxu0 0
    %1859 = vmatpush.bf16.xpose.msra.mxu0 0
    %1860 = vmatpush.bf16.xpose.msra.mxu0 %v1851
    %1861 = vmatmul.bf16.gmra.mxu0 %v1848
    %v1862 = vpop.f32.mrf.mxu0
    %v1863 = vadd.f32 0.0, %v1862
    %v1864 = vpop.f32.mrf.mxu0
    %v1865 = vadd.f32 0.0, %v1864
    %1866 = vdwg.mxu0
    %v1867 = vmul.f32 %v1863, 0.35355338
    %v1868 = vmul.f32 %v1865, 0.35355338
    %v1869 = vadd.f32 %v1867, %v620
    %v1870 = vadd.f32 %v1868, %v621
    %v1871 = vsel %vm652, %v1869, -inf
    %1872 = vmax.xlane.f32.xlu0 %v1871
    %v1873 = vpop.xlane.xlu0 %1872
    %v1874 = vsel %vm652, %v1870, -inf
    %1875 = vmax.xlane.f32.xlu0 %v1874
    %v1876 = vpop.xlane.xlu0 %1875
    %v1877 = vsub.f32 %v1869, %v1873
    %v1878 = vsub.f32 %v1870, %v1876
    %v1879 = vmul.f32 %v1877, 1.442695
    %v1880 = vpow.pop %v1879
    %v1881 = vmul.f32 %v1878, 1.442695
    %v1882 = vpow.pop %v1881
    %v1883 = vsel %vm652, %v1880, 0.0
    %1884 = vadd.xlane.f32.xlu0 %v1883
    %v1885 = vpop.xlane.xlu0 %1884
    %v1886 = vsel %vm652, %v1882, 0.0
    %1887 = vadd.xlane.f32.xlu0 %v1886
    %v1888 = vpop.xlane.xlu0 %1887
    %v1889 = vrcp.pop %v1885
    %v1890 = vrcp.pop %v1888
    %v1891 = vmul.f32 %v1880, %v1889
    %v1892 = vmul.f32 %v1882, %v1890
    %v1893 = vpack.c.bf16 %v1892, %v1891
    %1894 = vrot.lane.b32.xlu0 %v1749, 48
    %v1895 = vpop.permute.xlu0 %1894
    %v1898 = vsel %vm652, %v1893, 0
    %1900 = vmatpush.bf16.msra.mxu0 0
    %1901 = vmatpush.bf16.msra.mxu0 0
    %1902 = vmatpush.bf16.msra.mxu0 0
    %1903 = vmatpush.bf16.msra.mxu0 0
    %1904 = vmatpush.bf16.msra.mxu0 0
    %1905 = vmatpush.bf16.msra.mxu0 0
    %1906 = vmatpush.bf16.msra.mxu0 0
    %1907 = vmatpush.bf16.msra.mxu0 %v1895
    %1908 = vmatmul.bf16.gmra.mxu0 %v1898
    %v1909 = vpop.f32.mrf.mxu0
    %v1910 = vadd.f32 0.0, %v1909
    %v1911 = vpop.f32.mrf.mxu0
    %v1912 = vadd.f32 0.0, %v1911
    %1913 = vdwg.mxu0
    %1914 = vrot.lane.b32.xlu0 %v1697, 104
    %v1915 = vpop.permute.xlu0 %1914
    %1916 = vrot.lane.b32.xlu0 %v1698, 72
    %v1917 = vpop.permute.xlu0 %1916
    %v1919 = vsel %vm627, %v1915, 0
    %v1922 = vsel %vm627, %v1917, 0
    %1924 = vmatpush.bf16.xpose.msra.mxu0 0
    %1925 = vmatpush.bf16.xpose.msra.mxu0 0
    %1926 = vmatpush.bf16.xpose.msra.mxu0 0
    %1927 = vmatpush.bf16.xpose.msra.mxu0 0
    %1928 = vmatpush.bf16.xpose.msra.mxu0 0
    %1929 = vmatpush.bf16.xpose.msra.mxu0 0
    %1930 = vmatpush.bf16.xpose.msra.mxu0 0
    %1931 = vmatpush.bf16.xpose.msra.mxu0 %v1922
    %1932 = vmatmul.bf16.gmra.mxu0 %v1919
    %v1933 = vpop.f32.mrf.mxu0
    %v1934 = vadd.f32 0.0, %v1933
    %v1935 = vpop.f32.mrf.mxu0
    %v1936 = vadd.f32 0.0, %v1935
    %1937 = vdwg.mxu0
    %v1938 = vmul.f32 %v1934, 0.35355338
    %v1939 = vmul.f32 %v1936, 0.35355338
    %v1940 = vadd.f32 %v1938, %v620
    %v1941 = vadd.f32 %v1939, %v621
    %v1942 = vsel %vm652, %v1940, -inf
    %1943 = vmax.xlane.f32.xlu0 %v1942
    %v1944 = vpop.xlane.xlu0 %1943
    %v1945 = vsel %vm652, %v1941, -inf
    %1946 = vmax.xlane.f32.xlu0 %v1945
    %v1947 = vpop.xlane.xlu0 %1946
    %v1948 = vsub.f32 %v1940, %v1944
    %v1949 = vsub.f32 %v1941, %v1947
    %v1950 = vmul.f32 %v1948, 1.442695
    %v1951 = vpow.pop %v1950
    %v1952 = vmul.f32 %v1949, 1.442695
    %v1953 = vpow.pop %v1952
    %v1954 = vsel %vm652, %v1951, 0.0
    %1955 = vadd.xlane.f32.xlu0 %v1954
    %v1956 = vpop.xlane.xlu0 %1955
    %v1957 = vsel %vm652, %v1953, 0.0
    %1958 = vadd.xlane.f32.xlu0 %v1957
    %v1959 = vpop.xlane.xlu0 %1958
    %v1960 = vrcp.pop %v1956
    %v1961 = vrcp.pop %v1959
    %v1962 = vmul.f32 %v1951, %v1960
    %v1963 = vmul.f32 %v1953, %v1961
    %v1964 = vpack.c.bf16 %v1963, %v1962
    %1965 = vrot.lane.b32.xlu0 %v1749, 40
    %v1966 = vpop.permute.xlu0 %1965
    %v1969 = vsel %vm652, %v1964, 0
    %1971 = vmatpush.bf16.msra.mxu0 0
    %1972 = vmatpush.bf16.msra.mxu0 0
    %1973 = vmatpush.bf16.msra.mxu0 0
    %1974 = vmatpush.bf16.msra.mxu0 0
    %1975 = vmatpush.bf16.msra.mxu0 0
    %1976 = vmatpush.bf16.msra.mxu0 0
    %1977 = vmatpush.bf16.msra.mxu0 0
    %1978 = vmatpush.bf16.msra.mxu0 %v1966
    %1979 = vmatmul.bf16.gmra.mxu0 %v1969
    %v1980 = vpop.f32.mrf.mxu0
    %v1981 = vadd.f32 0.0, %v1980
    %v1982 = vpop.f32.mrf.mxu0
    %v1983 = vadd.f32 0.0, %v1982
    %1984 = vdwg.mxu0
    %1987 = vrot.lane.b32.xlu0 %v1839, 8
    %v1988 = vpop.permute.xlu0 %1987
    %1989 = vrot.lane.b32.xlu0 %v1841, 8
    %v1990 = vpop.permute.xlu0 %1989
    %1995 = vrot.lane.b32.xlu0 %v1910, 16
    %v1996 = vpop.permute.xlu0 %1995
    %1997 = vrot.lane.b32.xlu0 %v1912, 16
    %v1998 = vpop.permute.xlu0 %1997
    %2003 = vrot.lane.b32.xlu0 %v1981, 24
    %v2004 = vpop.permute.xlu0 %2003
    %2005 = vrot.lane.b32.xlu0 %v1983, 24
    %v2006 = vpop.permute.xlu0 %2005
    %v2009 = vsel %vm627, %v1767, %v1988
    %v2010 = vsel %vm627, %v1769, %v1990
    %v2011 = vsel %vm652, %v2009, %v1996
    %v2012 = vsel %vm652, %v2010, %v1998
    %v2013 = vsel %vm940, %v2011, %v2004
    %v2014 = vsel %vm940, %v2012, %v2006
    %v2015 = vpack.c.bf16 %v1516, %v1515
    %v2016 = vpack.c.bf16 %v1544, %v1543
    %2018 = vrot.lane.b32.xlu0 %v2016, 96
    %v2019 = vpop.permute.xlu0 %2018
    %v2021 = vsel %vm627, %v2015, 0
    %v2024 = vsel %vm627, %v2019, 0
    %2026 = vmatpush.bf16.xpose.msra.mxu0 0
    %2027 = vmatpush.bf16.xpose.msra.mxu0 0
    %2028 = vmatpush.bf16.xpose.msra.mxu0 0
    %2029 = vmatpush.bf16.xpose.msra.mxu0 0
    %2030 = vmatpush.bf16.xpose.msra.mxu0 0
    %2031 = vmatpush.bf16.xpose.msra.mxu0 0
    %2032 = vmatpush.bf16.xpose.msra.mxu0 0
    %2033 = vmatpush.bf16.xpose.msra.mxu0 %v2024
    %2034 = vmatmul.bf16.gmra.mxu0 %v2021
    %v2035 = vpop.f32.mrf.mxu0
    %v2036 = vadd.f32 0.0, %v2035
    %v2037 = vpop.f32.mrf.mxu0
    %v2038 = vadd.f32 0.0, %v2037
    %2039 = vdwg.mxu0
    %v2040 = vmul.f32 %v2036, 0.35355338
    %v2041 = vmul.f32 %v2038, 0.35355338
    %v2042 = vadd.f32 %v2040, %v946
    %v2043 = vadd.f32 %v2041, %v947
    %v2044 = vsel %vm652, %v2042, -inf
    %2045 = vmax.xlane.f32.xlu0 %v2044
    %v2046 = vpop.xlane.xlu0 %2045
    %v2047 = vsel %vm652, %v2043, -inf
    %2048 = vmax.xlane.f32.xlu0 %v2047
    %v2049 = vpop.xlane.xlu0 %2048
    %v2050 = vsub.f32 %v2042, %v2046
    %v2051 = vsub.f32 %v2043, %v2049
    %v2052 = vmul.f32 %v2050, 1.442695
    %v2053 = vpow.pop %v2052
    %v2054 = vmul.f32 %v2051, 1.442695
    %v2055 = vpow.pop %v2054
    %v2056 = vsel %vm652, %v2053, 0.0
    %2057 = vadd.xlane.f32.xlu0 %v2056
    %v2058 = vpop.xlane.xlu0 %2057
    %v2059 = vsel %vm652, %v2055, 0.0
    %2060 = vadd.xlane.f32.xlu0 %v2059
    %v2061 = vpop.xlane.xlu0 %2060
    %v2062 = vrcp.pop %v2058
    %v2063 = vrcp.pop %v2061
    %v2064 = vmul.f32 %v2053, %v2062
    %v2065 = vmul.f32 %v2055, %v2063
    %v2066 = vpack.c.bf16 %v2065, %v2064
    %v2067 = vpack.c.bf16 %v1449, %v1447
    %2069 = vrot.lane.b32.xlu0 %v2067, 64
    %v2070 = vpop.permute.xlu0 %2069
    %v2073 = vsel %vm652, %v2066, 0
    %2075 = vmatpush.bf16.msra.mxu0 0
    %2076 = vmatpush.bf16.msra.mxu0 0
    %2077 = vmatpush.bf16.msra.mxu0 0
    %2078 = vmatpush.bf16.msra.mxu0 0
    %2079 = vmatpush.bf16.msra.mxu0 0
    %2080 = vmatpush.bf16.msra.mxu0 0
    %2081 = vmatpush.bf16.msra.mxu0 0
    %2082 = vmatpush.bf16.msra.mxu0 %v2070
    %2083 = vmatmul.bf16.gmra.mxu0 %v2073
    %v2084 = vpop.f32.mrf.mxu0
    %v2085 = vadd.f32 0.0, %v2084
    %v2086 = vpop.f32.mrf.mxu0
    %v2087 = vadd.f32 0.0, %v2086
    %2088 = vdwg.mxu0
    %2090 = vrot.lane.b32.xlu0 %v2015, 120
    %v2091 = vpop.permute.xlu0 %2090
    %2092 = vrot.lane.b32.xlu0 %v2016, 88
    %v2093 = vpop.permute.xlu0 %2092
    %v2095 = vsel %vm627, %v2091, 0
    %v2098 = vsel %vm627, %v2093, 0
    %2100 = vmatpush.bf16.xpose.msra.mxu0 0
    %2101 = vmatpush.bf16.xpose.msra.mxu0 0
    %2102 = vmatpush.bf16.xpose.msra.mxu0 0
    %2103 = vmatpush.bf16.xpose.msra.mxu0 0
    %2104 = vmatpush.bf16.xpose.msra.mxu0 0
    %2105 = vmatpush.bf16.xpose.msra.mxu0 0
    %2106 = vmatpush.bf16.xpose.msra.mxu0 0
    %2107 = vmatpush.bf16.xpose.msra.mxu0 %v2098
    %2108 = vmatmul.bf16.gmra.mxu0 %v2095
    %v2109 = vpop.f32.mrf.mxu0
    %v2110 = vadd.f32 0.0, %v2109
    %v2111 = vpop.f32.mrf.mxu0
    %v2112 = vadd.f32 0.0, %v2111
    %2113 = vdwg.mxu0
    %v2114 = vmul.f32 %v2110, 0.35355338
    %v2115 = vmul.f32 %v2112, 0.35355338
    %v2116 = vadd.f32 %v2114, %v946
    %v2117 = vadd.f32 %v2115, %v947
    %v2118 = vsel %vm652, %v2116, -inf
    %2119 = vmax.xlane.f32.xlu0 %v2118
    %v2120 = vpop.xlane.xlu0 %2119
    %v2121 = vsel %vm652, %v2117, -inf
    %2122 = vmax.xlane.f32.xlu0 %v2121
    %v2123 = vpop.xlane.xlu0 %2122
    %v2124 = vsub.f32 %v2116, %v2120
    %v2125 = vsub.f32 %v2117, %v2123
    %v2126 = vmul.f32 %v2124, 1.442695
    %v2127 = vpow.pop %v2126
    %v2128 = vmul.f32 %v2125, 1.442695
    %v2129 = vpow.pop %v2128
    %v2130 = vsel %vm652, %v2127, 0.0
    %2131 = vadd.xlane.f32.xlu0 %v2130
    %v2132 = vpop.xlane.xlu0 %2131
    %v2133 = vsel %vm652, %v2129, 0.0
    %2134 = vadd.xlane.f32.xlu0 %v2133
    %v2135 = vpop.xlane.xlu0 %2134
    %v2136 = vrcp.pop %v2132
    %v2137 = vrcp.pop %v2135
    %v2138 = vmul.f32 %v2127, %v2136
    %v2139 = vmul.f32 %v2129, %v2137
    %v2140 = vpack.c.bf16 %v2139, %v2138
    %2141 = vrot.lane.b32.xlu0 %v2067, 56
    %v2142 = vpop.permute.xlu0 %2141
    %v2145 = vsel %vm652, %v2140, 0
    %2147 = vmatpush.bf16.msra.mxu0 0
    %2148 = vmatpush.bf16.msra.mxu0 0
    %2149 = vmatpush.bf16.msra.mxu0 0
    %2150 = vmatpush.bf16.msra.mxu0 0
    %2151 = vmatpush.bf16.msra.mxu0 0
    %2152 = vmatpush.bf16.msra.mxu0 0
    %2153 = vmatpush.bf16.msra.mxu0 0
    %2154 = vmatpush.bf16.msra.mxu0 %v2142
    %2155 = vmatmul.bf16.gmra.mxu0 %v2145
    %v2156 = vpop.f32.mrf.mxu0
    %v2157 = vadd.f32 0.0, %v2156
    %v2158 = vpop.f32.mrf.mxu0
    %v2159 = vadd.f32 0.0, %v2158
    %2160 = vdwg.mxu0
    %2161 = vrot.lane.b32.xlu0 %v2015, 112
    %v2162 = vpop.permute.xlu0 %2161
    %2163 = vrot.lane.b32.xlu0 %v2016, 80
    %v2164 = vpop.permute.xlu0 %2163
    %v2166 = vsel %vm627, %v2162, 0
    %v2169 = vsel %vm627, %v2164, 0
    %2171 = vmatpush.bf16.xpose.msra.mxu0 0
    %2172 = vmatpush.bf16.xpose.msra.mxu0 0
    %2173 = vmatpush.bf16.xpose.msra.mxu0 0
    %2174 = vmatpush.bf16.xpose.msra.mxu0 0
    %2175 = vmatpush.bf16.xpose.msra.mxu0 0
    %2176 = vmatpush.bf16.xpose.msra.mxu0 0
    %2177 = vmatpush.bf16.xpose.msra.mxu0 0
    %2178 = vmatpush.bf16.xpose.msra.mxu0 %v2169
    %2179 = vmatmul.bf16.gmra.mxu0 %v2166
    %v2180 = vpop.f32.mrf.mxu0
    %v2181 = vadd.f32 0.0, %v2180
    %v2182 = vpop.f32.mrf.mxu0
    %v2183 = vadd.f32 0.0, %v2182
    %2184 = vdwg.mxu0
    %v2185 = vmul.f32 %v2181, 0.35355338
    %v2186 = vmul.f32 %v2183, 0.35355338
    %v2187 = vadd.f32 %v2185, %v946
    %v2188 = vadd.f32 %v2186, %v947
    %v2189 = vsel %vm652, %v2187, -inf
    %2190 = vmax.xlane.f32.xlu0 %v2189
    %v2191 = vpop.xlane.xlu0 %2190
    %v2192 = vsel %vm652, %v2188, -inf
    %2193 = vmax.xlane.f32.xlu0 %v2192
    %v2194 = vpop.xlane.xlu0 %2193
    %v2195 = vsub.f32 %v2187, %v2191
    %v2196 = vsub.f32 %v2188, %v2194
    %v2197 = vmul.f32 %v2195, 1.442695
    %v2198 = vpow.pop %v2197
    %v2199 = vmul.f32 %v2196, 1.442695
    %v2200 = vpow.pop %v2199
    %v2201 = vsel %vm652, %v2198, 0.0
    %2202 = vadd.xlane.f32.xlu0 %v2201
    %v2203 = vpop.xlane.xlu0 %2202
    %v2204 = vsel %vm652, %v2200, 0.0
    %2205 = vadd.xlane.f32.xlu0 %v2204
    %v2206 = vpop.xlane.xlu0 %2205
    %v2207 = vrcp.pop %v2203
    %v2208 = vrcp.pop %v2206
    %v2209 = vmul.f32 %v2198, %v2207
    %v2210 = vmul.f32 %v2200, %v2208
    %v2211 = vpack.c.bf16 %v2210, %v2209
    %2212 = vrot.lane.b32.xlu0 %v2067, 48
    %v2213 = vpop.permute.xlu0 %2212
    %v2216 = vsel %vm652, %v2211, 0
    %2218 = vmatpush.bf16.msra.mxu0 0
    %2219 = vmatpush.bf16.msra.mxu0 0
    %2220 = vmatpush.bf16.msra.mxu0 0
    %2221 = vmatpush.bf16.msra.mxu0 0
    %2222 = vmatpush.bf16.msra.mxu0 0
    %2223 = vmatpush.bf16.msra.mxu0 0
    %2224 = vmatpush.bf16.msra.mxu0 0
    %2225 = vmatpush.bf16.msra.mxu0 %v2213
    %2226 = vmatmul.bf16.gmra.mxu0 %v2216
    %v2227 = vpop.f32.mrf.mxu0
    %v2228 = vadd.f32 0.0, %v2227
    %v2229 = vpop.f32.mrf.mxu0
    %v2230 = vadd.f32 0.0, %v2229
    %2231 = vdwg.mxu0
    %2232 = vrot.lane.b32.xlu0 %v2015, 104
    %v2233 = vpop.permute.xlu0 %2232
    %2234 = vrot.lane.b32.xlu0 %v2016, 72
    %v2235 = vpop.permute.xlu0 %2234
    %v2237 = vsel %vm627, %v2233, 0
    %v2240 = vsel %vm627, %v2235, 0
    %2242 = vmatpush.bf16.xpose.msra.mxu0 0
    %2243 = vmatpush.bf16.xpose.msra.mxu0 0
    %2244 = vmatpush.bf16.xpose.msra.mxu0 0
    %2245 = vmatpush.bf16.xpose.msra.mxu0 0
    %2246 = vmatpush.bf16.xpose.msra.mxu0 0
    %2247 = vmatpush.bf16.xpose.msra.mxu0 0
    %2248 = vmatpush.bf16.xpose.msra.mxu0 0
    %2249 = vmatpush.bf16.xpose.msra.mxu0 %v2240
    %2250 = vmatmul.bf16.gmra.mxu0 %v2237
    %v2251 = vpop.f32.mrf.mxu0
    %v2252 = vadd.f32 0.0, %v2251
    %v2253 = vpop.f32.mrf.mxu0
    %v2254 = vadd.f32 0.0, %v2253
    %2255 = vdwg.mxu0
    %v2256 = vmul.f32 %v2252, 0.35355338
    %v2257 = vmul.f32 %v2254, 0.35355338
    %v2258 = vadd.f32 %v2256, %v946
    %v2259 = vadd.f32 %v2257, %v947
    %v2260 = vsel %vm652, %v2258, -inf
    %2261 = vmax.xlane.f32.xlu0 %v2260
    %v2262 = vpop.xlane.xlu0 %2261
    %v2263 = vsel %vm652, %v2259, -inf
    %2264 = vmax.xlane.f32.xlu0 %v2263
    %v2265 = vpop.xlane.xlu0 %2264
    %v2266 = vsub.f32 %v2258, %v2262
    %v2267 = vsub.f32 %v2259, %v2265
    %v2268 = vmul.f32 %v2266, 1.442695
    %v2269 = vpow.pop %v2268
    %v2270 = vmul.f32 %v2267, 1.442695
    %v2271 = vpow.pop %v2270
    %v2272 = vsel %vm652, %v2269, 0.0
    %2273 = vadd.xlane.f32.xlu0 %v2272
    %v2274 = vpop.xlane.xlu0 %2273
    %v2275 = vsel %vm652, %v2271, 0.0
    %2276 = vadd.xlane.f32.xlu0 %v2275
    %v2277 = vpop.xlane.xlu0 %2276
    %v2278 = vrcp.pop %v2274
    %v2279 = vrcp.pop %v2277
    %v2280 = vmul.f32 %v2269, %v2278
    %v2281 = vmul.f32 %v2271, %v2279
    %v2282 = vpack.c.bf16 %v2281, %v2280
    %2283 = vrot.lane.b32.xlu0 %v2067, 40
    %v2284 = vpop.permute.xlu0 %2283
    %v2287 = vsel %vm652, %v2282, 0
    %2289 = vmatpush.bf16.msra.mxu0 0
    %2290 = vmatpush.bf16.msra.mxu0 0
    %2291 = vmatpush.bf16.msra.mxu0 0
    %2292 = vmatpush.bf16.msra.mxu0 0
    %2293 = vmatpush.bf16.msra.mxu0 0
    %2294 = vmatpush.bf16.msra.mxu0 0
    %2295 = vmatpush.bf16.msra.mxu0 0
    %2296 = vmatpush.bf16.msra.mxu0 %v2284
    %2297 = vmatmul.bf16.gmra.mxu0 %v2287
    %v2298 = vpop.f32.mrf.mxu0
    %v2299 = vadd.f32 0.0, %v2298
    %v2300 = vpop.f32.mrf.mxu0
    %v2301 = vadd.f32 0.0, %v2300
    %2302 = vdwg.mxu0
    %2305 = vrot.lane.b32.xlu0 %v2157, 8
    %v2306 = vpop.permute.xlu0 %2305
    %2307 = vrot.lane.b32.xlu0 %v2159, 8
    %v2308 = vpop.permute.xlu0 %2307
    %2313 = vrot.lane.b32.xlu0 %v2228, 16
    %v2314 = vpop.permute.xlu0 %2313
    %2315 = vrot.lane.b32.xlu0 %v2230, 16
    %v2316 = vpop.permute.xlu0 %2315
    %2321 = vrot.lane.b32.xlu0 %v2299, 24
    %v2322 = vpop.permute.xlu0 %2321
    %2323 = vrot.lane.b32.xlu0 %v2301, 24
    %v2324 = vpop.permute.xlu0 %2323
    %v2327 = vsel %vm627, %v2085, %v2306
    %v2328 = vsel %vm627, %v2087, %v2308
    %v2329 = vsel %vm652, %v2327, %v2314
    %v2330 = vsel %vm652, %v2328, %v2316
    %v2331 = vsel %vm940, %v2329, %v2322
    %v2332 = vsel %vm940, %v2330, %v2324
    %v2333 = vpack.c.bf16 %v2014, %v2013
    %v2334 = vpack.c.bf16 %v2332, %v2331
    %2337 = vrot.lane.b32.xlu0 %v1422, 96
    %v2338 = vpop.permute.xlu0 %2337
    %2339 = vrot.lane.b32.xlu0 %v1425, 96
    %v2340 = vpop.permute.xlu0 %2339
    %v2344 = vsel %vm88, %v2333, 0
    %v2347 = vsel %vm88, %v2334, 0
    %2349 = vmatpush.bf16.msra.mxu0 0
    %2350 = vmatpush.bf16.msra.mxu0 0
    %2351 = vmatpush.bf16.msra.mxu0 0
    %2352 = vmatpush.bf16.msra.mxu0 0
    %2353 = vmatpush.bf16.msra.mxu0 0
    %2354 = vmatpush.bf16.msra.mxu0 0
    %2355 = vmatpush.bf16.msra.mxu0 %v2340
    %2356 = vmatpush.bf16.msra.mxu0 %v2338
    %2357 = vmatmul.bf16.gmra.mxu0 %v2344
    %v2358 = vpop.f32.mrf.mxu0
    %v2359 = vadd.f32 %v1688, %v2358
    %v2360 = vpop.f32.mrf.mxu0
    %v2361 = vadd.f32 %v1690, %v2360
    %2362 = vmatmul.bf16.gmra.mxu0 %v2347
    %v2363 = vpop.f32.mrf.mxu0
    %v2364 = vadd.f32 %v1693, %v2363
    %v2365 = vpop.f32.mrf.mxu0
    %v2366 = vadd.f32 %v1695, %v2365
    %2367 = vdwg.mxu0
    %v2368 = vadd.f32 %v2359, %v1301
    %v2369 = vadd.f32 %v2361, %v1302
    %v2370 = vadd.f32 %v2364, %v1303
    %v2371 = vadd.f32 %v2366, %v1304
    %v2372 = vld [vmem:[%s3 + $0x6] sm:$0x1]
    %v2373 = vld [vmem:[%s3 + $0x7] sm:$0x1]
    %v2374 = vsel %vm88, %v2368, 0.0
    %2375 = vadd.xlane.f32.xlu0 %v2374
    %v2376 = vpop.xlane.xlu0 %2375
    %v2377 = vsel %vm88, %v2369, 0.0
    %2378 = vadd.xlane.f32.xlu0 %v2377
    %v2379 = vpop.xlane.xlu0 %2378
    %v2380 = vsel %vm88, %v2370, 0.0
    %2381 = vadd.xlane.f32.xlu0 %v2380
    %v2382 = vpop.xlane.xlu0 %2381
    %v2383 = vsel %vm88, %v2371, 0.0
    %2384 = vadd.xlane.f32.xlu0 %v2383
    %v2385 = vpop.xlane.xlu0 %2384
    %v2386 = vmul.f32 %v2376, %v107
    %v2387 = vmul.f32 %v2379, %v107
    %v2388 = vmul.f32 %v2382, %v107
    %v2389 = vmul.f32 %v2385, %v107
    %v2390 = vsub.f32 %v2368, %v2386
    %v2391 = vsub.f32 %v2369, %v2387
    %v2392 = vsub.f32 %v2370, %v2388
    %v2393 = vsub.f32 %v2371, %v2389
    %v2394 = vmul.f32 %v2390, %v2390
    %v2395 = vmul.f32 %v2391, %v2391
    %v2396 = vmul.f32 %v2392, %v2392
    %v2397 = vmul.f32 %v2393, %v2393
    %v2398 = vsel %vm88, %v2394, 0.0
    %2399 = vadd.xlane.f32.xlu0 %v2398
    %v2400 = vpop.xlane.xlu0 %2399
    %v2401 = vsel %vm88, %v2395, 0.0
    %2402 = vadd.xlane.f32.xlu0 %v2401
    %v2403 = vpop.xlane.xlu0 %2402
    %v2404 = vsel %vm88, %v2396, 0.0
    %2405 = vadd.xlane.f32.xlu0 %v2404
    %v2406 = vpop.xlane.xlu0 %2405
    %v2407 = vsel %vm88, %v2397, 0.0
    %2408 = vadd.xlane.f32.xlu0 %v2407
    %v2409 = vpop.xlane.xlu0 %2408
    %v2410 = vmul.f32 %v2400, %v107
    %v2411 = vmul.f32 %v2403, %v107
    %v2412 = vmul.f32 %v2406, %v107
    %v2413 = vmul.f32 %v2409, %v107
    %v2414 = vadd.f32 %v2410, 1e-05
    %v2415 = vadd.f32 %v2411, 1e-05
    %v2416 = vadd.f32 %v2412, 1e-05
    %v2417 = vadd.f32 %v2413, 1e-05
    %v2418 = vrsqrt.pop %v2414
    %v2419 = vmul.f32 %v2418, %v2414
    %v2420 = vmul.f32 %v2419, %v2418
    %v2421 = vmul.f32 0.5, %v2420
    %v2422 = vsub.f32 1.5, %v2421
    %v2423 = vmul.f32 %v2418, %v2422
    %vm2424 = vweird.f32 %v2414
    %vm2425 = vweird.f32 %v2418
    %vm2426 = vmor %vm2424, %vm2425
    %v2427 = vsel %vm2426, %v2418, %v2423
    %v2428 = vrsqrt.pop %v2415
    %v2429 = vmul.f32 %v2428, %v2415
    %v2430 = vmul.f32 %v2429, %v2428
    %v2431 = vmul.f32 0.5, %v2430
    %v2432 = vsub.f32 1.5, %v2431
    %v2433 = vmul.f32 %v2428, %v2432
    %vm2434 = vweird.f32 %v2415
    %vm2435 = vweird.f32 %v2428
    %vm2436 = vmor %vm2434, %vm2435
    %v2437 = vsel %vm2436, %v2428, %v2433
    %v2438 = vrsqrt.pop %v2416
    %v2439 = vmul.f32 %v2438, %v2416
    %v2440 = vmul.f32 %v2439, %v2438
    %v2441 = vmul.f32 0.5, %v2440
    %v2442 = vsub.f32 1.5, %v2441
    %v2443 = vmul.f32 %v2438, %v2442
    %vm2444 = vweird.f32 %v2416
    %vm2445 = vweird.f32 %v2438
    %vm2446 = vmor %vm2444, %vm2445
    %v2447 = vsel %vm2446, %v2438, %v2443
    %v2448 = vrsqrt.pop %v2417
    %v2449 = vmul.f32 %v2448, %v2417
    %v2450 = vmul.f32 %v2449, %v2448
    %v2451 = vmul.f32 0.5, %v2450
    %v2452 = vsub.f32 1.5, %v2451
    %v2453 = vmul.f32 %v2448, %v2452
    %vm2454 = vweird.f32 %v2417
    %vm2455 = vweird.f32 %v2448
    %vm2456 = vmor %vm2454, %vm2455
    %v2457 = vsel %vm2456, %v2448, %v2453
    %v2458 = vmul.f32 %v2390, %v2427
    %v2459 = vmul.f32 %v2391, %v2437
    %v2460 = vmul.f32 %v2392, %v2447
    %v2461 = vmul.f32 %v2393, %v2457
    %v2462 = vperm.slane %v2372, 0
    %v2463 = vmul.f32 %v2458, %v2462
    %v2464 = vmul.f32 %v2459, %v2462
    %v2465 = vmul.f32 %v2460, %v2462
    %v2466 = vmul.f32 %v2461, %v2462
    %v2467 = vperm.slane %v2373, 0
    %v2468 = vadd.f32 %v2463, %v2467
    %v2469 = vadd.f32 %v2464, %v2467
    %v2470 = vadd.f32 %v2465, %v2467
    %v2471 = vadd.f32 %v2466, %v2467
    %v2472 = vld [vmem:[%s7] sm:$0xff]
    %v2473 = vld [vmem:[%s7 + $0x8] sm:$0xff]
    %v2474 = vld [vmem:[%s7 + $0x10] sm:$0xff]
    %v2475 = vld [vmem:[%s7 + $0x18] sm:$0xff]
    %v2476 = vpack.c.bf16 %v2469, %v2468
    %v2477 = vpack.c.bf16 %v2471, %v2470
    %v2478 = vpack.c.bf16 %v2473, %v2472
    %v2479 = vpack.c.bf16 %v2475, %v2474
    %v2480 = vld [vmem:[%s6 + $0x4] sm:$0x1]
    %v2481 = vperm.slane %v2480, 0
    %v2483 = vsel %vm88, %v2476, 0
    %v2486 = vsel %vm88, %v2477, 0
    %2488 = vmatpush.bf16.msra.mxu0 0
    %2489 = vmatpush.bf16.msra.mxu0 0
    %2490 = vmatpush.bf16.msra.mxu0 0
    %2491 = vmatpush.bf16.msra.mxu0 0
    %2492 = vmatpush.bf16.msra.mxu0 0
    %2493 = vmatpush.bf16.msra.mxu0 0
    %2494 = vmatpush.bf16.msra.mxu0 %v2479
    %2495 = vmatpush.bf16.msra.mxu0 %v2478
    %2496 = vmatmul.bf16.gmra.mxu0 %v2483
    %v2497 = vpop.f32.mrf.mxu0
    %v2498 = vpop.f32.mrf.mxu0
    %v2499 = vadd.f32 %v2481, %v2498
    %2500 = vmatmul.bf16.gmra.mxu0 %v2486
    %v2501 = vpop.f32.mrf.mxu0
    %v2502 = vpop.f32.mrf.mxu0
    %v2503 = vadd.f32 %v2481, %v2502
    %2504 = vdwg.mxu0
    %vm2505 = vcmask 58368
    %2506 = vst.msk [vmem:[%s8] sm:$0x3] %vm2505, %v2499
    %s2507 = scalar_lea.vmem %s8, 2
    %2508 = vst.msk [vmem:[%s2507] sm:$0x3] %vm2505, %v2503
    // Predicated region
    $region42: #{_lambda_.1} parent=1 // pred_check
      _
    $region43: #{_lambda_.1} parent=1 // pred_check_branch
      %2510 = sbr.rel (0) target = $region45
    $region44: #{_lambda_.1} parent=1 // pred_region
      _
    $region45: #{_lambda_.1} parent=1 // pred_fallthru
      _
    // Predicated region
    $region46: #{_lambda_.1} parent=1 // pred_check
      _
    $region47: #{_lambda_.1} parent=1 // pred_check_branch
      %2512 = sbr.rel (0) target = $region49
    $region48: #{_lambda_.1} parent=1 // pred_region
      _
    $region49: #{_lambda_.1} parent=1 // pred_fallthru
      _
    %2513 = vsyncpa [#allocation3], 1
    %2514 = vsyncpa [#allocation5], 1

</llo_original>
